<compile_context>
chip_gen: v7x
topology: tpu7x:2x2x1
jax: 0.10.0
libtpu: 0.0.40
codegen_flags: <defaults>
</compile_context>

<pallas_src>
import functools

import jax
import jax.numpy as jnp
from jax import lax
from jax.experimental import pallas as pl
from jax.experimental.pallas import tpu as pltpu


# ----------------------------- fused Pallas kernel ------------------------------


def _layernorm(x, g, b, eps):
    mu = jnp.mean(x, axis=-1, keepdims=True)
    var = jnp.mean((x - mu) ** 2, axis=-1, keepdims=True)      # biased var (matches torch LN)
    return (x - mu) * lax.rsqrt(var + eps) * g + b


def _segment_matrix(num_seg, seg_len):
    """(num_seg, num_seg*seg_len) f32 selector: row b is 1 over segment b's tokens.

    Built from 2-D iotas + compares only (no vector integer division on TPU)."""
    total = num_seg * seg_len
    b = lax.broadcasted_iota(jnp.int32, (num_seg, total), 0)
    t = lax.broadcasted_iota(jnp.int32, (num_seg, total), 1)
    return jnp.logical_and(t >= b * seg_len, t < (b + 1) * seg_len).astype(jnp.float32)


def _fused_forward_kernel(
    feat_ref, ctx_ref,
    w_emb_ref, w_qkv_ref, w_o_ref, w_ff1_ref, w_ff2_ref, layer_vecs_ref,
    w_ctx_ref, w_out_ref, misc_vecs_ref,
    o_ref,
    *, num_layers, num_heads, n_tok, n_ctx, eps):
    f32 = jnp.float32
    bt = o_ref.shape[1]                       # batch elements in this tile
    emb = w_emb_ref.shape[1]
    ffn = w_ff1_ref.shape[2]
    cdim = w_ctx_ref.shape[1]
    odim = o_ref.shape[2]
    hd = emb // num_heads
    scale = 1.0 / (hd ** 0.5)

    mv = misc_vecs_ref[...]                   # (5, Wm) packed final-stage 1-D params
    b_emb = mv[0:1, :emb]
    b_ctx = mv[1:2, :cdim]
    ln_g = mv[2:3, :cdim]
    ln_b = mv[3:4, :cdim]
    b_out = mv[4:5, :odim]

    # Token slab for the whole tile: (T, F) with T = bt * n_tok rows, so every matmul
    # below feeds the MXU with tall operands.  (Flattening was done in the wrapper.)
    x = feat_ref[0]                                                              # (T, F)
    x = jnp.dot(x, w_emb_ref[...], preferred_element_type=f32) + b_emb           # (T, E)

    # Hoisted segment selectors + block-diagonal attention bias (reused every layer/head).
    seg_tok = _segment_matrix(bt, n_tok)                                         # (bt, T)
    seg_ctx = _segment_matrix(bt, n_ctx)                                         # (bt, bt*Mc)
    same_batch = lax.dot_general(seg_tok, seg_tok, (((0,), (0,)), ((), ())),
                                 preferred_element_type=f32)                     # (T, T) 0/1
    attn_bias = (same_batch - 1.0) * 1e30     # 0 inside an example, -1e30 across examples

    for l in range(num_layers):               # static unroll over layers
        lv = layer_vecs_ref[l]                # (8, W) packed per-layer 1-D params
        b_qkv = lv[0:1, :3 * emb]
        b_o = lv[1:2, :emb]
        ln1_g, ln1_b = lv[2:3, :emb], lv[3:4, :emb]
        b_ff1 = lv[4:5, :ffn]
        b_ff2 = lv[5:6, :emb]
        ln2_g, ln2_b = lv[6:7, :emb], lv[7:8, :emb]
        wo_l = w_o_ref[l]                     # (E, E)

        # ---- fused QKV projection: one matmul + one bias add per layer
        qkv = jnp.dot(x, w_qkv_ref[l], preferred_element_type=f32) + b_qkv       # (T, 3E)

        # ---- multi-head attention over the whole tile with a block-diagonal mask;
        #      output projection accumulated per head (no lane concat).
        acc = None
        for h in range(num_heads):            # static unroll over heads
            q = qkv[:, h * hd:(h + 1) * hd]
            k = qkv[:, emb + h * hd:emb + (h + 1) * hd]
            v = qkv[:, 2 * emb + h * hd:2 * emb + (h + 1) * hd]
            s = lax.dot_general(q, k, (((1,), (1,)), ((), ())),
                                preferred_element_type=f32) * scale + attn_bias  # (T, T)
            s = s - jnp.max(s, axis=-1, keepdims=True)
            p = jnp.exp(s)                    # masked entries underflow to exactly 0
            p = p * pl.reciprocal(jnp.sum(p, axis=-1, keepdims=True), approx=True)
            ctx_h = jnp.dot(p, v, preferred_element_type=f32)                    # (T, D)
            contrib = jnp.dot(ctx_h, wo_l[h * hd:(h + 1) * hd, :],
                              preferred_element_type=f32)                        # (T, E)
            acc = contrib if acc is None else acc + contrib
        attn = acc + b_o

        # ---- residual + LayerNorm (post-norm), FFN(ReLU) + residual + LayerNorm
        x = _layernorm(x + attn, ln1_g, ln1_b, eps)
        hid = jnp.maximum(
            jnp.dot(x, w_ff1_ref[l], preferred_element_type=f32) + b_ff1, 0.0)
        ff = jnp.dot(hid, w_ff2_ref[l], preferred_element_type=f32) + b_ff2
        x = _layernorm(x + ff, ln2_g, ln2_b, eps)

    # ---- context integration + ReLU; torch.cat(dim=1) + mean is folded into per-example
    #      segment sums (matmuls with the hoisted one-hot selectors -> no concat/reshape).
    c = ctx_ref[0]                                                               # (bt*Mc, E)
    y_tok = jnp.maximum(
        jnp.dot(x, w_ctx_ref[...], preferred_element_type=f32) + b_ctx, 0.0)     # (T, C)
    y_ctx = jnp.maximum(
        jnp.dot(c, w_ctx_ref[...], preferred_element_type=f32) + b_ctx, 0.0)     # (bt*Mc, C)
    agg = (jnp.dot(seg_tok, y_tok, preferred_element_type=f32)
           + jnp.dot(seg_ctx, y_ctx, preferred_element_type=f32)) * (1.0 / (n_tok + n_ctx))

    nrm = _layernorm(agg, ln_g, ln_b, eps)                                       # (bt, C)
    out = jnp.dot(nrm, w_out_ref[...], preferred_element_type=f32) + b_out       # (bt, O)
    o_ref[0] = out.astype(o_ref.dtype)


_WEIGHT_KEYS = ("w_emb", "w_qkv", "w_o", "w_ff1", "w_ff2", "layer_vecs",
                "w_ctx", "w_out", "misc_vecs")


def _full_spec(arr):
    nd = arr.ndim
    return pl.BlockSpec(arr.shape, lambda g, _nd=nd: (0,) * _nd)


def special_transformer_forward(features, context_embedding, packed, *, num_heads,
                                eps=1e-5, block_batch=32):
    B, N, F = features.shape
    _, Mc, E = context_embedding.shape
    O = packed["w_out"].shape[1]
    C = packed["w_ctx"].shape[1]
    FF = packed["w_ff1"].shape[2]
    L = packed["w_qkv"].shape[0]

    # Batch tile size: with N=8 tokens/example the default block_batch=32 gives 256 token
    # rows per step (full MXU height on v6e/v7x, >=128 for v5e).  Lower block_batch if the
    # per-step working set must shrink (v7x 64 MiB VMEM) or to keep the grid length a
    # multiple of 2 for v7x's two TensorCores.
    Bt = min(block_batch, B)
    G = pl.cdiv(B, Bt)
    Bp = G * Bt
    if Bp != B:
        features = jnp.pad(features, ((0, Bp - B), (0, 0), (0, 0)))
        context_embedding = jnp.pad(context_embedding, ((0, Bp - B), (0, 0), (0, 0)))
    # Flatten each batch tile into the token (sublane) axis here (free XLA reshape) so the
    # kernel needs no in-kernel reshapes at all.
    feat = features.reshape(G, Bt * N, F)
    ctxe = context_embedding.reshape(G, Bt * Mc, E)

    weights = [packed[k] for k in _WEIGHT_KEYS]

    # Advisory cost estimate for the whole fused forward.
    D = E // num_heads
    T = Bt * N
    tok = Bp * N
    flops = 2 * tok * F * E
    flops += L * (2 * tok * E * 3 * E                # fused qkv
                  + num_heads * G * 4 * T * T * D    # block-diag scores + p@v
                  + 2 * tok * E * E                  # per-head out-proj accumulation
                  + 4 * tok * E * FF)                # ffn
    flops += 2 * (tok + Bp * Mc) * E * C + 2 * Bp * C * O
    transcendentals = L * num_heads * G * T * T
    bytes_accessed = 4 * (feat.size + ctxe.size
                          + sum(int(w.size) for w in weights) + G * Bt * O)

    out = pl.pallas_call(
        functools.partial(_fused_forward_kernel, num_layers=L, num_heads=num_heads,
                          n_tok=N, n_ctx=Mc, eps=eps),
        out_shape=jax.ShapeDtypeStruct((G, Bt, O), jnp.float32),
        grid=(G,),
        in_specs=[pl.BlockSpec((1, Bt * N, F), lambda g: (g, 0, 0)),
                  pl.BlockSpec((1, Bt * Mc, E), lambda g: (g, 0, 0))]
                 + [_full_spec(w) for w in weights],
        out_specs=pl.BlockSpec((1, Bt, O), lambda g: (g, 0, 0)),
        compiler_params=pltpu.CompilerParams(dimension_semantics=("parallel",)),
        cost_estimate=pl.CostEstimate(flops=int(flops),
                                      transcendentals=int(transcendentals),
                                      bytes_accessed=int(bytes_accessed)),
    )(feat, ctxe, *weights)
    return out.reshape(Bp, O)[:B]


# ----------------------------- parameter init & packing ------------------------------


def _lin_init(key, fan_in, shape):
    bound = 1.0 / (fan_in ** 0.5)
    return jax.random.uniform(key, shape, jnp.float32, -bound, bound)


def init_params(key, feature_dim, E, num_heads, num_layers, ffn_dim, context_dim, output_dim):
    keys = iter(jax.random.split(key, 8 + 10 * num_layers))
    params = {
        "W_emb": _lin_init(next(keys), feature_dim, (feature_dim, E)),
        "b_emb": _lin_init(next(keys), feature_dim, (E,)),
        "W_ctx": _lin_init(next(keys), E, (E, context_dim)),
        "b_ctx": _lin_init(next(keys), E, (context_dim,)),
        "ln_g": jnp.ones((context_dim,), jnp.float32),
        "ln_b": jnp.zeros((context_dim,), jnp.float32),
        "W_out": _lin_init(next(keys), context_dim, (context_dim, output_dim)),
        "b_out": _lin_init(next(keys), context_dim, (output_dim,)),
        "layers": [],
    }
    for _ in range(num_layers):
        layer = {
            "w_qkv": _lin_init(next(keys), E, (E, 3 * E)),       # stored as [in, out] (x @ W)
            "b_qkv": jnp.zeros((3 * E,), jnp.float32),
            "w_o": _lin_init(next(keys), E, (E, E)),
            "b_o": jnp.zeros((E,), jnp.float32),
            "ln1_g": jnp.ones((E,), jnp.float32),
            "ln1_b": jnp.zeros((E,), jnp.float32),
            "w_ff1": _lin_init(next(keys), E, (E, ffn_dim)),
            "b_ff1": _lin_init(next(keys), E, (ffn_dim,)),
            "w_ff2": _lin_init(next(keys), ffn_dim, (ffn_dim, E)),
            "b_ff2": _lin_init(next(keys), ffn_dim, (E,)),
            "ln2_g": jnp.ones((E,), jnp.float32),
            "ln2_b": jnp.zeros((E,), jnp.float32),
        }
        params["layers"].append(layer)
    return params


def pack_params(params):
    """Consolidate PyTorch-equivalent weights into a few packed kernel operands.

    qkv stays fused as (L, E, 3E); per-layer 1-D params (biases / LN) become rows of one
    (L, 8, W) array; final-stage 1-D params become a (5, W') array."""
    E = params["W_emb"].shape[1]
    C = params["W_ctx"].shape[1]
    O = params["W_out"].shape[1]
    FF = params["layers"][0]["w_ff1"].shape[1]
    W = max(3 * E, FF)
    Wm = max(E, C, O)

    def row(vec, width):
        return jnp.pad(vec.reshape(1, -1), ((0, 0), (0, width - vec.shape[0])))

    w_qkv, w_o, w_ff1, w_ff2, layer_vecs = [], [], [], [], []
    for layer in params["layers"]:
        w_qkv.append(layer["w_qkv"])
        w_o.append(layer["w_o"])
        w_ff1.append(layer["w_ff1"])
        w_ff2.append(layer["w_ff2"])
        layer_vecs.append(jnp.concatenate([
            row(layer["b_qkv"], W), row(layer["b_o"], W),
            row(layer["ln1_g"], W), row(layer["ln1_b"], W),
            row(layer["b_ff1"], W), row(layer["b_ff2"], W),
            row(layer["ln2_g"], W), row(layer["ln2_b"], W)], axis=0))
    misc_vecs = jnp.concatenate([
        row(params["b_emb"], Wm), row(params["b_ctx"], Wm),
        row(params["ln_g"], Wm), row(params["ln_b"], Wm),
        row(params["b_out"], Wm)], axis=0)

    return {
        "w_emb": params["W_emb"],
        "w_qkv": jnp.stack(w_qkv), "w_o": jnp.stack(w_o),
        "w_ff1": jnp.stack(w_ff1), "w_ff2": jnp.stack(w_ff2),
        "layer_vecs": jnp.stack(layer_vecs),
        "w_ctx": params["W_ctx"], "w_out": params["W_out"],
        "misc_vecs": misc_vecs,
    }


# ----------------------------- pure-JAX reference (for a sanity check) ---------------


def _ln_ref(x, g, b, eps=1e-5):
    mu = jnp.mean(x, axis=-1, keepdims=True)
    var = jnp.mean((x - mu) ** 2, axis=-1, keepdims=True)
    return (x - mu) * lax.rsqrt(var + eps) * g + b


def reference_forward(features, context_embedding, params, num_heads, eps=1e-5):
    hp = lax.Precision.HIGHEST
    x = jnp.matmul(features, params["W_emb"], precision=hp) + params["b_emb"]
    B, N, E = x.shape
    H = num_heads
    D = E // H
    for layer in params["layers"]:
        qkv = jnp.matmul(x, layer["w_qkv"], precision=hp) + layer["b_qkv"]
        q, k, v = qkv[..., :E], qkv[..., E:2 * E], qkv[..., 2 * E:]
        q = q.reshape(B, N, H, D).transpose(0, 2, 1, 3)
        k = k.reshape(B, N, H, D).transpose(0, 2, 1, 3)
        v = v.reshape(B, N, H, D).transpose(0, 2, 1, 3)
        s = jnp.einsum("bhqd,bhkd->bhqk", q, k, precision=hp) / (D ** 0.5)
        p = jax.nn.softmax(s, axis=-1)
        ctx = jnp.einsum("bhqk,bhkd->bhqd", p, v, precision=hp)
        ctx = ctx.transpose(0, 2, 1, 3).reshape(B, N, E)
        attn = jnp.matmul(ctx, layer["w_o"], precision=hp) + layer["b_o"]
        x = _ln_ref(x + attn, layer["ln1_g"], layer["ln1_b"], eps)
        h_ = jax.nn.relu(jnp.matmul(x, layer["w_ff1"], precision=hp) + layer["b_ff1"])
        ff = jnp.matmul(h_, layer["w_ff2"], precision=hp) + layer["b_ff2"]
        x = _ln_ref(x + ff, layer["ln2_g"], layer["ln2_b"], eps)
    xc = jnp.concatenate([x, context_embedding], axis=1)
    y = jax.nn.relu(jnp.matmul(xc, params["W_ctx"], precision=hp) + params["b_ctx"])
    agg = jnp.mean(y, axis=1)
    nrm = _ln_ref(agg, params["ln_g"], params["ln_b"], eps)
    return jnp.matmul(nrm, params["W_out"], precision=hp) + params["b_out"]


# --------------------------------- main -------------------------------------


if __name__ == "__main__":
    # config (would come from the JSON file in the torch module)
    feature_dim, embedding_dim, num_heads = 8, 32, 4
    num_layers, ffn_dim, context_dim, output_dim = 2, 64, 16, 4
    B, N = 2, 8          # batch, num_features (sequence of feature tokens)
    Mc = 1               # number of context tokens

    key = jax.random.PRNGKey(0)
    kf, kc, kp, kf2, kc2 = jax.random.split(key, 5)
    features = jax.random.normal(kf, (B, N, feature_dim), jnp.float32)
    # context_embedding must share the embedding dim to be concat-able along dim=1.
    context_embedding = jax.random.normal(kc, (B, Mc, embedding_dim), jnp.float32)

    params = init_params(kp, feature_dim, embedding_dim, num_heads,
                         num_layers, ffn_dim, context_dim, output_dim)
    packed = pack_params(params)

    fwd = jax.jit(functools.partial(special_transformer_forward, num_heads=num_heads))
    out = fwd(features, context_embedding, packed)
    jax.block_until_ready(out)

    assert out.shape == (B, output_dim) and out.dtype == jnp.float32
    assert bool(jnp.all(jnp.isfinite(out)))

    # numerical sanity check against a pure-JAX reference (loose tol: approx reciprocal
    # in softmax + MXU matmul precision differences).
    ref = reference_forward(features, context_embedding, params, num_heads)
    assert jnp.allclose(out, ref, atol=5e-2, rtol=5e-2), (out, ref)

    # second config: exercises multi-step grid + batch padding (B=5, Bt=4 -> grid of 2).
    B2 = 5
    features2 = jax.random.normal(kf2, (B2, N, feature_dim), jnp.float32)
    context_embedding2 = jax.random.normal(kc2, (B2, Mc, embedding_dim), jnp.float32)
    fwd2 = jax.jit(functools.partial(special_transformer_forward,
                                     num_heads=num_heads, block_batch=4))
    out2 = fwd2(features2, context_embedding2, packed)
    jax.block_until_ready(out2)
    assert out2.shape == (B2, output_dim)
    ref2 = reference_forward(features2, context_embedding2, params, num_heads)
    assert jnp.allclose(out2, ref2, atol=5e-2, rtol=5e-2), (out2, ref2)

    # TODO(synk): dropout layers are identity (inference semantics); get_attention_weights
    # (a separate diagnostic method) and JSON config-file loading are not ported.
    print("KERNEL_OK")
</pallas_src>

<mosaic_0001>
module attributes {stable_mosaic.version = 11 : i64} {
  func.func @_fused_forward_kernel(%arg0: i32, %arg1: memref<1x16x8xf32, #tpu.memory_space<vmem>>, %arg2: memref<1x2x32xf32, #tpu.memory_space<vmem>>, %arg3: memref<8x32xf32, #tpu.memory_space<vmem>>, %arg4: memref<2x32x96xf32, #tpu.memory_space<vmem>>, %arg5: memref<2x32x32xf32, #tpu.memory_space<vmem>>, %arg6: memref<2x32x64xf32, #tpu.memory_space<vmem>>, %arg7: memref<2x64x32xf32, #tpu.memory_space<vmem>>, %arg8: memref<2x8x96xf32, #tpu.memory_space<vmem>>, %arg9: memref<32x16xf32, #tpu.memory_space<vmem>>, %arg10: memref<16x4xf32, #tpu.memory_space<vmem>>, %arg11: memref<5x32xf32, #tpu.memory_space<vmem>>, %arg12: memref<1x2x4xf32, #tpu.memory_space<vmem>>) attributes {dimension_semantics = [#tpu.dimension_semantics<parallel>], iteration_bounds = array<i64: 1>, scalar_prefetch = 0 : i64, scratch_operands = 0 : i64, tpu.core_type = #tpu.core_type<tc>, window_params = [{transform_indices = @transform_0, window_bounds = array<i64: 1, 16, 8>}, {transform_indices = @transform_1, window_bounds = array<i64: 1, 2, 32>}, {pipeline_mode = #tpu.pipeline_mode<synchronous>, transform_indices = @transform_2, window_bounds = array<i64: 8, 32>}, {pipeline_mode = #tpu.pipeline_mode<synchronous>, transform_indices = @transform_3, window_bounds = array<i64: 2, 32, 96>}, {pipeline_mode = #tpu.pipeline_mode<synchronous>, transform_indices = @transform_4, window_bounds = array<i64: 2, 32, 32>}, {pipeline_mode = #tpu.pipeline_mode<synchronous>, transform_indices = @transform_5, window_bounds = array<i64: 2, 32, 64>}, {pipeline_mode = #tpu.pipeline_mode<synchronous>, transform_indices = @transform_6, window_bounds = array<i64: 2, 64, 32>}, {pipeline_mode = #tpu.pipeline_mode<synchronous>, transform_indices = @transform_7, window_bounds = array<i64: 2, 8, 96>}, {pipeline_mode = #tpu.pipeline_mode<synchronous>, transform_indices = @transform_8, window_bounds = array<i64: 32, 16>}, {pipeline_mode = #tpu.pipeline_mode<synchronous>, transform_indices = @transform_9, window_bounds = array<i64: 16, 4>}, {pipeline_mode = #tpu.pipeline_mode<synchronous>, transform_indices = @transform_10, window_bounds = array<i64: 5, 32>}, {transform_indices = @transform_11, window_bounds = array<i64: 1, 2, 4>}]} {
    %c0 = arith.constant 0 : index
    %c0_0 = arith.constant 0 : index
    %0 = vector.load %arg11[%c0, %c0_0] : memref<5x32xf32, #tpu.memory_space<vmem>>, vector<5x32xf32>
    %1 = vector.extract_strided_slice %0 {offsets = [0, 0], sizes = [1, 32], strides = [1, 1]} : vector<5x32xf32> to vector<1x32xf32>
    %2 = vector.extract_strided_slice %0 {offsets = [1, 0], sizes = [1, 16], strides = [1, 1]} : vector<5x32xf32> to vector<1x16xf32>
    %3 = vector.extract_strided_slice %0 {offsets = [2, 0], sizes = [1, 16], strides = [1, 1]} : vector<5x32xf32> to vector<1x16xf32>
    %4 = vector.extract_strided_slice %0 {offsets = [3, 0], sizes = [1, 16], strides = [1, 1]} : vector<5x32xf32> to vector<1x16xf32>
    %5 = vector.extract_strided_slice %0 {offsets = [4, 0], sizes = [1, 4], strides = [1, 1]} : vector<5x32xf32> to vector<1x4xf32>
    %c0_1 = arith.constant 0 : index
    %c0_2 = arith.constant 0 : index
    %c0_3 = arith.constant 0 : index
    %6 = vector.load %arg1[%c0_1, %c0_2, %c0_3] : memref<1x16x8xf32, #tpu.memory_space<vmem>>, vector<1x16x8xf32>
    %7 = vector.shape_cast %6 : vector<1x16x8xf32> to vector<16x8xf32>
    %c0_4 = arith.constant 0 : index
    %c0_5 = arith.constant 0 : index
    %8 = vector.load %arg3[%c0_4, %c0_5] : memref<8x32xf32, #tpu.memory_space<vmem>>, vector<8x32xf32>
    %cst = arith.constant dense<0.000000e+00> : vector<16x32xf32>
    %9 = tpu.matmul %7, %8, %cst {dimension_numbers = #tpu.dot_dimension_numbers<[1], [0], [0], [1], [0, 0, 1, 1], [], []>} : vector<16x8xf32>, vector<8x32xf32>, vector<16x32xf32> -> vector<16x32xf32>
    %10 = vector.broadcast %1 : vector<1x32xf32> to vector<16x32xf32>
    %11 = arith.addf %9, %10 : vector<16x32xf32>
    %12 = tpu.iota {dimensions = array<i32: 0>} : vector<2x16xi32>
    %13 = tpu.iota {dimensions = array<i32: 1>} : vector<2x16xi32>
    %c8_i32 = arith.constant 8 : i32
    %14 = vector.broadcast %c8_i32 : i32 to vector<2x16xi32>
    %15 = arith.muli %12, %14 : vector<2x16xi32>
    %16 = arith.cmpi sge, %13, %15 : vector<2x16xi32>
    %c1_i32 = arith.constant 1 : i32
    %17 = vector.broadcast %c1_i32 : i32 to vector<2x16xi32>
    %18 = arith.addi %12, %17 : vector<2x16xi32>
    %c8_i32_6 = arith.constant 8 : i32
    %19 = vector.broadcast %c8_i32_6 : i32 to vector<2x16xi32>
    %20 = arith.muli %18, %19 : vector<2x16xi32>
    %21 = arith.cmpi slt, %13, %20 : vector<2x16xi32>
    %22 = arith.andi %16, %21 : vector<2x16xi1>
    %23 = arith.extui %22 : vector<2x16xi1> to vector<2x16xi32>
    %24 = arith.sitofp %23 : vector<2x16xi32> to vector<2x16xf32>
    %25 = tpu.iota {dimensions = array<i32: 0>} : vector<2x2xi32>
    %26 = tpu.iota {dimensions = array<i32: 1>} : vector<2x2xi32>
    %c1_i32_7 = arith.constant 1 : i32
    %27 = vector.broadcast %c1_i32_7 : i32 to vector<2x2xi32>
    %28 = arith.muli %25, %27 : vector<2x2xi32>
    %29 = arith.cmpi sge, %26, %28 : vector<2x2xi32>
    %c1_i32_8 = arith.constant 1 : i32
    %30 = vector.broadcast %c1_i32_8 : i32 to vector<2x2xi32>
    %31 = arith.addi %25, %30 : vector<2x2xi32>
    %c1_i32_9 = arith.constant 1 : i32
    %32 = vector.broadcast %c1_i32_9 : i32 to vector<2x2xi32>
    %33 = arith.muli %31, %32 : vector<2x2xi32>
    %34 = arith.cmpi slt, %26, %33 : vector<2x2xi32>
    %35 = arith.andi %29, %34 : vector<2x2xi1>
    %36 = arith.extui %35 : vector<2x2xi1> to vector<2x2xi32>
    %37 = arith.sitofp %36 : vector<2x2xi32> to vector<2x2xf32>
    %cst_10 = arith.constant dense<0.000000e+00> : vector<16x16xf32>
    %38 = tpu.matmul %24, %24, %cst_10 {dimension_numbers = #tpu.dot_dimension_numbers<[0], [0], [1], [1], [0, 1, 1, 1], [], []>} : vector<2x16xf32>, vector<2x16xf32>, vector<16x16xf32> -> vector<16x16xf32>
    %cst_11 = arith.constant 1.000000e+00 : f32
    %39 = vector.broadcast %cst_11 : f32 to vector<16x16xf32>
    %40 = arith.subf %38, %39 : vector<16x16xf32>
    %cst_12 = arith.constant 1.000000e+30 : f32
    %41 = vector.broadcast %cst_12 : f32 to vector<16x16xf32>
    %42 = arith.mulf %40, %41 : vector<16x16xf32>
    %c0_13 = arith.constant 0 : index
    %c0_14 = arith.constant 0 : index
    %c0_15 = arith.constant 0 : index
    %43 = vector.load %arg8[%c0_13, %c0_14, %c0_15] : memref<2x8x96xf32, #tpu.memory_space<vmem>>, vector<1x8x96xf32>
    %44 = vector.shape_cast %43 : vector<1x8x96xf32> to vector<8x96xf32>
    %45 = vector.extract_strided_slice %44 {offsets = [0, 0], sizes = [1, 96], strides = [1, 1]} : vector<8x96xf32> to vector<1x96xf32>
    %46 = vector.extract_strided_slice %44 {offsets = [1, 0], sizes = [1, 32], strides = [1, 1]} : vector<8x96xf32> to vector<1x32xf32>
    %47 = vector.extract_strided_slice %44 {offsets = [2, 0], sizes = [1, 32], strides = [1, 1]} : vector<8x96xf32> to vector<1x32xf32>
    %48 = vector.extract_strided_slice %44 {offsets = [3, 0], sizes = [1, 32], strides = [1, 1]} : vector<8x96xf32> to vector<1x32xf32>
    %49 = vector.extract_strided_slice %44 {offsets = [4, 0], sizes = [1, 64], strides = [1, 1]} : vector<8x96xf32> to vector<1x64xf32>
    %50 = vector.extract_strided_slice %44 {offsets = [5, 0], sizes = [1, 32], strides = [1, 1]} : vector<8x96xf32> to vector<1x32xf32>
    %51 = vector.extract_strided_slice %44 {offsets = [6, 0], sizes = [1, 32], strides = [1, 1]} : vector<8x96xf32> to vector<1x32xf32>
    %52 = vector.extract_strided_slice %44 {offsets = [7, 0], sizes = [1, 32], strides = [1, 1]} : vector<8x96xf32> to vector<1x32xf32>
    %c0_16 = arith.constant 0 : index
    %c0_17 = arith.constant 0 : index
    %c0_18 = arith.constant 0 : index
    %53 = vector.load %arg5[%c0_16, %c0_17, %c0_18] : memref<2x32x32xf32, #tpu.memory_space<vmem>>, vector<1x32x32xf32>
    %54 = vector.shape_cast %53 : vector<1x32x32xf32> to vector<32x32xf32>
    %c0_19 = arith.constant 0 : index
    %c0_20 = arith.constant 0 : index
    %c0_21 = arith.constant 0 : index
    %55 = vector.load %arg4[%c0_19, %c0_20, %c0_21] : memref<2x32x96xf32, #tpu.memory_space<vmem>>, vector<1x32x96xf32>
    %56 = vector.shape_cast %55 : vector<1x32x96xf32> to vector<32x96xf32>
    %cst_22 = arith.constant dense<0.000000e+00> : vector<16x96xf32>
    %57 = tpu.matmul %11, %56, %cst_22 {dimension_numbers = #tpu.dot_dimension_numbers<[1], [0], [0], [1], [0, 0, 1, 1], [], []>} : vector<16x32xf32>, vector<32x96xf32>, vector<16x96xf32> -> vector<16x96xf32>
    %58 = vector.broadcast %45 : vector<1x96xf32> to vector<16x96xf32>
    %59 = arith.addf %57, %58 : vector<16x96xf32>
    %60 = vector.extract_strided_slice %59 {offsets = [0, 0], sizes = [16, 8], strides = [1, 1]} : vector<16x96xf32> to vector<16x8xf32>
    %61 = vector.extract_strided_slice %59 {offsets = [0, 32], sizes = [16, 8], strides = [1, 1]} : vector<16x96xf32> to vector<16x8xf32>
    %62 = vector.extract_strided_slice %59 {offsets = [0, 64], sizes = [16, 8], strides = [1, 1]} : vector<16x96xf32> to vector<16x8xf32>
    %cst_23 = arith.constant dense<0.000000e+00> : vector<16x16xf32>
    %63 = tpu.matmul %60, %61, %cst_23 {dimension_numbers = #tpu.dot_dimension_numbers<[1], [1], [0], [0], [0, 0, 1, 0], [], []>} : vector<16x8xf32>, vector<16x8xf32>, vector<16x16xf32> -> vector<16x16xf32>
    %cst_24 = arith.constant 0.353553385 : f32
    %64 = vector.broadcast %cst_24 : f32 to vector<16x16xf32>
    %65 = arith.mulf %63, %64 : vector<16x16xf32>
    %66 = arith.addf %65, %42 : vector<16x16xf32>
    %cst_25 = arith.constant dense<0xFF800000> : vector<16xf32>
    %67 = vector.multi_reduction <maximumf>, %66, %cst_25 [1] : vector<16x16xf32> to vector<16xf32>
    %68 = vector.shape_cast %67 : vector<16xf32> to vector<16x1xf32>
    %69 = vector.broadcast %68 : vector<16x1xf32> to vector<16x16xf32>
    %70 = arith.subf %66, %69 : vector<16x16xf32>
    %71 = math.exp %70 : vector<16x16xf32>
    %cst_26 = arith.constant dense<0.000000e+00> : vector<16xf32>
    %72 = vector.multi_reduction <add>, %71, %cst_26 [1] : vector<16x16xf32> to vector<16xf32>
    %73 = vector.shape_cast %72 : vector<16xf32> to vector<16x1xf32>
    %74 = tpu.reciprocal %73 {approx = true} : vector<16x1xf32> -> vector<16x1xf32>
    %75 = vector.broadcast %74 : vector<16x1xf32> to vector<16x16xf32>
    %76 = arith.mulf %71, %75 : vector<16x16xf32>
    %cst_27 = arith.constant dense<0.000000e+00> : vector<16x8xf32>
    %77 = tpu.matmul %76, %62, %cst_27 {dimension_numbers = #tpu.dot_dimension_numbers<[1], [0], [0], [1], [0, 0, 1, 1], [], []>} : vector<16x16xf32>, vector<16x8xf32>, vector<16x8xf32> -> vector<16x8xf32>
    %78 = vector.extract_strided_slice %54 {offsets = [0, 0], sizes = [8, 32], strides = [1, 1]} : vector<32x32xf32> to vector<8x32xf32>
    %cst_28 = arith.constant dense<0.000000e+00> : vector<16x32xf32>
    %79 = tpu.matmul %77, %78, %cst_28 {dimension_numbers = #tpu.dot_dimension_numbers<[1], [0], [0], [1], [0, 0, 1, 1], [], []>} : vector<16x8xf32>, vector<8x32xf32>, vector<16x32xf32> -> vector<16x32xf32>
    %80 = vector.extract_strided_slice %59 {offsets = [0, 8], sizes = [16, 8], strides = [1, 1]} : vector<16x96xf32> to vector<16x8xf32>
    %81 = vector.extract_strided_slice %59 {offsets = [0, 40], sizes = [16, 8], strides = [1, 1]} : vector<16x96xf32> to vector<16x8xf32>
    %82 = vector.extract_strided_slice %59 {offsets = [0, 72], sizes = [16, 8], strides = [1, 1]} : vector<16x96xf32> to vector<16x8xf32>
    %cst_29 = arith.constant dense<0.000000e+00> : vector<16x16xf32>
    %83 = tpu.matmul %80, %81, %cst_29 {dimension_numbers = #tpu.dot_dimension_numbers<[1], [1], [0], [0], [0, 0, 1, 0], [], []>} : vector<16x8xf32>, vector<16x8xf32>, vector<16x16xf32> -> vector<16x16xf32>
    %cst_30 = arith.constant 0.353553385 : f32
    %84 = vector.broadcast %cst_30 : f32 to vector<16x16xf32>
    %85 = arith.mulf %83, %84 : vector<16x16xf32>
    %86 = arith.addf %85, %42 : vector<16x16xf32>
    %cst_31 = arith.constant dense<0xFF800000> : vector<16xf32>
    %87 = vector.multi_reduction <maximumf>, %86, %cst_31 [1] : vector<16x16xf32> to vector<16xf32>
    %88 = vector.shape_cast %87 : vector<16xf32> to vector<16x1xf32>
    %89 = vector.broadcast %88 : vector<16x1xf32> to vector<16x16xf32>
    %90 = arith.subf %86, %89 : vector<16x16xf32>
    %91 = math.exp %90 : vector<16x16xf32>
    %cst_32 = arith.constant dense<0.000000e+00> : vector<16xf32>
    %92 = vector.multi_reduction <add>, %91, %cst_32 [1] : vector<16x16xf32> to vector<16xf32>
    %93 = vector.shape_cast %92 : vector<16xf32> to vector<16x1xf32>
    %94 = tpu.reciprocal %93 {approx = true} : vector<16x1xf32> -> vector<16x1xf32>
    %95 = vector.broadcast %94 : vector<16x1xf32> to vector<16x16xf32>
    %96 = arith.mulf %91, %95 : vector<16x16xf32>
    %cst_33 = arith.constant dense<0.000000e+00> : vector<16x8xf32>
    %97 = tpu.matmul %96, %82, %cst_33 {dimension_numbers = #tpu.dot_dimension_numbers<[1], [0], [0], [1], [0, 0, 1, 1], [], []>} : vector<16x16xf32>, vector<16x8xf32>, vector<16x8xf32> -> vector<16x8xf32>
    %98 = vector.extract_strided_slice %54 {offsets = [8, 0], sizes = [8, 32], strides = [1, 1]} : vector<32x32xf32> to vector<8x32xf32>
    %cst_34 = arith.constant dense<0.000000e+00> : vector<16x32xf32>
    %99 = tpu.matmul %97, %98, %cst_34 {dimension_numbers = #tpu.dot_dimension_numbers<[1], [0], [0], [1], [0, 0, 1, 1], [], []>} : vector<16x8xf32>, vector<8x32xf32>, vector<16x32xf32> -> vector<16x32xf32>
    %100 = arith.addf %79, %99 : vector<16x32xf32>
    %101 = vector.extract_strided_slice %59 {offsets = [0, 16], sizes = [16, 8], strides = [1, 1]} : vector<16x96xf32> to vector<16x8xf32>
    %102 = vector.extract_strided_slice %59 {offsets = [0, 48], sizes = [16, 8], strides = [1, 1]} : vector<16x96xf32> to vector<16x8xf32>
    %103 = vector.extract_strided_slice %59 {offsets = [0, 80], sizes = [16, 8], strides = [1, 1]} : vector<16x96xf32> to vector<16x8xf32>
    %cst_35 = arith.constant dense<0.000000e+00> : vector<16x16xf32>
    %104 = tpu.matmul %101, %102, %cst_35 {dimension_numbers = #tpu.dot_dimension_numbers<[1], [1], [0], [0], [0, 0, 1, 0], [], []>} : vector<16x8xf32>, vector<16x8xf32>, vector<16x16xf32> -> vector<16x16xf32>
    %cst_36 = arith.constant 0.353553385 : f32
    %105 = vector.broadcast %cst_36 : f32 to vector<16x16xf32>
    %106 = arith.mulf %104, %105 : vector<16x16xf32>
    %107 = arith.addf %106, %42 : vector<16x16xf32>
    %cst_37 = arith.constant dense<0xFF800000> : vector<16xf32>
    %108 = vector.multi_reduction <maximumf>, %107, %cst_37 [1] : vector<16x16xf32> to vector<16xf32>
    %109 = vector.shape_cast %108 : vector<16xf32> to vector<16x1xf32>
    %110 = vector.broadcast %109 : vector<16x1xf32> to vector<16x16xf32>
    %111 = arith.subf %107, %110 : vector<16x16xf32>
    %112 = math.exp %111 : vector<16x16xf32>
    %cst_38 = arith.constant dense<0.000000e+00> : vector<16xf32>
    %113 = vector.multi_reduction <add>, %112, %cst_38 [1] : vector<16x16xf32> to vector<16xf32>
    %114 = vector.shape_cast %113 : vector<16xf32> to vector<16x1xf32>
    %115 = tpu.reciprocal %114 {approx = true} : vector<16x1xf32> -> vector<16x1xf32>
    %116 = vector.broadcast %115 : vector<16x1xf32> to vector<16x16xf32>
    %117 = arith.mulf %112, %116 : vector<16x16xf32>
    %cst_39 = arith.constant dense<0.000000e+00> : vector<16x8xf32>
    %118 = tpu.matmul %117, %103, %cst_39 {dimension_numbers = #tpu.dot_dimension_numbers<[1], [0], [0], [1], [0, 0, 1, 1], [], []>} : vector<16x16xf32>, vector<16x8xf32>, vector<16x8xf32> -> vector<16x8xf32>
    %119 = vector.extract_strided_slice %54 {offsets = [16, 0], sizes = [8, 32], strides = [1, 1]} : vector<32x32xf32> to vector<8x32xf32>
    %cst_40 = arith.constant dense<0.000000e+00> : vector<16x32xf32>
    %120 = tpu.matmul %118, %119, %cst_40 {dimension_numbers = #tpu.dot_dimension_numbers<[1], [0], [0], [1], [0, 0, 1, 1], [], []>} : vector<16x8xf32>, vector<8x32xf32>, vector<16x32xf32> -> vector<16x32xf32>
    %121 = arith.addf %100, %120 : vector<16x32xf32>
    %122 = vector.extract_strided_slice %59 {offsets = [0, 24], sizes = [16, 8], strides = [1, 1]} : vector<16x96xf32> to vector<16x8xf32>
    %123 = vector.extract_strided_slice %59 {offsets = [0, 56], sizes = [16, 8], strides = [1, 1]} : vector<16x96xf32> to vector<16x8xf32>
    %124 = vector.extract_strided_slice %59 {offsets = [0, 88], sizes = [16, 8], strides = [1, 1]} : vector<16x96xf32> to vector<16x8xf32>
    %cst_41 = arith.constant dense<0.000000e+00> : vector<16x16xf32>
    %125 = tpu.matmul %122, %123, %cst_41 {dimension_numbers = #tpu.dot_dimension_numbers<[1], [1], [0], [0], [0, 0, 1, 0], [], []>} : vector<16x8xf32>, vector<16x8xf32>, vector<16x16xf32> -> vector<16x16xf32>
    %cst_42 = arith.constant 0.353553385 : f32
    %126 = vector.broadcast %cst_42 : f32 to vector<16x16xf32>
    %127 = arith.mulf %125, %126 : vector<16x16xf32>
    %128 = arith.addf %127, %42 : vector<16x16xf32>
    %cst_43 = arith.constant dense<0xFF800000> : vector<16xf32>
    %129 = vector.multi_reduction <maximumf>, %128, %cst_43 [1] : vector<16x16xf32> to vector<16xf32>
    %130 = vector.shape_cast %129 : vector<16xf32> to vector<16x1xf32>
    %131 = vector.broadcast %130 : vector<16x1xf32> to vector<16x16xf32>
    %132 = arith.subf %128, %131 : vector<16x16xf32>
    %133 = math.exp %132 : vector<16x16xf32>
    %cst_44 = arith.constant dense<0.000000e+00> : vector<16xf32>
    %134 = vector.multi_reduction <add>, %133, %cst_44 [1] : vector<16x16xf32> to vector<16xf32>
    %135 = vector.shape_cast %134 : vector<16xf32> to vector<16x1xf32>
    %136 = tpu.reciprocal %135 {approx = true} : vector<16x1xf32> -> vector<16x1xf32>
    %137 = vector.broadcast %136 : vector<16x1xf32> to vector<16x16xf32>
    %138 = arith.mulf %133, %137 : vector<16x16xf32>
    %cst_45 = arith.constant dense<0.000000e+00> : vector<16x8xf32>
    %139 = tpu.matmul %138, %124, %cst_45 {dimension_numbers = #tpu.dot_dimension_numbers<[1], [0], [0], [1], [0, 0, 1, 1], [], []>} : vector<16x16xf32>, vector<16x8xf32>, vector<16x8xf32> -> vector<16x8xf32>
    %140 = vector.extract_strided_slice %54 {offsets = [24, 0], sizes = [8, 32], strides = [1, 1]} : vector<32x32xf32> to vector<8x32xf32>
    %cst_46 = arith.constant dense<0.000000e+00> : vector<16x32xf32>
    %141 = tpu.matmul %139, %140, %cst_46 {dimension_numbers = #tpu.dot_dimension_numbers<[1], [0], [0], [1], [0, 0, 1, 1], [], []>} : vector<16x8xf32>, vector<8x32xf32>, vector<16x32xf32> -> vector<16x32xf32>
    %142 = arith.addf %121, %141 : vector<16x32xf32>
    %143 = vector.broadcast %46 : vector<1x32xf32> to vector<16x32xf32>
    %144 = arith.addf %142, %143 : vector<16x32xf32>
    %145 = arith.addf %11, %144 : vector<16x32xf32>
    %cst_47 = arith.constant dense<0.000000e+00> : vector<16xf32>
    %146 = vector.multi_reduction <add>, %145, %cst_47 [1] : vector<16x32xf32> to vector<16xf32>
    %147 = vector.shape_cast %146 : vector<16xf32> to vector<16x1xf32>
    %cst_48 = arith.constant 3.200000e+01 : f32
    %148 = vector.broadcast %cst_48 : f32 to vector<16x1xf32>
    %149 = arith.divf %147, %148 : vector<16x1xf32>
    %150 = vector.broadcast %149 : vector<16x1xf32> to vector<16x32xf32>
    %151 = arith.subf %145, %150 : vector<16x32xf32>
    %152 = arith.mulf %151, %151 : vector<16x32xf32>
    %cst_49 = arith.constant dense<0.000000e+00> : vector<16xf32>
    %153 = vector.multi_reduction <add>, %152, %cst_49 [1] : vector<16x32xf32> to vector<16xf32>
    %154 = vector.shape_cast %153 : vector<16xf32> to vector<16x1xf32>
    %cst_50 = arith.constant 3.200000e+01 : f32
    %155 = vector.broadcast %cst_50 : f32 to vector<16x1xf32>
    %156 = arith.divf %154, %155 : vector<16x1xf32>
    %157 = vector.broadcast %149 : vector<16x1xf32> to vector<16x32xf32>
    %158 = arith.subf %145, %157 : vector<16x32xf32>
    %cst_51 = arith.constant 9.99999974E-6 : f32
    %159 = vector.broadcast %cst_51 : f32 to vector<16x1xf32>
    %160 = arith.addf %156, %159 : vector<16x1xf32>
    %161 = math.rsqrt %160 : vector<16x1xf32>
    %162 = vector.broadcast %161 : vector<16x1xf32> to vector<16x32xf32>
    %163 = arith.mulf %158, %162 : vector<16x32xf32>
    %164 = vector.broadcast %47 : vector<1x32xf32> to vector<16x32xf32>
    %165 = arith.mulf %163, %164 : vector<16x32xf32>
    %166 = vector.broadcast %48 : vector<1x32xf32> to vector<16x32xf32>
    %167 = arith.addf %165, %166 : vector<16x32xf32>
    %c0_52 = arith.constant 0 : index
    %c0_53 = arith.constant 0 : index
    %c0_54 = arith.constant 0 : index
    %168 = vector.load %arg6[%c0_52, %c0_53, %c0_54] : memref<2x32x64xf32, #tpu.memory_space<vmem>>, vector<1x32x64xf32>
    %169 = vector.shape_cast %168 : vector<1x32x64xf32> to vector<32x64xf32>
    %cst_55 = arith.constant dense<0.000000e+00> : vector<16x64xf32>
    %170 = tpu.matmul %167, %169, %cst_55 {dimension_numbers = #tpu.dot_dimension_numbers<[1], [0], [0], [1], [0, 0, 1, 1], [], []>} : vector<16x32xf32>, vector<32x64xf32>, vector<16x64xf32> -> vector<16x64xf32>
    %171 = vector.broadcast %49 : vector<1x64xf32> to vector<16x64xf32>
    %172 = arith.addf %170, %171 : vector<16x64xf32>
    %cst_56 = arith.constant 0.000000e+00 : f32
    %173 = vector.broadcast %cst_56 : f32 to vector<16x64xf32>
    %174 = arith.maximumf %172, %173 : vector<16x64xf32>
    %c0_57 = arith.constant 0 : index
    %c0_58 = arith.constant 0 : index
    %c0_59 = arith.constant 0 : index
    %175 = vector.load %arg7[%c0_57, %c0_58, %c0_59] : memref<2x64x32xf32, #tpu.memory_space<vmem>>, vector<1x64x32xf32>
    %176 = vector.shape_cast %175 : vector<1x64x32xf32> to vector<64x32xf32>
    %cst_60 = arith.constant dense<0.000000e+00> : vector<16x32xf32>
    %177 = tpu.matmul %174, %176, %cst_60 {dimension_numbers = #tpu.dot_dimension_numbers<[1], [0], [0], [1], [0, 0, 1, 1], [], []>} : vector<16x64xf32>, vector<64x32xf32>, vector<16x32xf32> -> vector<16x32xf32>
    %178 = vector.broadcast %50 : vector<1x32xf32> to vector<16x32xf32>
    %179 = arith.addf %177, %178 : vector<16x32xf32>
    %180 = arith.addf %167, %179 : vector<16x32xf32>
    %cst_61 = arith.constant dense<0.000000e+00> : vector<16xf32>
    %181 = vector.multi_reduction <add>, %180, %cst_61 [1] : vector<16x32xf32> to vector<16xf32>
    %182 = vector.shape_cast %181 : vector<16xf32> to vector<16x1xf32>
    %cst_62 = arith.constant 3.200000e+01 : f32
    %183 = vector.broadcast %cst_62 : f32 to vector<16x1xf32>
    %184 = arith.divf %182, %183 : vector<16x1xf32>
    %185 = vector.broadcast %184 : vector<16x1xf32> to vector<16x32xf32>
    %186 = arith.subf %180, %185 : vector<16x32xf32>
    %187 = arith.mulf %186, %186 : vector<16x32xf32>
    %cst_63 = arith.constant dense<0.000000e+00> : vector<16xf32>
    %188 = vector.multi_reduction <add>, %187, %cst_63 [1] : vector<16x32xf32> to vector<16xf32>
    %189 = vector.shape_cast %188 : vector<16xf32> to vector<16x1xf32>
    %cst_64 = arith.constant 3.200000e+01 : f32
    %190 = vector.broadcast %cst_64 : f32 to vector<16x1xf32>
    %191 = arith.divf %189, %190 : vector<16x1xf32>
    %192 = vector.broadcast %184 : vector<16x1xf32> to vector<16x32xf32>
    %193 = arith.subf %180, %192 : vector<16x32xf32>
    %cst_65 = arith.constant 9.99999974E-6 : f32
    %194 = vector.broadcast %cst_65 : f32 to vector<16x1xf32>
    %195 = arith.addf %191, %194 : vector<16x1xf32>
    %196 = math.rsqrt %195 : vector<16x1xf32>
    %197 = vector.broadcast %196 : vector<16x1xf32> to vector<16x32xf32>
    %198 = arith.mulf %193, %197 : vector<16x32xf32>
    %199 = vector.broadcast %51 : vector<1x32xf32> to vector<16x32xf32>
    %200 = arith.mulf %198, %199 : vector<16x32xf32>
    %201 = vector.broadcast %52 : vector<1x32xf32> to vector<16x32xf32>
    %202 = arith.addf %200, %201 : vector<16x32xf32>
    %c1 = arith.constant 1 : index
    %c0_66 = arith.constant 0 : index
    %c0_67 = arith.constant 0 : index
    %203 = vector.load %arg8[%c1, %c0_66, %c0_67] : memref<2x8x96xf32, #tpu.memory_space<vmem>>, vector<1x8x96xf32>
    %204 = vector.shape_cast %203 : vector<1x8x96xf32> to vector<8x96xf32>
    %205 = vector.extract_strided_slice %204 {offsets = [0, 0], sizes = [1, 96], strides = [1, 1]} : vector<8x96xf32> to vector<1x96xf32>
    %206 = vector.extract_strided_slice %204 {offsets = [1, 0], sizes = [1, 32], strides = [1, 1]} : vector<8x96xf32> to vector<1x32xf32>
    %207 = vector.extract_strided_slice %204 {offsets = [2, 0], sizes = [1, 32], strides = [1, 1]} : vector<8x96xf32> to vector<1x32xf32>
    %208 = vector.extract_strided_slice %204 {offsets = [3, 0], sizes = [1, 32], strides = [1, 1]} : vector<8x96xf32> to vector<1x32xf32>
    %209 = vector.extract_strided_slice %204 {offsets = [4, 0], sizes = [1, 64], strides = [1, 1]} : vector<8x96xf32> to vector<1x64xf32>
    %210 = vector.extract_strided_slice %204 {offsets = [5, 0], sizes = [1, 32], strides = [1, 1]} : vector<8x96xf32> to vector<1x32xf32>
    %211 = vector.extract_strided_slice %204 {offsets = [6, 0], sizes = [1, 32], strides = [1, 1]} : vector<8x96xf32> to vector<1x32xf32>
    %212 = vector.extract_strided_slice %204 {offsets = [7, 0], sizes = [1, 32], strides = [1, 1]} : vector<8x96xf32> to vector<1x32xf32>
    %c1_68 = arith.constant 1 : index
    %c0_69 = arith.constant 0 : index
    %c0_70 = arith.constant 0 : index
    %213 = vector.load %arg5[%c1_68, %c0_69, %c0_70] : memref<2x32x32xf32, #tpu.memory_space<vmem>>, vector<1x32x32xf32>
    %214 = vector.shape_cast %213 : vector<1x32x32xf32> to vector<32x32xf32>
    %c1_71 = arith.constant 1 : index
    %c0_72 = arith.constant 0 : index
    %c0_73 = arith.constant 0 : index
    %215 = vector.load %arg4[%c1_71, %c0_72, %c0_73] : memref<2x32x96xf32, #tpu.memory_space<vmem>>, vector<1x32x96xf32>
    %216 = vector.shape_cast %215 : vector<1x32x96xf32> to vector<32x96xf32>
    %cst_74 = arith.constant dense<0.000000e+00> : vector<16x96xf32>
    %217 = tpu.matmul %202, %216, %cst_74 {dimension_numbers = #tpu.dot_dimension_numbers<[1], [0], [0], [1], [0, 0, 1, 1], [], []>} : vector<16x32xf32>, vector<32x96xf32>, vector<16x96xf32> -> vector<16x96xf32>
    %218 = vector.broadcast %205 : vector<1x96xf32> to vector<16x96xf32>
    %219 = arith.addf %217, %218 : vector<16x96xf32>
    %220 = vector.extract_strided_slice %219 {offsets = [0, 0], sizes = [16, 8], strides = [1, 1]} : vector<16x96xf32> to vector<16x8xf32>
    %221 = vector.extract_strided_slice %219 {offsets = [0, 32], sizes = [16, 8], strides = [1, 1]} : vector<16x96xf32> to vector<16x8xf32>
    %222 = vector.extract_strided_slice %219 {offsets = [0, 64], sizes = [16, 8], strides = [1, 1]} : vector<16x96xf32> to vector<16x8xf32>
    %cst_75 = arith.constant dense<0.000000e+00> : vector<16x16xf32>
    %223 = tpu.matmul %220, %221, %cst_75 {dimension_numbers = #tpu.dot_dimension_numbers<[1], [1], [0], [0], [0, 0, 1, 0], [], []>} : vector<16x8xf32>, vector<16x8xf32>, vector<16x16xf32> -> vector<16x16xf32>
    %cst_76 = arith.constant 0.353553385 : f32
    %224 = vector.broadcast %cst_76 : f32 to vector<16x16xf32>
    %225 = arith.mulf %223, %224 : vector<16x16xf32>
    %226 = arith.addf %225, %42 : vector<16x16xf32>
    %cst_77 = arith.constant dense<0xFF800000> : vector<16xf32>
    %227 = vector.multi_reduction <maximumf>, %226, %cst_77 [1] : vector<16x16xf32> to vector<16xf32>
    %228 = vector.shape_cast %227 : vector<16xf32> to vector<16x1xf32>
    %229 = vector.broadcast %228 : vector<16x1xf32> to vector<16x16xf32>
    %230 = arith.subf %226, %229 : vector<16x16xf32>
    %231 = math.exp %230 : vector<16x16xf32>
    %cst_78 = arith.constant dense<0.000000e+00> : vector<16xf32>
    %232 = vector.multi_reduction <add>, %231, %cst_78 [1] : vector<16x16xf32> to vector<16xf32>
    %233 = vector.shape_cast %232 : vector<16xf32> to vector<16x1xf32>
    %234 = tpu.reciprocal %233 {approx = true} : vector<16x1xf32> -> vector<16x1xf32>
    %235 = vector.broadcast %234 : vector<16x1xf32> to vector<16x16xf32>
    %236 = arith.mulf %231, %235 : vector<16x16xf32>
    %cst_79 = arith.constant dense<0.000000e+00> : vector<16x8xf32>
    %237 = tpu.matmul %236, %222, %cst_79 {dimension_numbers = #tpu.dot_dimension_numbers<[1], [0], [0], [1], [0, 0, 1, 1], [], []>} : vector<16x16xf32>, vector<16x8xf32>, vector<16x8xf32> -> vector<16x8xf32>
    %238 = vector.extract_strided_slice %214 {offsets = [0, 0], sizes = [8, 32], strides = [1, 1]} : vector<32x32xf32> to vector<8x32xf32>
    %cst_80 = arith.constant dense<0.000000e+00> : vector<16x32xf32>
    %239 = tpu.matmul %237, %238, %cst_80 {dimension_numbers = #tpu.dot_dimension_numbers<[1], [0], [0], [1], [0, 0, 1, 1], [], []>} : vector<16x8xf32>, vector<8x32xf32>, vector<16x32xf32> -> vector<16x32xf32>
    %240 = vector.extract_strided_slice %219 {offsets = [0, 8], sizes = [16, 8], strides = [1, 1]} : vector<16x96xf32> to vector<16x8xf32>
    %241 = vector.extract_strided_slice %219 {offsets = [0, 40], sizes = [16, 8], strides = [1, 1]} : vector<16x96xf32> to vector<16x8xf32>
    %242 = vector.extract_strided_slice %219 {offsets = [0, 72], sizes = [16, 8], strides = [1, 1]} : vector<16x96xf32> to vector<16x8xf32>
    %cst_81 = arith.constant dense<0.000000e+00> : vector<16x16xf32>
    %243 = tpu.matmul %240, %241, %cst_81 {dimension_numbers = #tpu.dot_dimension_numbers<[1], [1], [0], [0], [0, 0, 1, 0], [], []>} : vector<16x8xf32>, vector<16x8xf32>, vector<16x16xf32> -> vector<16x16xf32>
    %cst_82 = arith.constant 0.353553385 : f32
    %244 = vector.broadcast %cst_82 : f32 to vector<16x16xf32>
    %245 = arith.mulf %243, %244 : vector<16x16xf32>
    %246 = arith.addf %245, %42 : vector<16x16xf32>
    %cst_83 = arith.constant dense<0xFF800000> : vector<16xf32>
    %247 = vector.multi_reduction <maximumf>, %246, %cst_83 [1] : vector<16x16xf32> to vector<16xf32>
    %248 = vector.shape_cast %247 : vector<16xf32> to vector<16x1xf32>
    %249 = vector.broadcast %248 : vector<16x1xf32> to vector<16x16xf32>
    %250 = arith.subf %246, %249 : vector<16x16xf32>
    %251 = math.exp %250 : vector<16x16xf32>
    %cst_84 = arith.constant dense<0.000000e+00> : vector<16xf32>
    %252 = vector.multi_reduction <add>, %251, %cst_84 [1] : vector<16x16xf32> to vector<16xf32>
    %253 = vector.shape_cast %252 : vector<16xf32> to vector<16x1xf32>
    %254 = tpu.reciprocal %253 {approx = true} : vector<16x1xf32> -> vector<16x1xf32>
    %255 = vector.broadcast %254 : vector<16x1xf32> to vector<16x16xf32>
    %256 = arith.mulf %251, %255 : vector<16x16xf32>
    %cst_85 = arith.constant dense<0.000000e+00> : vector<16x8xf32>
    %257 = tpu.matmul %256, %242, %cst_85 {dimension_numbers = #tpu.dot_dimension_numbers<[1], [0], [0], [1], [0, 0, 1, 1], [], []>} : vector<16x16xf32>, vector<16x8xf32>, vector<16x8xf32> -> vector<16x8xf32>
    %258 = vector.extract_strided_slice %214 {offsets = [8, 0], sizes = [8, 32], strides = [1, 1]} : vector<32x32xf32> to vector<8x32xf32>
    %cst_86 = arith.constant dense<0.000000e+00> : vector<16x32xf32>
    %259 = tpu.matmul %257, %258, %cst_86 {dimension_numbers = #tpu.dot_dimension_numbers<[1], [0], [0], [1], [0, 0, 1, 1], [], []>} : vector<16x8xf32>, vector<8x32xf32>, vector<16x32xf32> -> vector<16x32xf32>
    %260 = arith.addf %239, %259 : vector<16x32xf32>
    %261 = vector.extract_strided_slice %219 {offsets = [0, 16], sizes = [16, 8], strides = [1, 1]} : vector<16x96xf32> to vector<16x8xf32>
    %262 = vector.extract_strided_slice %219 {offsets = [0, 48], sizes = [16, 8], strides = [1, 1]} : vector<16x96xf32> to vector<16x8xf32>
    %263 = vector.extract_strided_slice %219 {offsets = [0, 80], sizes = [16, 8], strides = [1, 1]} : vector<16x96xf32> to vector<16x8xf32>
    %cst_87 = arith.constant dense<0.000000e+00> : vector<16x16xf32>
    %264 = tpu.matmul %261, %262, %cst_87 {dimension_numbers = #tpu.dot_dimension_numbers<[1], [1], [0], [0], [0, 0, 1, 0], [], []>} : vector<16x8xf32>, vector<16x8xf32>, vector<16x16xf32> -> vector<16x16xf32>
    %cst_88 = arith.constant 0.353553385 : f32
    %265 = vector.broadcast %cst_88 : f32 to vector<16x16xf32>
    %266 = arith.mulf %264, %265 : vector<16x16xf32>
    %267 = arith.addf %266, %42 : vector<16x16xf32>
    %cst_89 = arith.constant dense<0xFF800000> : vector<16xf32>
    %268 = vector.multi_reduction <maximumf>, %267, %cst_89 [1] : vector<16x16xf32> to vector<16xf32>
    %269 = vector.shape_cast %268 : vector<16xf32> to vector<16x1xf32>
    %270 = vector.broadcast %269 : vector<16x1xf32> to vector<16x16xf32>
    %271 = arith.subf %267, %270 : vector<16x16xf32>
    %272 = math.exp %271 : vector<16x16xf32>
    %cst_90 = arith.constant dense<0.000000e+00> : vector<16xf32>
    %273 = vector.multi_reduction <add>, %272, %cst_90 [1] : vector<16x16xf32> to vector<16xf32>
    %274 = vector.shape_cast %273 : vector<16xf32> to vector<16x1xf32>
    %275 = tpu.reciprocal %274 {approx = true} : vector<16x1xf32> -> vector<16x1xf32>
    %276 = vector.broadcast %275 : vector<16x1xf32> to vector<16x16xf32>
    %277 = arith.mulf %272, %276 : vector<16x16xf32>
    %cst_91 = arith.constant dense<0.000000e+00> : vector<16x8xf32>
    %278 = tpu.matmul %277, %263, %cst_91 {dimension_numbers = #tpu.dot_dimension_numbers<[1], [0], [0], [1], [0, 0, 1, 1], [], []>} : vector<16x16xf32>, vector<16x8xf32>, vector<16x8xf32> -> vector<16x8xf32>
    %279 = vector.extract_strided_slice %214 {offsets = [16, 0], sizes = [8, 32], strides = [1, 1]} : vector<32x32xf32> to vector<8x32xf32>
    %cst_92 = arith.constant dense<0.000000e+00> : vector<16x32xf32>
    %280 = tpu.matmul %278, %279, %cst_92 {dimension_numbers = #tpu.dot_dimension_numbers<[1], [0], [0], [1], [0, 0, 1, 1], [], []>} : vector<16x8xf32>, vector<8x32xf32>, vector<16x32xf32> -> vector<16x32xf32>
    %281 = arith.addf %260, %280 : vector<16x32xf32>
    %282 = vector.extract_strided_slice %219 {offsets = [0, 24], sizes = [16, 8], strides = [1, 1]} : vector<16x96xf32> to vector<16x8xf32>
    %283 = vector.extract_strided_slice %219 {offsets = [0, 56], sizes = [16, 8], strides = [1, 1]} : vector<16x96xf32> to vector<16x8xf32>
    %284 = vector.extract_strided_slice %219 {offsets = [0, 88], sizes = [16, 8], strides = [1, 1]} : vector<16x96xf32> to vector<16x8xf32>
    %cst_93 = arith.constant dense<0.000000e+00> : vector<16x16xf32>
    %285 = tpu.matmul %282, %283, %cst_93 {dimension_numbers = #tpu.dot_dimension_numbers<[1], [1], [0], [0], [0, 0, 1, 0], [], []>} : vector<16x8xf32>, vector<16x8xf32>, vector<16x16xf32> -> vector<16x16xf32>
    %cst_94 = arith.constant 0.353553385 : f32
    %286 = vector.broadcast %cst_94 : f32 to vector<16x16xf32>
    %287 = arith.mulf %285, %286 : vector<16x16xf32>
    %288 = arith.addf %287, %42 : vector<16x16xf32>
    %cst_95 = arith.constant dense<0xFF800000> : vector<16xf32>
    %289 = vector.multi_reduction <maximumf>, %288, %cst_95 [1] : vector<16x16xf32> to vector<16xf32>
    %290 = vector.shape_cast %289 : vector<16xf32> to vector<16x1xf32>
    %291 = vector.broadcast %290 : vector<16x1xf32> to vector<16x16xf32>
    %292 = arith.subf %288, %291 : vector<16x16xf32>
    %293 = math.exp %292 : vector<16x16xf32>
    %cst_96 = arith.constant dense<0.000000e+00> : vector<16xf32>
    %294 = vector.multi_reduction <add>, %293, %cst_96 [1] : vector<16x16xf32> to vector<16xf32>
    %295 = vector.shape_cast %294 : vector<16xf32> to vector<16x1xf32>
    %296 = tpu.reciprocal %295 {approx = true} : vector<16x1xf32> -> vector<16x1xf32>
    %297 = vector.broadcast %296 : vector<16x1xf32> to vector<16x16xf32>
    %298 = arith.mulf %293, %297 : vector<16x16xf32>
    %cst_97 = arith.constant dense<0.000000e+00> : vector<16x8xf32>
    %299 = tpu.matmul %298, %284, %cst_97 {dimension_numbers = #tpu.dot_dimension_numbers<[1], [0], [0], [1], [0, 0, 1, 1], [], []>} : vector<16x16xf32>, vector<16x8xf32>, vector<16x8xf32> -> vector<16x8xf32>
    %300 = vector.extract_strided_slice %214 {offsets = [24, 0], sizes = [8, 32], strides = [1, 1]} : vector<32x32xf32> to vector<8x32xf32>
    %cst_98 = arith.constant dense<0.000000e+00> : vector<16x32xf32>
    %301 = tpu.matmul %299, %300, %cst_98 {dimension_numbers = #tpu.dot_dimension_numbers<[1], [0], [0], [1], [0, 0, 1, 1], [], []>} : vector<16x8xf32>, vector<8x32xf32>, vector<16x32xf32> -> vector<16x32xf32>
    %302 = arith.addf %281, %301 : vector<16x32xf32>
    %303 = vector.broadcast %206 : vector<1x32xf32> to vector<16x32xf32>
    %304 = arith.addf %302, %303 : vector<16x32xf32>
    %305 = arith.addf %202, %304 : vector<16x32xf32>
    %cst_99 = arith.constant dense<0.000000e+00> : vector<16xf32>
    %306 = vector.multi_reduction <add>, %305, %cst_99 [1] : vector<16x32xf32> to vector<16xf32>
    %307 = vector.shape_cast %306 : vector<16xf32> to vector<16x1xf32>
    %cst_100 = arith.constant 3.200000e+01 : f32
    %308 = vector.broadcast %cst_100 : f32 to vector<16x1xf32>
    %309 = arith.divf %307, %308 : vector<16x1xf32>
    %310 = vector.broadcast %309 : vector<16x1xf32> to vector<16x32xf32>
    %311 = arith.subf %305, %310 : vector<16x32xf32>
    %312 = arith.mulf %311, %311 : vector<16x32xf32>
    %cst_101 = arith.constant dense<0.000000e+00> : vector<16xf32>
    %313 = vector.multi_reduction <add>, %312, %cst_101 [1] : vector<16x32xf32> to vector<16xf32>
    %314 = vector.shape_cast %313 : vector<16xf32> to vector<16x1xf32>
    %cst_102 = arith.constant 3.200000e+01 : f32
    %315 = vector.broadcast %cst_102 : f32 to vector<16x1xf32>
    %316 = arith.divf %314, %315 : vector<16x1xf32>
    %317 = vector.broadcast %309 : vector<16x1xf32> to vector<16x32xf32>
    %318 = arith.subf %305, %317 : vector<16x32xf32>
    %cst_103 = arith.constant 9.99999974E-6 : f32
    %319 = vector.broadcast %cst_103 : f32 to vector<16x1xf32>
    %320 = arith.addf %316, %319 : vector<16x1xf32>
    %321 = math.rsqrt %320 : vector<16x1xf32>
    %322 = vector.broadcast %321 : vector<16x1xf32> to vector<16x32xf32>
    %323 = arith.mulf %318, %322 : vector<16x32xf32>
    %324 = vector.broadcast %207 : vector<1x32xf32> to vector<16x32xf32>
    %325 = arith.mulf %323, %324 : vector<16x32xf32>
    %326 = vector.broadcast %208 : vector<1x32xf32> to vector<16x32xf32>
    %327 = arith.addf %325, %326 : vector<16x32xf32>
    %c1_104 = arith.constant 1 : index
    %c0_105 = arith.constant 0 : index
    %c0_106 = arith.constant 0 : index
    %328 = vector.load %arg6[%c1_104, %c0_105, %c0_106] : memref<2x32x64xf32, #tpu.memory_space<vmem>>, vector<1x32x64xf32>
    %329 = vector.shape_cast %328 : vector<1x32x64xf32> to vector<32x64xf32>
    %cst_107 = arith.constant dense<0.000000e+00> : vector<16x64xf32>
    %330 = tpu.matmul %327, %329, %cst_107 {dimension_numbers = #tpu.dot_dimension_numbers<[1], [0], [0], [1], [0, 0, 1, 1], [], []>} : vector<16x32xf32>, vector<32x64xf32>, vector<16x64xf32> -> vector<16x64xf32>
    %331 = vector.broadcast %209 : vector<1x64xf32> to vector<16x64xf32>
    %332 = arith.addf %330, %331 : vector<16x64xf32>
    %cst_108 = arith.constant 0.000000e+00 : f32
    %333 = vector.broadcast %cst_108 : f32 to vector<16x64xf32>
    %334 = arith.maximumf %332, %333 : vector<16x64xf32>
    %c1_109 = arith.constant 1 : index
    %c0_110 = arith.constant 0 : index
    %c0_111 = arith.constant 0 : index
    %335 = vector.load %arg7[%c1_109, %c0_110, %c0_111] : memref<2x64x32xf32, #tpu.memory_space<vmem>>, vector<1x64x32xf32>
    %336 = vector.shape_cast %335 : vector<1x64x32xf32> to vector<64x32xf32>
    %cst_112 = arith.constant dense<0.000000e+00> : vector<16x32xf32>
    %337 = tpu.matmul %334, %336, %cst_112 {dimension_numbers = #tpu.dot_dimension_numbers<[1], [0], [0], [1], [0, 0, 1, 1], [], []>} : vector<16x64xf32>, vector<64x32xf32>, vector<16x32xf32> -> vector<16x32xf32>
    %338 = vector.broadcast %210 : vector<1x32xf32> to vector<16x32xf32>
    %339 = arith.addf %337, %338 : vector<16x32xf32>
    %340 = arith.addf %327, %339 : vector<16x32xf32>
    %cst_113 = arith.constant dense<0.000000e+00> : vector<16xf32>
    %341 = vector.multi_reduction <add>, %340, %cst_113 [1] : vector<16x32xf32> to vector<16xf32>
    %342 = vector.shape_cast %341 : vector<16xf32> to vector<16x1xf32>
    %cst_114 = arith.constant 3.200000e+01 : f32
    %343 = vector.broadcast %cst_114 : f32 to vector<16x1xf32>
    %344 = arith.divf %342, %343 : vector<16x1xf32>
    %345 = vector.broadcast %344 : vector<16x1xf32> to vector<16x32xf32>
    %346 = arith.subf %340, %345 : vector<16x32xf32>
    %347 = arith.mulf %346, %346 : vector<16x32xf32>
    %cst_115 = arith.constant dense<0.000000e+00> : vector<16xf32>
    %348 = vector.multi_reduction <add>, %347, %cst_115 [1] : vector<16x32xf32> to vector<16xf32>
    %349 = vector.shape_cast %348 : vector<16xf32> to vector<16x1xf32>
    %cst_116 = arith.constant 3.200000e+01 : f32
    %350 = vector.broadcast %cst_116 : f32 to vector<16x1xf32>
    %351 = arith.divf %349, %350 : vector<16x1xf32>
    %352 = vector.broadcast %344 : vector<16x1xf32> to vector<16x32xf32>
    %353 = arith.subf %340, %352 : vector<16x32xf32>
    %cst_117 = arith.constant 9.99999974E-6 : f32
    %354 = vector.broadcast %cst_117 : f32 to vector<16x1xf32>
    %355 = arith.addf %351, %354 : vector<16x1xf32>
    %356 = math.rsqrt %355 : vector<16x1xf32>
    %357 = vector.broadcast %356 : vector<16x1xf32> to vector<16x32xf32>
    %358 = arith.mulf %353, %357 : vector<16x32xf32>
    %359 = vector.broadcast %211 : vector<1x32xf32> to vector<16x32xf32>
    %360 = arith.mulf %358, %359 : vector<16x32xf32>
    %361 = vector.broadcast %212 : vector<1x32xf32> to vector<16x32xf32>
    %362 = arith.addf %360, %361 : vector<16x32xf32>
    %c0_118 = arith.constant 0 : index
    %c0_119 = arith.constant 0 : index
    %c0_120 = arith.constant 0 : index
    %363 = vector.load %arg2[%c0_118, %c0_119, %c0_120] : memref<1x2x32xf32, #tpu.memory_space<vmem>>, vector<1x2x32xf32>
    %364 = vector.shape_cast %363 : vector<1x2x32xf32> to vector<2x32xf32>
    %c0_121 = arith.constant 0 : index
    %c0_122 = arith.constant 0 : index
    %365 = vector.load %arg9[%c0_121, %c0_122] : memref<32x16xf32, #tpu.memory_space<vmem>>, vector<32x16xf32>
    %cst_123 = arith.constant dense<0.000000e+00> : vector<16x16xf32>
    %366 = tpu.matmul %362, %365, %cst_123 {dimension_numbers = #tpu.dot_dimension_numbers<[1], [0], [0], [1], [0, 0, 1, 1], [], []>} : vector<16x32xf32>, vector<32x16xf32>, vector<16x16xf32> -> vector<16x16xf32>
    %367 = vector.broadcast %2 : vector<1x16xf32> to vector<16x16xf32>
    %368 = arith.addf %366, %367 : vector<16x16xf32>
    %cst_124 = arith.constant 0.000000e+00 : f32
    %369 = vector.broadcast %cst_124 : f32 to vector<16x16xf32>
    %370 = arith.maximumf %368, %369 : vector<16x16xf32>
    %c0_125 = arith.constant 0 : index
    %c0_126 = arith.constant 0 : index
    %371 = vector.load %arg9[%c0_125, %c0_126] : memref<32x16xf32, #tpu.memory_space<vmem>>, vector<32x16xf32>
    %cst_127 = arith.constant dense<0.000000e+00> : vector<2x16xf32>
    %372 = tpu.matmul %364, %371, %cst_127 {dimension_numbers = #tpu.dot_dimension_numbers<[1], [0], [0], [1], [0, 0, 1, 1], [], []>} : vector<2x32xf32>, vector<32x16xf32>, vector<2x16xf32> -> vector<2x16xf32>
    %373 = vector.broadcast %2 : vector<1x16xf32> to vector<2x16xf32>
    %374 = arith.addf %372, %373 : vector<2x16xf32>
    %cst_128 = arith.constant 0.000000e+00 : f32
    %375 = vector.broadcast %cst_128 : f32 to vector<2x16xf32>
    %376 = arith.maximumf %374, %375 : vector<2x16xf32>
    %cst_129 = arith.constant dense<0.000000e+00> : vector<2x16xf32>
    %377 = tpu.matmul %24, %370, %cst_129 {dimension_numbers = #tpu.dot_dimension_numbers<[1], [0], [0], [1], [0, 0, 1, 1], [], []>} : vector<2x16xf32>, vector<16x16xf32>, vector<2x16xf32> -> vector<2x16xf32>
    %cst_130 = arith.constant dense<0.000000e+00> : vector<2x16xf32>
    %378 = tpu.matmul %37, %376, %cst_130 {dimension_numbers = #tpu.dot_dimension_numbers<[1], [0], [0], [1], [0, 0, 1, 1], [], []>} : vector<2x2xf32>, vector<2x16xf32>, vector<2x16xf32> -> vector<2x16xf32>
    %379 = arith.addf %377, %378 : vector<2x16xf32>
    %cst_131 = arith.constant 0.111111112 : f32
    %380 = vector.broadcast %cst_131 : f32 to vector<2x16xf32>
    %381 = arith.mulf %379, %380 : vector<2x16xf32>
    %cst_132 = arith.constant dense<0.000000e+00> : vector<2xf32>
    %382 = vector.multi_reduction <add>, %381, %cst_132 [1] : vector<2x16xf32> to vector<2xf32>
    %383 = vector.shape_cast %382 : vector<2xf32> to vector<2x1xf32>
    %cst_133 = arith.constant 1.600000e+01 : f32
    %384 = vector.broadcast %cst_133 : f32 to vector<2x1xf32>
    %385 = arith.divf %383, %384 : vector<2x1xf32>
    %386 = vector.broadcast %385 : vector<2x1xf32> to vector<2x16xf32>
    %387 = arith.subf %381, %386 : vector<2x16xf32>
    %388 = arith.mulf %387, %387 : vector<2x16xf32>
    %cst_134 = arith.constant dense<0.000000e+00> : vector<2xf32>
    %389 = vector.multi_reduction <add>, %388, %cst_134 [1] : vector<2x16xf32> to vector<2xf32>
    %390 = vector.shape_cast %389 : vector<2xf32> to vector<2x1xf32>
    %cst_135 = arith.constant 1.600000e+01 : f32
    %391 = vector.broadcast %cst_135 : f32 to vector<2x1xf32>
    %392 = arith.divf %390, %391 : vector<2x1xf32>
    %393 = vector.broadcast %385 : vector<2x1xf32> to vector<2x16xf32>
    %394 = arith.subf %381, %393 : vector<2x16xf32>
    %cst_136 = arith.constant 9.99999974E-6 : f32
    %395 = vector.broadcast %cst_136 : f32 to vector<2x1xf32>
    %396 = arith.addf %392, %395 : vector<2x1xf32>
    %397 = math.rsqrt %396 : vector<2x1xf32>
    %398 = vector.broadcast %397 : vector<2x1xf32> to vector<2x16xf32>
    %399 = arith.mulf %394, %398 : vector<2x16xf32>
    %400 = vector.broadcast %3 : vector<1x16xf32> to vector<2x16xf32>
    %401 = arith.mulf %399, %400 : vector<2x16xf32>
    %402 = vector.broadcast %4 : vector<1x16xf32> to vector<2x16xf32>
    %403 = arith.addf %401, %402 : vector<2x16xf32>
    %c0_137 = arith.constant 0 : index
    %c0_138 = arith.constant 0 : index
    %404 = vector.load %arg10[%c0_137, %c0_138] : memref<16x4xf32, #tpu.memory_space<vmem>>, vector<16x4xf32>
    %cst_139 = arith.constant dense<0.000000e+00> : vector<2x4xf32>
    %405 = tpu.matmul %403, %404, %cst_139 {dimension_numbers = #tpu.dot_dimension_numbers<[1], [0], [0], [1], [0, 0, 1, 1], [], []>} : vector<2x16xf32>, vector<16x4xf32>, vector<2x4xf32> -> vector<2x4xf32>
    %406 = vector.broadcast %5 : vector<1x4xf32> to vector<2x4xf32>
    %407 = arith.addf %405, %406 : vector<2x4xf32>
    %c0_140 = arith.constant 0 : index
    %c0_141 = arith.constant 0 : index
    %c0_142 = arith.constant 0 : index
    %408 = vector.load %arg12[%c0_140, %c0_141, %c0_142] : memref<1x2x4xf32, #tpu.memory_space<vmem>>, vector<1x2x4xf32>
    %409 = vector.shape_cast %408 : vector<1x2x4xf32> to vector<2x4xf32>
    %410 = vector.shape_cast %407 : vector<2x4xf32> to vector<1x2x4xf32>
    tpu.vector_store %arg12[%c0_140, %c0_141, %c0_142], %410 {strides = array<i32>} : memref<1x2x4xf32, #tpu.memory_space<vmem>>, vector<1x2x4xf32>,
    return
  }
  func.func @transform_0(%arg0: i32) -> (i32, i32, i32) {
    %c0_i32 = arith.constant 0 : i32
    %c0_i32_0 = arith.constant 0 : i32
    %c0_i32_1 = arith.constant 0 : i32
    return %arg0, %c0_i32, %c0_i32_0 : i32, i32, i32
  }
  func.func @transform_1(%arg0: i32) -> (i32, i32, i32) {
    %c0_i32 = arith.constant 0 : i32
    %c0_i32_0 = arith.constant 0 : i32
    %c0_i32_1 = arith.constant 0 : i32
    return %arg0, %c0_i32, %c0_i32_0 : i32, i32, i32
  }
  func.func @transform_2(%arg0: i32) -> (i32, i32) {
    %c0_i32 = arith.constant 0 : i32
    %c0_i32_0 = arith.constant 0 : i32
    %c0_i32_1 = arith.constant 0 : i32
    return %c0_i32, %c0_i32_0 : i32, i32
  }
  func.func @transform_3(%arg0: i32) -> (i32, i32, i32) {
    %c0_i32 = arith.constant 0 : i32
    %c0_i32_0 = arith.constant 0 : i32
    %c0_i32_1 = arith.constant 0 : i32
    %c0_i32_2 = arith.constant 0 : i32
    return %c0_i32, %c0_i32_0, %c0_i32_1 : i32, i32, i32
  }
  func.func @transform_4(%arg0: i32) -> (i32, i32, i32) {
    %c0_i32 = arith.constant 0 : i32
    %c0_i32_0 = arith.constant 0 : i32
    %c0_i32_1 = arith.constant 0 : i32
    %c0_i32_2 = arith.constant 0 : i32
    return %c0_i32, %c0_i32_0, %c0_i32_1 : i32, i32, i32
  }
  func.func @transform_5(%arg0: i32) -> (i32, i32, i32) {
    %c0_i32 = arith.constant 0 : i32
    %c0_i32_0 = arith.constant 0 : i32
    %c0_i32_1 = arith.constant 0 : i32
    %c0_i32_2 = arith.constant 0 : i32
    return %c0_i32, %c0_i32_0, %c0_i32_1 : i32, i32, i32
  }
  func.func @transform_6(%arg0: i32) -> (i32, i32, i32) {
    %c0_i32 = arith.constant 0 : i32
    %c0_i32_0 = arith.constant 0 : i32
    %c0_i32_1 = arith.constant 0 : i32
    %c0_i32_2 = arith.constant 0 : i32
    return %c0_i32, %c0_i32_0, %c0_i32_1 : i32, i32, i32
  }
  func.func @transform_7(%arg0: i32) -> (i32, i32, i32) {
    %c0_i32 = arith.constant 0 : i32
    %c0_i32_0 = arith.constant 0 : i32
    %c0_i32_1 = arith.constant 0 : i32
    %c0_i32_2 = arith.constant 0 : i32
    return %c0_i32, %c0_i32_0, %c0_i32_1 : i32, i32, i32
  }
  func.func @transform_8(%arg0: i32) -> (i32, i32) {
    %c0_i32 = arith.constant 0 : i32
    %c0_i32_0 = arith.constant 0 : i32
    %c0_i32_1 = arith.constant 0 : i32
    return %c0_i32, %c0_i32_0 : i32, i32
  }
  func.func @transform_9(%arg0: i32) -> (i32, i32) {
    %c0_i32 = arith.constant 0 : i32
    %c0_i32_0 = arith.constant 0 : i32
    %c0_i32_1 = arith.constant 0 : i32
    return %c0_i32, %c0_i32_0 : i32, i32
  }
  func.func @transform_10(%arg0: i32) -> (i32, i32) {
    %c0_i32 = arith.constant 0 : i32
    %c0_i32_0 = arith.constant 0 : i32
    %c0_i32_1 = arith.constant 0 : i32
    return %c0_i32, %c0_i32_0 : i32, i32
  }
  func.func @transform_11(%arg0: i32) -> (i32, i32, i32) {
    %c0_i32 = arith.constant 0 : i32
    %c0_i32_0 = arith.constant 0 : i32
    %c0_i32_1 = arith.constant 0 : i32
    return %arg0, %c0_i32, %c0_i32_0 : i32, i32, i32
  }
}

</mosaic_0001>

<llo_original>
// kernel: special_transformer_forward.1
$region0: #{special_transformer_forward.1}
  #allocation0 [shape = 'u32[]', space=smem, size = 0x4, offset = 0x4, fixed_abs, tag = 'smem constant byte address 0x4 - core index']
  #allocation1 [shape = 'u32[144,128]{1,0:T(1,128)}', space=vmem, size = 0x12000, scoped, tag = 'internal scratch']
  %s0 = inlined_call_operand.vmem [shape: f32[1,16,8], index: 0, kind: input, shape index: {}]
  %s1 = inlined_call_operand.vmem [shape: f32[1,2,32], index: 1, kind: input, shape index: {}]
  %s2 = inlined_call_operand.hbm [shape: f32[8,32], index: 2, kind: input, shape index: {}]
  %s3 = inlined_call_operand.vmem [shape: f32[2,32,96], index: 3, kind: input, shape index: {}]
  %s4 = inlined_call_operand.vmem [shape: f32[2,32,32], index: 4, kind: input, shape index: {}]
  %s5 = inlined_call_operand.vmem [shape: f32[2,32,64], index: 5, kind: input, shape index: {}]
  %s6 = inlined_call_operand.vmem [shape: f32[2,64,32], index: 6, kind: input, shape index: {}]
  %s7 = inlined_call_operand.vmem [shape: f32[2,8,96], index: 7, kind: input, shape index: {}]
  %s8 = inlined_call_operand.vmem [shape: f32[32,16], index: 8, kind: input, shape index: {}]
  %s9 = inlined_call_operand.vmem [shape: f32[16,4], index: 9, kind: input, shape index: {}]
  %s10 = inlined_call_operand.hbm [shape: f32[5,32], index: 10, kind: input, shape index: {}]
  %s11 = inlined_call_operand.hbm [shape: f32[1,2,4], index: 11, kind: output, shape index: {}]
  %s12 = sld [smem:[#allocation0]]
  $region62: #{special_transformer_forward.1} parent=0
    _
  %s14 = ssub.s32 1, %s12
  %s15 = scalar_select 0, %s14, %s12
  $region1: #{special_transformer_forward.1} parent=0
    #allocation2 [shape = 'u8[4096]{0}', space=vmem, size = 0x1000, scoped, tag = 'input window, operand 2, single buffered']
    #allocation3 [shape = 's32[1]{0}', space=sflag, size = 0x4, scoped, tag = 'scoped memory for special_transformer_forward.1']
    #allocation4 [shape = 's32[1]{0}', space=sflag, size = 0x4, scoped, tag = 'scoped memory for special_transformer_forward.1']
    #allocation5 [shape = 'u8[4096]{0}', space=vmem, size = 0x1000, scoped, tag = 'input window, operand 10, single buffered']
    #allocation6 [shape = 's32[1]{0}', space=sflag, size = 0x4, scoped, tag = 'scoped memory for special_transformer_forward.1']
    #allocation7 [shape = 'u8[1024]{0}', space=vmem, size = 0x400, scoped, tag = 'output window, operand 0, single buffered']
    %16 = vsyncpa [#allocation3], 0
    %17 = vsyncpa [#allocation6], 0
    %18 = vsyncpa [#allocation4], 0
    // Predicated region
    $region2: #{special_transformer_forward.1} parent=1 // pred_check
      _
    $region3: #{special_transformer_forward.1} parent=1 // pred_check_branch
      %20 = sbr.rel (0) target = $region5
    $region4: #{special_transformer_forward.1} parent=1 // pred_region
      _
    $region5: #{special_transformer_forward.1} parent=1 // pred_fallthru
      _
    // Predicated region
    $region6: #{special_transformer_forward.1} parent=1 // pred_check
      _
    $region7: #{special_transformer_forward.1} parent=1 // pred_check_branch
      %22 = sbr.rel (0) target = $region9
    $region8: #{special_transformer_forward.1} parent=1 // pred_region
      _
    $region9: #{special_transformer_forward.1} parent=1 // pred_fallthru
      _
    // Predicated region
    $region10: #{special_transformer_forward.1} parent=1 // pred_check
      _
    $region11: #{special_transformer_forward.1} parent=1 // pred_check_branch
      %24 = sbr.rel (0) target = $region13
    $region12: #{special_transformer_forward.1} parent=1 // pred_region
      %s26 = ssub.s32 128, 128
      %27 = vsyncadd [#allocation3], %s26
      %s29 = sshll.u32 [#allocation2], 4
      %s30 = int_to_ptr.vmem [resolvable:$true] %s29
      %32 = dma.hbm_to_vmem [thread:$0]  %s2, 128, %s30, [#allocation3]
    $region13: #{special_transformer_forward.1} parent=1 // pred_fallthru
      _
    // Predicated region
    $region14: #{special_transformer_forward.1} parent=1 // pred_check
      _
    $region15: #{special_transformer_forward.1} parent=1 // pred_check_branch
      %34 = sbr.rel (0) target = $region17
    $region16: #{special_transformer_forward.1} parent=1 // pred_region
      _
    $region17: #{special_transformer_forward.1} parent=1 // pred_fallthru
      _
    // Predicated region
    $region18: #{special_transformer_forward.1} parent=1 // pred_check
      _
    $region19: #{special_transformer_forward.1} parent=1 // pred_check_branch
      %36 = sbr.rel (0) target = $region21
    $region20: #{special_transformer_forward.1} parent=1 // pred_region
      _
    $region21: #{special_transformer_forward.1} parent=1 // pred_fallthru
      _
    // Predicated region
    $region22: #{special_transformer_forward.1} parent=1 // pred_check
      _
    $region23: #{special_transformer_forward.1} parent=1 // pred_check_branch
      %38 = sbr.rel (0) target = $region25
    $region24: #{special_transformer_forward.1} parent=1 // pred_region
      _
    $region25: #{special_transformer_forward.1} parent=1 // pred_fallthru
      _
    // Predicated region
    $region26: #{special_transformer_forward.1} parent=1 // pred_check
      _
    $region27: #{special_transformer_forward.1} parent=1 // pred_check_branch
      %40 = sbr.rel (0) target = $region29
    $region28: #{special_transformer_forward.1} parent=1 // pred_region
      _
    $region29: #{special_transformer_forward.1} parent=1 // pred_fallthru
      _
    // Predicated region
    $region30: #{special_transformer_forward.1} parent=1 // pred_check
      _
    $region31: #{special_transformer_forward.1} parent=1 // pred_check_branch
      %42 = sbr.rel (0) target = $region33
    $region32: #{special_transformer_forward.1} parent=1 // pred_region
      _
    $region33: #{special_transformer_forward.1} parent=1 // pred_fallthru
      _
    // Predicated region
    $region34: #{special_transformer_forward.1} parent=1 // pred_check
      _
    $region35: #{special_transformer_forward.1} parent=1 // pred_check_branch
      %44 = sbr.rel (0) target = $region37
    $region36: #{special_transformer_forward.1} parent=1 // pred_region
      _
    $region37: #{special_transformer_forward.1} parent=1 // pred_fallthru
      _
    // Predicated region
    $region38: #{special_transformer_forward.1} parent=1 // pred_check
      _
    $region39: #{special_transformer_forward.1} parent=1 // pred_check_branch
      %46 = sbr.rel (0) target = $region41
    $region40: #{special_transformer_forward.1} parent=1 // pred_region
      _
    $region41: #{special_transformer_forward.1} parent=1 // pred_fallthru
      _
    // Predicated region
    $region42: #{special_transformer_forward.1} parent=1 // pred_check
      _
    $region43: #{special_transformer_forward.1} parent=1 // pred_check_branch
      %48 = sbr.rel (0) target = $region45
    $region44: #{special_transformer_forward.1} parent=1 // pred_region
      %s50 = ssub.s32 128, 128
      %51 = vsyncadd [#allocation6], %s50
      %s53 = sshll.u32 [#allocation5], 4
      %s54 = int_to_ptr.vmem [resolvable:$true] %s53
      %56 = dma.hbm_to_vmem [thread:$0]  %s10, 128, %s54, [#allocation6]
    $region45: #{special_transformer_forward.1} parent=1 // pred_fallthru
      _
    // Predicated region
    $region46: #{special_transformer_forward.1} parent=1 // pred_check
      _
    $region47: #{special_transformer_forward.1} parent=1 // pred_check_branch
      %58 = sbr.rel (0) target = $region49
    $region48: #{special_transformer_forward.1} parent=1 // pred_region
      %59 = dma.done [#allocation3], 128
    $region49: #{special_transformer_forward.1} parent=1 // pred_fallthru
      _
    // Predicated region
    $region50: #{special_transformer_forward.1} parent=1 // pred_check
      _
    $region51: #{special_transformer_forward.1} parent=1 // pred_check_branch
      %61 = sbr.rel (0) target = $region53
    $region52: #{special_transformer_forward.1} parent=1 // pred_region
      %62 = dma.done [#allocation6], 128
    $region53: #{special_transformer_forward.1} parent=1 // pred_fallthru
      _
    %v63 = vld [vmem:[#allocation5] sm:$0x1f]
    %v64 = vld [vmem:[%s0] sm:$0xff]
    %v65 = vld [vmem:[%s0 + $0x8] sm:$0xff]
    %v66 = vld [vmem:[#allocation2] sm:$0xff]
    %v67 = vlaneseq
    %v68 = vshrl.u32 %v67, 7
    %v69 = vsub.s32 0, %v68
    %v70 = vrot.slane %v63, %v69
    %vm71 = vcmask 64512
    %v73 = vsel %vm71, %v64, 0
    %v76 = vsel %vm71, %v65, 0
    %78 = vmatprep.subr.mxu0 0.0
    %79 = vmatpush1.msra.mxu0 %v66
    %80 = vmatprep.subr.mxu0 0.0
    %81 = vmatpush1.msra.mxu0 0.0
    %82 = vmatprep.subr.mxu0 0.0
    %83 = vmatpush1.msra.mxu0 0.0
    %84 = vmatprep.subr.mxu0 0.0
    %85 = vmatpush1.msra.mxu0 0.0
    %86 = vmatprep.subr.mxu0 0.0
    %87 = vmatpush1.msra.mxu0 0.0
    %88 = vmatprep.subr.mxu0 0.0
    %89 = vmatpush1.msra.mxu0 0.0
    %90 = vmatprep.subr.mxu0 0.0
    %91 = vmatpush1.msra.mxu0 0.0
    %92 = vmatprep.subr.mxu0 0.0
    %93 = vmatpush1.msra.mxu0 0.0
    %94 = vmatprep.subr.mxu0 0.0
    %95 = vmatpush1.msra.mxu0 0.0
    %96 = vmatprep.subr.mxu0 0.0
    %97 = vmatpush1.msra.mxu0 0.0
    %98 = vmatprep.subr.mxu0 0.0
    %99 = vmatpush1.msra.mxu0 0.0
    %100 = vmatprep.subr.mxu0 0.0
    %101 = vmatpush1.msra.mxu0 0.0
    %102 = vmatprep.subr.mxu0 0.0
    %103 = vmatpush1.msra.mxu0 0.0
    %104 = vmatprep.subr.mxu0 0.0
    %105 = vmatpush1.msra.mxu0 0.0
    %106 = vmatprep.subr.mxu0 0.0
    %107 = vmatpush1.msra.mxu0 0.0
    %108 = vmatprep.subr.mxu0 0.0
    %109 = vmatpush1.msra.mxu0 0.0
    %110 = vmatprep.subr.mxu0 0.0
    %111 = vmatpush1.msra.mxu0 0.0
    %112 = vmatprep.subr.mxu0 0.0
    %113 = vmatpush1.msra.mxu0 0.0
    %114 = vmatprep.subr.mxu0 0.0
    %115 = vmatpush1.msra.mxu0 0.0
    %116 = vmatprep.subr.mxu0 0.0
    %117 = vmatpush1.msra.mxu0 0.0
    %118 = vmatprep.subr.mxu0 0.0
    %119 = vmatpush1.msra.mxu0 0.0
    %120 = vmatprep.subr.mxu0 0.0
    %121 = vmatpush1.msra.mxu0 0.0
    %122 = vmatprep.subr.mxu0 0.0
    %123 = vmatpush1.msra.mxu0 0.0
    %124 = vmatprep.subr.mxu0 0.0
    %125 = vmatpush1.msra.mxu0 0.0
    %126 = vmatprep.subr.mxu0 0.0
    %127 = vmatpush1.msra.mxu0 0.0
    %128 = vmatprep.subr.mxu0 0.0
    %129 = vmatpush1.msra.mxu0 0.0
    %130 = vmatprep.subr.mxu0 0.0
    %131 = vmatpush1.msra.mxu0 0.0
    %132 = vmatprep.subr.mxu0 0.0
    %133 = vmatpush1.msra.mxu0 0.0
    %134 = vmatprep.subr.mxu0 0.0
    %135 = vmatpush1.msra.mxu0 0.0
    %136 = vmatprep.subr.mxu0 0.0
    %137 = vmatpush1.msra.mxu0 0.0
    %138 = vmatprep.subr.mxu0 0.0
    %139 = vmatpush1.msra.mxu0 0.0
    %140 = vmatprep.subr.mxu0 0.0
    %141 = vmatpush1.msra.mxu0 0.0
    %142 = vmatprep.mubr.f32.mxu0 0.0
    %143 = vmatmul.mubr.f32.gmra.mrb[0].mxu0 %v73
    %v144 = vpop.f32.mrb[0].mxu0
    %v145 = vadd.f32 %v70, %v144
    %v146 = vpop.f32.mrb[0].mxu0
    %147 = vmatprep.mubr.f32.mxu0 0.0
    %148 = vmatmul.mubr.f32.gmra.mrb[0].mxu0 %v76
    %v149 = vpop.f32.mrb[0].mxu0
    %v150 = vadd.f32 %v70, %v149
    %v151 = vpop.f32.mrb[0].mxu0
    %152 = vdwg.mxu0
    %v153 = vlaneseq
    %v154 = vshrl.u32 %v153, 7
    %v155 = vlaneseq
    %v156 = vand.u32 %v155, 127
    %v157 = vmul.u32 %v154, 8
    %vm158 = vcmp.ge.s32.totalorder %v156, %v157
    %v159 = vadd.s32 %v154, 1
    %v160 = vmul.u32 %v159, 8
    %vm161 = vcmp.lt.s32.totalorder %v156, %v160
    %vm162 = vmand %vm158, %vm161
    %v163 = vsel %vm162, 1, 0
    %v164 = vcvt.s32.f32 %v163
    %vm165 = vcmp.ge.s32.totalorder %v156, %v154
    %vm166 = vcmp.lt.s32.totalorder %v156, %v159
    %vm167 = vmand %vm165, %vm166
    %v168 = vsel %vm167, 1, 0
    %v169 = vcvt.s32.f32 %v168
    %170 = vxpose.xlu0.b32.start [1/16] %v164, 128
    %171 = vxpose.xlu0.b32.cont [2/16] 0.0, 128
    %172 = vxpose.xlu0.b32.cont [3/16] 0.0, 128
    %173 = vxpose.xlu0.b32.cont [4/16] 0.0, 128
    %174 = vxpose.xlu0.b32.cont [5/16] 0.0, 128
    %175 = vxpose.xlu0.b32.cont [6/16] 0.0, 128
    %176 = vxpose.xlu0.b32.cont [7/16] 0.0, 128
    %177 = vxpose.xlu0.b32.cont [8/16] 0.0, 128
    %178 = vxpose.xlu0.b32.cont [9/16] 0.0, 128
    %179 = vxpose.xlu0.b32.cont [10/16] 0.0, 128
    %180 = vxpose.xlu0.b32.cont [11/16] 0.0, 128
    %181 = vxpose.xlu0.b32.cont [12/16] 0.0, 128
    %182 = vxpose.xlu0.b32.cont [13/16] 0.0, 128
    %183 = vxpose.xlu0.b32.cont [14/16] 0.0, 128
    %184 = vxpose.xlu0.b32.cont [15/16] 0.0, 128
    %185 = vxpose.xlu0.b32.end [16/16] 0.0, 128
    %v186 = vpop.trf.xlu0
    %v187 = vpop.trf.xlu0
    %v188 = vpop.trf.xlu0
    %v189 = vpop.trf.xlu0
    %v190 = vpop.trf.xlu0
    %v191 = vpop.trf.xlu0
    %v192 = vpop.trf.xlu0
    %v193 = vpop.trf.xlu0
    %v194 = vpop.trf.xlu0
    %v195 = vpop.trf.xlu0
    %v196 = vpop.trf.xlu0
    %v197 = vpop.trf.xlu0
    %v198 = vpop.trf.xlu0
    %v199 = vpop.trf.xlu0
    %v200 = vpop.trf.xlu0
    %v201 = vpop.trf.xlu0
    %vm202 = vcmask 15360
    %v204 = vsel %vm202, %v186, 0
    %v207 = vsel %vm202, %v187, 0
    %vm209 = vcmask 1041408
    %v211 = vsel %vm209, %v164, 0
    %213 = vmatprep.subr.mxu0 0.0
    %214 = vmatpush1.msra.mxu0 %v211
    %215 = vmatprep.subr.mxu0 0.0
    %216 = vmatpush1.msra.mxu0 0.0
    %217 = vmatprep.subr.mxu0 0.0
    %218 = vmatpush1.msra.mxu0 0.0
    %219 = vmatprep.subr.mxu0 0.0
    %220 = vmatpush1.msra.mxu0 0.0
    %221 = vmatprep.subr.mxu0 0.0
    %222 = vmatpush1.msra.mxu0 0.0
    %223 = vmatprep.subr.mxu0 0.0
    %224 = vmatpush1.msra.mxu0 0.0
    %225 = vmatprep.subr.mxu0 0.0
    %226 = vmatpush1.msra.mxu0 0.0
    %227 = vmatprep.subr.mxu0 0.0
    %228 = vmatpush1.msra.mxu0 0.0
    %229 = vmatprep.subr.mxu0 0.0
    %230 = vmatpush1.msra.mxu0 0.0
    %231 = vmatprep.subr.mxu0 0.0
    %232 = vmatpush1.msra.mxu0 0.0
    %233 = vmatprep.subr.mxu0 0.0
    %234 = vmatpush1.msra.mxu0 0.0
    %235 = vmatprep.subr.mxu0 0.0
    %236 = vmatpush1.msra.mxu0 0.0
    %237 = vmatprep.subr.mxu0 0.0
    %238 = vmatpush1.msra.mxu0 0.0
    %239 = vmatprep.subr.mxu0 0.0
    %240 = vmatpush1.msra.mxu0 0.0
    %241 = vmatprep.subr.mxu0 0.0
    %242 = vmatpush1.msra.mxu0 0.0
    %243 = vmatprep.subr.mxu0 0.0
    %244 = vmatpush1.msra.mxu0 0.0
    %245 = vmatprep.subr.mxu0 0.0
    %246 = vmatpush1.msra.mxu0 0.0
    %247 = vmatprep.subr.mxu0 0.0
    %248 = vmatpush1.msra.mxu0 0.0
    %249 = vmatprep.subr.mxu0 0.0
    %250 = vmatpush1.msra.mxu0 0.0
    %251 = vmatprep.subr.mxu0 0.0
    %252 = vmatpush1.msra.mxu0 0.0
    %253 = vmatprep.subr.mxu0 0.0
    %254 = vmatpush1.msra.mxu0 0.0
    %255 = vmatprep.subr.mxu0 0.0
    %256 = vmatpush1.msra.mxu0 0.0
    %257 = vmatprep.subr.mxu0 0.0
    %258 = vmatpush1.msra.mxu0 0.0
    %259 = vmatprep.subr.mxu0 0.0
    %260 = vmatpush1.msra.mxu0 0.0
    %261 = vmatprep.subr.mxu0 0.0
    %262 = vmatpush1.msra.mxu0 0.0
    %263 = vmatprep.subr.mxu0 0.0
    %264 = vmatpush1.msra.mxu0 0.0
    %265 = vmatprep.subr.mxu0 0.0
    %266 = vmatpush1.msra.mxu0 0.0
    %267 = vmatprep.subr.mxu0 0.0
    %268 = vmatpush1.msra.mxu0 0.0
    %269 = vmatprep.subr.mxu0 0.0
    %270 = vmatpush1.msra.mxu0 0.0
    %271 = vmatprep.subr.mxu0 0.0
    %272 = vmatpush1.msra.mxu0 0.0
    %273 = vmatprep.subr.mxu0 0.0
    %274 = vmatpush1.msra.mxu0 0.0
    %275 = vmatprep.subr.mxu0 0.0
    %276 = vmatpush1.msra.mxu0 0.0
    %277 = vmatprep.mubr.f32.mxu0 0.0
    %278 = vmatmul.mubr.f32.gmra.mrb[0].mxu0 %v204
    %v279 = vpop.f32.mrb[0].mxu0
    %v280 = vadd.f32 0.0, %v279
    %v281 = vpop.f32.mrb[0].mxu0
    %282 = vmatprep.mubr.f32.mxu0 0.0
    %283 = vmatmul.mubr.f32.gmra.mrb[0].mxu0 %v207
    %v284 = vpop.f32.mrb[0].mxu0
    %v285 = vadd.f32 0.0, %v284
    %v286 = vpop.f32.mrb[0].mxu0
    %287 = vdwg.mxu0
    %v288 = vsub.f32 %v280, 1.0
    %v289 = vsub.f32 %v285, 1.0
    %v290 = vmul.f32 %v288, 1e+30
    %v291 = vmul.f32 %v289, 1e+30
    %v292 = vld [vmem:[%s7] sm:$0xff]
    %v293 = vld [vmem:[%s4] sm:$0xff]
    %v294 = vld [vmem:[%s4 + $0x8] sm:$0xff]
    %v295 = vld [vmem:[%s4 + $0x10] sm:$0xff]
    %v296 = vld [vmem:[%s4 + $0x18] sm:$0xff]
    %v297 = vld [vmem:[%s3] sm:$0xff]
    %v298 = vld [vmem:[%s3 + $0x8] sm:$0xff]
    %v299 = vld [vmem:[%s3 + $0x10] sm:$0xff]
    %v300 = vld [vmem:[%s3 + $0x18] sm:$0xff]
    %v301 = vlaneseq
    %v302 = vshrl.u32 %v301, 7
    %v303 = vsub.s32 0, %v302
    %v304 = vrot.slane %v292, %v303
    %vm305 = vcmask 261120
    %v307 = vsel %vm305, %v145, 0
    %v310 = vsel %vm305, %v150, 0
    %312 = vmatprep.subr.mxu0 0.0
    %313 = vmatpush1.msra.mxu0 %v297
    %314 = vmatprep.subr.mxu0 0.0
    %315 = vmatpush1.msra.mxu0 %v298
    %316 = vmatprep.subr.mxu0 0.0
    %317 = vmatpush1.msra.mxu0 %v299
    %318 = vmatprep.subr.mxu0 0.0
    %319 = vmatpush1.msra.mxu0 %v300
    %320 = vmatprep.subr.mxu0 0.0
    %321 = vmatpush1.msra.mxu0 0.0
    %322 = vmatprep.subr.mxu0 0.0
    %323 = vmatpush1.msra.mxu0 0.0
    %324 = vmatprep.subr.mxu0 0.0
    %325 = vmatpush1.msra.mxu0 0.0
    %326 = vmatprep.subr.mxu0 0.0
    %327 = vmatpush1.msra.mxu0 0.0
    %328 = vmatprep.subr.mxu0 0.0
    %329 = vmatpush1.msra.mxu0 0.0
    %330 = vmatprep.subr.mxu0 0.0
    %331 = vmatpush1.msra.mxu0 0.0
    %332 = vmatprep.subr.mxu0 0.0
    %333 = vmatpush1.msra.mxu0 0.0
    %334 = vmatprep.subr.mxu0 0.0
    %335 = vmatpush1.msra.mxu0 0.0
    %336 = vmatprep.subr.mxu0 0.0
    %337 = vmatpush1.msra.mxu0 0.0
    %338 = vmatprep.subr.mxu0 0.0
    %339 = vmatpush1.msra.mxu0 0.0
    %340 = vmatprep.subr.mxu0 0.0
    %341 = vmatpush1.msra.mxu0 0.0
    %342 = vmatprep.subr.mxu0 0.0
    %343 = vmatpush1.msra.mxu0 0.0
    %344 = vmatprep.subr.mxu0 0.0
    %345 = vmatpush1.msra.mxu0 0.0
    %346 = vmatprep.subr.mxu0 0.0
    %347 = vmatpush1.msra.mxu0 0.0
    %348 = vmatprep.subr.mxu0 0.0
    %349 = vmatpush1.msra.mxu0 0.0
    %350 = vmatprep.subr.mxu0 0.0
    %351 = vmatpush1.msra.mxu0 0.0
    %352 = vmatprep.subr.mxu0 0.0
    %353 = vmatpush1.msra.mxu0 0.0
    %354 = vmatprep.subr.mxu0 0.0
    %355 = vmatpush1.msra.mxu0 0.0
    %356 = vmatprep.subr.mxu0 0.0
    %357 = vmatpush1.msra.mxu0 0.0
    %358 = vmatprep.subr.mxu0 0.0
    %359 = vmatpush1.msra.mxu0 0.0
    %360 = vmatprep.subr.mxu0 0.0
    %361 = vmatpush1.msra.mxu0 0.0
    %362 = vmatprep.subr.mxu0 0.0
    %363 = vmatpush1.msra.mxu0 0.0
    %364 = vmatprep.subr.mxu0 0.0
    %365 = vmatpush1.msra.mxu0 0.0
    %366 = vmatprep.subr.mxu0 0.0
    %367 = vmatpush1.msra.mxu0 0.0
    %368 = vmatprep.subr.mxu0 0.0
    %369 = vmatpush1.msra.mxu0 0.0
    %370 = vmatprep.subr.mxu0 0.0
    %371 = vmatpush1.msra.mxu0 0.0
    %372 = vmatprep.subr.mxu0 0.0
    %373 = vmatpush1.msra.mxu0 0.0
    %374 = vmatprep.subr.mxu0 0.0
    %375 = vmatpush1.msra.mxu0 0.0
    %376 = vmatprep.mubr.f32.mxu0 0.0
    %377 = vmatmul.mubr.f32.gmra.mrb[0].mxu0 %v307
    %v378 = vpop.f32.mrb[0].mxu0
    %v379 = vadd.f32 %v304, %v378
    %v380 = vpop.f32.mrb[0].mxu0
    %381 = vmatprep.mubr.f32.mxu0 0.0
    %382 = vmatmul.mubr.f32.gmra.mrb[0].mxu0 %v310
    %v383 = vpop.f32.mrb[0].mxu0
    %v384 = vadd.f32 %v304, %v383
    %v385 = vpop.f32.mrb[0].mxu0
    %386 = vdwg.mxu0
    %389 = vrot.lane.b32.xlu0 %v379, 96
    %v390 = vpop.permute.xlu0 %389
    %391 = vrot.lane.b32.xlu0 %v384, 96
    %v392 = vpop.permute.xlu0 %391
    %v393 = vsel %vm71, %v379, 0
    %v395 = vsel %vm71, %v384, 0
    %v397 = vsel %vm71, %v390, 0
    %v399 = vsel %vm71, %v392, 0
    %401 = vmatprep.subr.mxu0 0.0
    %402 = vmatpush1.xpose.msra.mxu0 %v397
    %403 = vmatprep.subr.mxu0 0.0
    %404 = vmatpush1.xpose.msra.mxu0 %v399
    %405 = vmatprep.subr.mxu0 0.0
    %406 = vmatpush1.xpose.msra.mxu0 0.0
    %407 = vmatprep.subr.mxu0 0.0
    %408 = vmatpush1.xpose.msra.mxu0 0.0
    %409 = vmatprep.subr.mxu0 0.0
    %410 = vmatpush1.xpose.msra.mxu0 0.0
    %411 = vmatprep.subr.mxu0 0.0
    %412 = vmatpush1.xpose.msra.mxu0 0.0
    %413 = vmatprep.subr.mxu0 0.0
    %414 = vmatpush1.xpose.msra.mxu0 0.0
    %415 = vmatprep.subr.mxu0 0.0
    %416 = vmatpush1.xpose.msra.mxu0 0.0
    %417 = vmatprep.subr.mxu0 0.0
    %418 = vmatpush1.xpose.msra.mxu0 0.0
    %419 = vmatprep.subr.mxu0 0.0
    %420 = vmatpush1.xpose.msra.mxu0 0.0
    %421 = vmatprep.subr.mxu0 0.0
    %422 = vmatpush1.xpose.msra.mxu0 0.0
    %423 = vmatprep.subr.mxu0 0.0
    %424 = vmatpush1.xpose.msra.mxu0 0.0
    %425 = vmatprep.subr.mxu0 0.0
    %426 = vmatpush1.xpose.msra.mxu0 0.0
    %427 = vmatprep.subr.mxu0 0.0
    %428 = vmatpush1.xpose.msra.mxu0 0.0
    %429 = vmatprep.subr.mxu0 0.0
    %430 = vmatpush1.xpose.msra.mxu0 0.0
    %431 = vmatprep.subr.mxu0 0.0
    %432 = vmatpush1.xpose.msra.mxu0 0.0
    %433 = vmatprep.subr.mxu0 0.0
    %434 = vmatpush1.xpose.msra.mxu0 0.0
    %435 = vmatprep.subr.mxu0 0.0
    %436 = vmatpush1.xpose.msra.mxu0 0.0
    %437 = vmatprep.subr.mxu0 0.0
    %438 = vmatpush1.xpose.msra.mxu0 0.0
    %439 = vmatprep.subr.mxu0 0.0
    %440 = vmatpush1.xpose.msra.mxu0 0.0
    %441 = vmatprep.subr.mxu0 0.0
    %442 = vmatpush1.xpose.msra.mxu0 0.0
    %443 = vmatprep.subr.mxu0 0.0
    %444 = vmatpush1.xpose.msra.mxu0 0.0
    %445 = vmatprep.subr.mxu0 0.0
    %446 = vmatpush1.xpose.msra.mxu0 0.0
    %447 = vmatprep.subr.mxu0 0.0
    %448 = vmatpush1.xpose.msra.mxu0 0.0
    %449 = vmatprep.subr.mxu0 0.0
    %450 = vmatpush1.xpose.msra.mxu0 0.0
    %451 = vmatprep.subr.mxu0 0.0
    %452 = vmatpush1.xpose.msra.mxu0 0.0
    %453 = vmatprep.subr.mxu0 0.0
    %454 = vmatpush1.xpose.msra.mxu0 0.0
    %455 = vmatprep.subr.mxu0 0.0
    %456 = vmatpush1.xpose.msra.mxu0 0.0
    %457 = vmatprep.subr.mxu0 0.0
    %458 = vmatpush1.xpose.msra.mxu0 0.0
    %459 = vmatprep.subr.mxu0 0.0
    %460 = vmatpush1.xpose.msra.mxu0 0.0
    %461 = vmatprep.subr.mxu0 0.0
    %462 = vmatpush1.xpose.msra.mxu0 0.0
    %463 = vmatprep.subr.mxu0 0.0
    %464 = vmatpush1.xpose.msra.mxu0 0.0
    %465 = vmatprep.mubr.f32.mxu0 0.0
    %466 = vmatmul.mubr.f32.gmra.mrb[0].mxu0 %v393
    %v467 = vpop.f32.mrb[0].mxu0
    %v468 = vadd.f32 0.0, %v467
    %v469 = vpop.f32.mrb[0].mxu0
    %470 = vmatprep.mubr.f32.mxu0 0.0
    %471 = vmatmul.mubr.f32.gmra.mrb[0].mxu0 %v395
    %v472 = vpop.f32.mrb[0].mxu0
    %v473 = vadd.f32 0.0, %v472
    %v474 = vpop.f32.mrb[0].mxu0
    %475 = vdwg.mxu0
    %v476 = vmul.f32 %v468, 0.35355338
    %v477 = vmul.f32 %v473, 0.35355338
    %v478 = vadd.f32 %v476, %v290
    %v479 = vadd.f32 %v477, %v291
    %vm480 = vcmask 130048
    %v481 = vsel %vm480, %v478, -inf
    %482 = vmax.xlane.f32.xlu0 %v481
    %v483 = vpop.xlane.xlu0 %482
    %v484 = vsel %vm480, %v479, -inf
    %485 = vmax.xlane.f32.xlu0 %v484
    %v486 = vpop.xlane.xlu0 %485
    %v487 = vsub.f32 %v478, %v483
    %v488 = vsub.f32 %v479, %v486
    %v489 = vmul.f32 %v487, 1.442695
    %v490 = vpow.pop %v489
    %v491 = vmul.f32 %v488, 1.442695
    %v492 = vpow.pop %v491
    %v493 = vsel %vm480, %v490, 0.0
    %494 = vadd.xlane.f32.xlu0 %v493
    %v495 = vpop.xlane.xlu0 %494
    %v496 = vsel %vm480, %v492, 0.0
    %497 = vadd.xlane.f32.xlu0 %v496
    %v498 = vpop.xlane.xlu0 %497
    %v499 = vrcp.pop %v495
    %v500 = vrcp.pop %v498
    %v501 = vmul.f32 %v490, %v499
    %v502 = vmul.f32 %v492, %v500
    %503 = vrot.lane.b32.xlu0 %v379, 64
    %v504 = vpop.permute.xlu0 %503
    %505 = vrot.lane.b32.xlu0 %v384, 64
    %v506 = vpop.permute.xlu0 %505
    %v510 = vsel %vm480, %v501, 0
    %v513 = vsel %vm480, %v502, 0
    %515 = vmatprep.subr.mxu0 0.0
    %516 = vmatpush1.msra.mxu0 %v504
    %517 = vmatprep.subr.mxu0 0.0
    %518 = vmatpush1.msra.mxu0 %v506
    %519 = vmatprep.subr.mxu0 0.0
    %520 = vmatpush1.msra.mxu0 0.0
    %521 = vmatprep.subr.mxu0 0.0
    %522 = vmatpush1.msra.mxu0 0.0
    %523 = vmatprep.subr.mxu0 0.0
    %524 = vmatpush1.msra.mxu0 0.0
    %525 = vmatprep.subr.mxu0 0.0
    %526 = vmatpush1.msra.mxu0 0.0
    %527 = vmatprep.subr.mxu0 0.0
    %528 = vmatpush1.msra.mxu0 0.0
    %529 = vmatprep.subr.mxu0 0.0
    %530 = vmatpush1.msra.mxu0 0.0
    %531 = vmatprep.subr.mxu0 0.0
    %532 = vmatpush1.msra.mxu0 0.0
    %533 = vmatprep.subr.mxu0 0.0
    %534 = vmatpush1.msra.mxu0 0.0
    %535 = vmatprep.subr.mxu0 0.0
    %536 = vmatpush1.msra.mxu0 0.0
    %537 = vmatprep.subr.mxu0 0.0
    %538 = vmatpush1.msra.mxu0 0.0
    %539 = vmatprep.subr.mxu0 0.0
    %540 = vmatpush1.msra.mxu0 0.0
    %541 = vmatprep.subr.mxu0 0.0
    %542 = vmatpush1.msra.mxu0 0.0
    %543 = vmatprep.subr.mxu0 0.0
    %544 = vmatpush1.msra.mxu0 0.0
    %545 = vmatprep.subr.mxu0 0.0
    %546 = vmatpush1.msra.mxu0 0.0
    %547 = vmatprep.subr.mxu0 0.0
    %548 = vmatpush1.msra.mxu0 0.0
    %549 = vmatprep.subr.mxu0 0.0
    %550 = vmatpush1.msra.mxu0 0.0
    %551 = vmatprep.subr.mxu0 0.0
    %552 = vmatpush1.msra.mxu0 0.0
    %553 = vmatprep.subr.mxu0 0.0
    %554 = vmatpush1.msra.mxu0 0.0
    %555 = vmatprep.subr.mxu0 0.0
    %556 = vmatpush1.msra.mxu0 0.0
    %557 = vmatprep.subr.mxu0 0.0
    %558 = vmatpush1.msra.mxu0 0.0
    %559 = vmatprep.subr.mxu0 0.0
    %560 = vmatpush1.msra.mxu0 0.0
    %561 = vmatprep.subr.mxu0 0.0
    %562 = vmatpush1.msra.mxu0 0.0
    %563 = vmatprep.subr.mxu0 0.0
    %564 = vmatpush1.msra.mxu0 0.0
    %565 = vmatprep.subr.mxu0 0.0
    %566 = vmatpush1.msra.mxu0 0.0
    %567 = vmatprep.subr.mxu0 0.0
    %568 = vmatpush1.msra.mxu0 0.0
    %569 = vmatprep.subr.mxu0 0.0
    %570 = vmatpush1.msra.mxu0 0.0
    %571 = vmatprep.subr.mxu0 0.0
    %572 = vmatpush1.msra.mxu0 0.0
    %573 = vmatprep.subr.mxu0 0.0
    %574 = vmatpush1.msra.mxu0 0.0
    %575 = vmatprep.subr.mxu0 0.0
    %576 = vmatpush1.msra.mxu0 0.0
    %577 = vmatprep.subr.mxu0 0.0
    %578 = vmatpush1.msra.mxu0 0.0
    %579 = vmatprep.mubr.f32.mxu0 0.0
    %580 = vmatmul.mubr.f32.gmra.mrb[0].mxu0 %v510
    %v581 = vpop.f32.mrb[0].mxu0
    %v582 = vadd.f32 0.0, %v581
    %v583 = vpop.f32.mrb[0].mxu0
    %584 = vmatprep.mubr.f32.mxu0 0.0
    %585 = vmatmul.mubr.f32.gmra.mrb[0].mxu0 %v513
    %v586 = vpop.f32.mrb[0].mxu0
    %v587 = vadd.f32 0.0, %v586
    %v588 = vpop.f32.mrb[0].mxu0
    %589 = vdwg.mxu0
    %590 = vrot.lane.b32.xlu0 %v379, 120
    %v591 = vpop.permute.xlu0 %590
    %592 = vrot.lane.b32.xlu0 %v384, 120
    %v593 = vpop.permute.xlu0 %592
    %594 = vrot.lane.b32.xlu0 %v379, 88
    %v595 = vpop.permute.xlu0 %594
    %596 = vrot.lane.b32.xlu0 %v384, 88
    %v597 = vpop.permute.xlu0 %596
    %v598 = vsel %vm71, %v591, 0
    %v600 = vsel %vm71, %v593, 0
    %v602 = vsel %vm71, %v595, 0
    %v604 = vsel %vm71, %v597, 0
    %606 = vmatprep.subr.mxu0 0.0
    %607 = vmatpush1.xpose.msra.mxu0 %v602
    %608 = vmatprep.subr.mxu0 0.0
    %609 = vmatpush1.xpose.msra.mxu0 %v604
    %610 = vmatprep.subr.mxu0 0.0
    %611 = vmatpush1.xpose.msra.mxu0 0.0
    %612 = vmatprep.subr.mxu0 0.0
    %613 = vmatpush1.xpose.msra.mxu0 0.0
    %614 = vmatprep.subr.mxu0 0.0
    %615 = vmatpush1.xpose.msra.mxu0 0.0
    %616 = vmatprep.subr.mxu0 0.0
    %617 = vmatpush1.xpose.msra.mxu0 0.0
    %618 = vmatprep.subr.mxu0 0.0
    %619 = vmatpush1.xpose.msra.mxu0 0.0
    %620 = vmatprep.subr.mxu0 0.0
    %621 = vmatpush1.xpose.msra.mxu0 0.0
    %622 = vmatprep.subr.mxu0 0.0
    %623 = vmatpush1.xpose.msra.mxu0 0.0
    %624 = vmatprep.subr.mxu0 0.0
    %625 = vmatpush1.xpose.msra.mxu0 0.0
    %626 = vmatprep.subr.mxu0 0.0
    %627 = vmatpush1.xpose.msra.mxu0 0.0
    %628 = vmatprep.subr.mxu0 0.0
    %629 = vmatpush1.xpose.msra.mxu0 0.0
    %630 = vmatprep.subr.mxu0 0.0
    %631 = vmatpush1.xpose.msra.mxu0 0.0
    %632 = vmatprep.subr.mxu0 0.0
    %633 = vmatpush1.xpose.msra.mxu0 0.0
    %634 = vmatprep.subr.mxu0 0.0
    %635 = vmatpush1.xpose.msra.mxu0 0.0
    %636 = vmatprep.subr.mxu0 0.0
    %637 = vmatpush1.xpose.msra.mxu0 0.0
    %638 = vmatprep.subr.mxu0 0.0
    %639 = vmatpush1.xpose.msra.mxu0 0.0
    %640 = vmatprep.subr.mxu0 0.0
    %641 = vmatpush1.xpose.msra.mxu0 0.0
    %642 = vmatprep.subr.mxu0 0.0
    %643 = vmatpush1.xpose.msra.mxu0 0.0
    %644 = vmatprep.subr.mxu0 0.0
    %645 = vmatpush1.xpose.msra.mxu0 0.0
    %646 = vmatprep.subr.mxu0 0.0
    %647 = vmatpush1.xpose.msra.mxu0 0.0
    %648 = vmatprep.subr.mxu0 0.0
    %649 = vmatpush1.xpose.msra.mxu0 0.0
    %650 = vmatprep.subr.mxu0 0.0
    %651 = vmatpush1.xpose.msra.mxu0 0.0
    %652 = vmatprep.subr.mxu0 0.0
    %653 = vmatpush1.xpose.msra.mxu0 0.0
    %654 = vmatprep.subr.mxu0 0.0
    %655 = vmatpush1.xpose.msra.mxu0 0.0
    %656 = vmatprep.subr.mxu0 0.0
    %657 = vmatpush1.xpose.msra.mxu0 0.0
    %658 = vmatprep.subr.mxu0 0.0
    %659 = vmatpush1.xpose.msra.mxu0 0.0
    %660 = vmatprep.subr.mxu0 0.0
    %661 = vmatpush1.xpose.msra.mxu0 0.0
    %662 = vmatprep.subr.mxu0 0.0
    %663 = vmatpush1.xpose.msra.mxu0 0.0
    %664 = vmatprep.subr.mxu0 0.0
    %665 = vmatpush1.xpose.msra.mxu0 0.0
    %666 = vmatprep.subr.mxu0 0.0
    %667 = vmatpush1.xpose.msra.mxu0 0.0
    %668 = vmatprep.subr.mxu0 0.0
    %669 = vmatpush1.xpose.msra.mxu0 0.0
    %670 = vmatprep.mubr.f32.mxu0 0.0
    %671 = vmatmul.mubr.f32.gmra.mrb[0].mxu0 %v598
    %v672 = vpop.f32.mrb[0].mxu0
    %v673 = vadd.f32 0.0, %v672
    %v674 = vpop.f32.mrb[0].mxu0
    %675 = vmatprep.mubr.f32.mxu0 0.0
    %676 = vmatmul.mubr.f32.gmra.mrb[0].mxu0 %v600
    %v677 = vpop.f32.mrb[0].mxu0
    %v678 = vadd.f32 0.0, %v677
    %v679 = vpop.f32.mrb[0].mxu0
    %680 = vdwg.mxu0
    %v681 = vmul.f32 %v673, 0.35355338
    %v682 = vmul.f32 %v678, 0.35355338
    %v683 = vadd.f32 %v681, %v290
    %v684 = vadd.f32 %v682, %v291
    %v685 = vsel %vm480, %v683, -inf
    %686 = vmax.xlane.f32.xlu0 %v685
    %v687 = vpop.xlane.xlu0 %686
    %v688 = vsel %vm480, %v684, -inf
    %689 = vmax.xlane.f32.xlu0 %v688
    %v690 = vpop.xlane.xlu0 %689
    %v691 = vsub.f32 %v683, %v687
    %v692 = vsub.f32 %v684, %v690
    %v693 = vmul.f32 %v691, 1.442695
    %v694 = vpow.pop %v693
    %v695 = vmul.f32 %v692, 1.442695
    %v696 = vpow.pop %v695
    %v697 = vsel %vm480, %v694, 0.0
    %698 = vadd.xlane.f32.xlu0 %v697
    %v699 = vpop.xlane.xlu0 %698
    %v700 = vsel %vm480, %v696, 0.0
    %701 = vadd.xlane.f32.xlu0 %v700
    %v702 = vpop.xlane.xlu0 %701
    %v703 = vrcp.pop %v699
    %v704 = vrcp.pop %v702
    %v705 = vmul.f32 %v694, %v703
    %v706 = vmul.f32 %v696, %v704
    %707 = vrot.lane.b32.xlu0 %v379, 56
    %v708 = vpop.permute.xlu0 %707
    %709 = vrot.lane.b32.xlu0 %v384, 56
    %v710 = vpop.permute.xlu0 %709
    %v714 = vsel %vm480, %v705, 0
    %v717 = vsel %vm480, %v706, 0
    %719 = vmatprep.subr.mxu0 0.0
    %720 = vmatpush1.msra.mxu0 %v708
    %721 = vmatprep.subr.mxu0 0.0
    %722 = vmatpush1.msra.mxu0 %v710
    %723 = vmatprep.subr.mxu0 0.0
    %724 = vmatpush1.msra.mxu0 0.0
    %725 = vmatprep.subr.mxu0 0.0
    %726 = vmatpush1.msra.mxu0 0.0
    %727 = vmatprep.subr.mxu0 0.0
    %728 = vmatpush1.msra.mxu0 0.0
    %729 = vmatprep.subr.mxu0 0.0
    %730 = vmatpush1.msra.mxu0 0.0
    %731 = vmatprep.subr.mxu0 0.0
    %732 = vmatpush1.msra.mxu0 0.0
    %733 = vmatprep.subr.mxu0 0.0
    %734 = vmatpush1.msra.mxu0 0.0
    %735 = vmatprep.subr.mxu0 0.0
    %736 = vmatpush1.msra.mxu0 0.0
    %737 = vmatprep.subr.mxu0 0.0
    %738 = vmatpush1.msra.mxu0 0.0
    %739 = vmatprep.subr.mxu0 0.0
    %740 = vmatpush1.msra.mxu0 0.0
    %741 = vmatprep.subr.mxu0 0.0
    %742 = vmatpush1.msra.mxu0 0.0
    %743 = vmatprep.subr.mxu0 0.0
    %744 = vmatpush1.msra.mxu0 0.0
    %745 = vmatprep.subr.mxu0 0.0
    %746 = vmatpush1.msra.mxu0 0.0
    %747 = vmatprep.subr.mxu0 0.0
    %748 = vmatpush1.msra.mxu0 0.0
    %749 = vmatprep.subr.mxu0 0.0
    %750 = vmatpush1.msra.mxu0 0.0
    %751 = vmatprep.subr.mxu0 0.0
    %752 = vmatpush1.msra.mxu0 0.0
    %753 = vmatprep.subr.mxu0 0.0
    %754 = vmatpush1.msra.mxu0 0.0
    %755 = vmatprep.subr.mxu0 0.0
    %756 = vmatpush1.msra.mxu0 0.0
    %757 = vmatprep.subr.mxu0 0.0
    %758 = vmatpush1.msra.mxu0 0.0
    %759 = vmatprep.subr.mxu0 0.0
    %760 = vmatpush1.msra.mxu0 0.0
    %761 = vmatprep.subr.mxu0 0.0
    %762 = vmatpush1.msra.mxu0 0.0
    %763 = vmatprep.subr.mxu0 0.0
    %764 = vmatpush1.msra.mxu0 0.0
    %765 = vmatprep.subr.mxu0 0.0
    %766 = vmatpush1.msra.mxu0 0.0
    %767 = vmatprep.subr.mxu0 0.0
    %768 = vmatpush1.msra.mxu0 0.0
    %769 = vmatprep.subr.mxu0 0.0
    %770 = vmatpush1.msra.mxu0 0.0
    %771 = vmatprep.subr.mxu0 0.0
    %772 = vmatpush1.msra.mxu0 0.0
    %773 = vmatprep.subr.mxu0 0.0
    %774 = vmatpush1.msra.mxu0 0.0
    %775 = vmatprep.subr.mxu0 0.0
    %776 = vmatpush1.msra.mxu0 0.0
    %777 = vmatprep.subr.mxu0 0.0
    %778 = vmatpush1.msra.mxu0 0.0
    %779 = vmatprep.subr.mxu0 0.0
    %780 = vmatpush1.msra.mxu0 0.0
    %781 = vmatprep.subr.mxu0 0.0
    %782 = vmatpush1.msra.mxu0 0.0
    %783 = vmatprep.mubr.f32.mxu0 0.0
    %784 = vmatmul.mubr.f32.gmra.mrb[0].mxu0 %v714
    %v785 = vpop.f32.mrb[0].mxu0
    %v786 = vadd.f32 0.0, %v785
    %v787 = vpop.f32.mrb[0].mxu0
    %788 = vmatprep.mubr.f32.mxu0 0.0
    %789 = vmatmul.mubr.f32.gmra.mrb[0].mxu0 %v717
    %v790 = vpop.f32.mrb[0].mxu0
    %v791 = vadd.f32 0.0, %v790
    %v792 = vpop.f32.mrb[0].mxu0
    %793 = vdwg.mxu0
    %v795 = vsel %vm71, %v786, 0
    %v798 = vsel %vm71, %v791, 0
    %800 = vmatprep.subr.mxu0 0.0
    %801 = vmatpush1.msra.mxu0 %v294
    %802 = vmatprep.subr.mxu0 0.0
    %803 = vmatpush1.msra.mxu0 0.0
    %804 = vmatprep.subr.mxu0 0.0
    %805 = vmatpush1.msra.mxu0 0.0
    %806 = vmatprep.subr.mxu0 0.0
    %807 = vmatpush1.msra.mxu0 0.0
    %808 = vmatprep.subr.mxu0 0.0
    %809 = vmatpush1.msra.mxu0 0.0
    %810 = vmatprep.subr.mxu0 0.0
    %811 = vmatpush1.msra.mxu0 0.0
    %812 = vmatprep.subr.mxu0 0.0
    %813 = vmatpush1.msra.mxu0 0.0
    %814 = vmatprep.subr.mxu0 0.0
    %815 = vmatpush1.msra.mxu0 0.0
    %816 = vmatprep.subr.mxu0 0.0
    %817 = vmatpush1.msra.mxu0 0.0
    %818 = vmatprep.subr.mxu0 0.0
    %819 = vmatpush1.msra.mxu0 0.0
    %820 = vmatprep.subr.mxu0 0.0
    %821 = vmatpush1.msra.mxu0 0.0
    %822 = vmatprep.subr.mxu0 0.0
    %823 = vmatpush1.msra.mxu0 0.0
    %824 = vmatprep.subr.mxu0 0.0
    %825 = vmatpush1.msra.mxu0 0.0
    %826 = vmatprep.subr.mxu0 0.0
    %827 = vmatpush1.msra.mxu0 0.0
    %828 = vmatprep.subr.mxu0 0.0
    %829 = vmatpush1.msra.mxu0 0.0
    %830 = vmatprep.subr.mxu0 0.0
    %831 = vmatpush1.msra.mxu0 0.0
    %832 = vmatprep.subr.mxu0 0.0
    %833 = vmatpush1.msra.mxu0 0.0
    %834 = vmatprep.subr.mxu0 0.0
    %835 = vmatpush1.msra.mxu0 0.0
    %836 = vmatprep.subr.mxu0 0.0
    %837 = vmatpush1.msra.mxu0 0.0
    %838 = vmatprep.subr.mxu0 0.0
    %839 = vmatpush1.msra.mxu0 0.0
    %840 = vmatprep.subr.mxu0 0.0
    %841 = vmatpush1.msra.mxu0 0.0
    %842 = vmatprep.subr.mxu0 0.0
    %843 = vmatpush1.msra.mxu0 0.0
    %844 = vmatprep.subr.mxu0 0.0
    %845 = vmatpush1.msra.mxu0 0.0
    %846 = vmatprep.subr.mxu0 0.0
    %847 = vmatpush1.msra.mxu0 0.0
    %848 = vmatprep.subr.mxu0 0.0
    %849 = vmatpush1.msra.mxu0 0.0
    %850 = vmatprep.subr.mxu0 0.0
    %851 = vmatpush1.msra.mxu0 0.0
    %852 = vmatprep.subr.mxu0 0.0
    %853 = vmatpush1.msra.mxu0 0.0
    %854 = vmatprep.subr.mxu0 0.0
    %855 = vmatpush1.msra.mxu0 0.0
    %856 = vmatprep.subr.mxu0 0.0
    %857 = vmatpush1.msra.mxu0 0.0
    %858 = vmatprep.subr.mxu0 0.0
    %859 = vmatpush1.msra.mxu0 0.0
    %860 = vmatprep.subr.mxu0 0.0
    %861 = vmatpush1.msra.mxu0 0.0
    %862 = vmatprep.subr.mxu0 0.0
    %863 = vmatpush1.msra.mxu0 0.0
    %864 = vmatprep.mubr.f32.mxu0 0.0
    %865 = vmatmul.mubr.f32.gmra.mrb[0].mxu0 %v795
    %v866 = vpop.f32.mrb[0].mxu0
    %v867 = vadd.f32 0.0, %v866
    %v868 = vpop.f32.mrb[0].mxu0
    %869 = vmatprep.mubr.f32.mxu0 0.0
    %870 = vmatmul.mubr.f32.gmra.mrb[0].mxu0 %v798
    %v871 = vpop.f32.mrb[0].mxu0
    %v872 = vadd.f32 0.0, %v871
    %v873 = vpop.f32.mrb[0].mxu0
    %874 = vdwg.mxu0
    %v876 = vsel %vm71, %v582, 0
    %v879 = vsel %vm71, %v587, 0
    %881 = vmatprep.subr.mxu0 0.0
    %882 = vmatpush1.msra.mxu0 %v293
    %883 = vmatprep.subr.mxu0 0.0
    %884 = vmatpush1.msra.mxu0 0.0
    %885 = vmatprep.subr.mxu0 0.0
    %886 = vmatpush1.msra.mxu0 0.0
    %887 = vmatprep.subr.mxu0 0.0
    %888 = vmatpush1.msra.mxu0 0.0
    %889 = vmatprep.subr.mxu0 0.0
    %890 = vmatpush1.msra.mxu0 0.0
    %891 = vmatprep.subr.mxu0 0.0
    %892 = vmatpush1.msra.mxu0 0.0
    %893 = vmatprep.subr.mxu0 0.0
    %894 = vmatpush1.msra.mxu0 0.0
    %895 = vmatprep.subr.mxu0 0.0
    %896 = vmatpush1.msra.mxu0 0.0
    %897 = vmatprep.subr.mxu0 0.0
    %898 = vmatpush1.msra.mxu0 0.0
    %899 = vmatprep.subr.mxu0 0.0
    %900 = vmatpush1.msra.mxu0 0.0
    %901 = vmatprep.subr.mxu0 0.0
    %902 = vmatpush1.msra.mxu0 0.0
    %903 = vmatprep.subr.mxu0 0.0
    %904 = vmatpush1.msra.mxu0 0.0
    %905 = vmatprep.subr.mxu0 0.0
    %906 = vmatpush1.msra.mxu0 0.0
    %907 = vmatprep.subr.mxu0 0.0
    %908 = vmatpush1.msra.mxu0 0.0
    %909 = vmatprep.subr.mxu0 0.0
    %910 = vmatpush1.msra.mxu0 0.0
    %911 = vmatprep.subr.mxu0 0.0
    %912 = vmatpush1.msra.mxu0 0.0
    %913 = vmatprep.subr.mxu0 0.0
    %914 = vmatpush1.msra.mxu0 0.0
    %915 = vmatprep.subr.mxu0 0.0
    %916 = vmatpush1.msra.mxu0 0.0
    %917 = vmatprep.subr.mxu0 0.0
    %918 = vmatpush1.msra.mxu0 0.0
    %919 = vmatprep.subr.mxu0 0.0
    %920 = vmatpush1.msra.mxu0 0.0
    %921 = vmatprep.subr.mxu0 0.0
    %922 = vmatpush1.msra.mxu0 0.0
    %923 = vmatprep.subr.mxu0 0.0
    %924 = vmatpush1.msra.mxu0 0.0
    %925 = vmatprep.subr.mxu0 0.0
    %926 = vmatpush1.msra.mxu0 0.0
    %927 = vmatprep.subr.mxu0 0.0
    %928 = vmatpush1.msra.mxu0 0.0
    %929 = vmatprep.subr.mxu0 0.0
    %930 = vmatpush1.msra.mxu0 0.0
    %931 = vmatprep.subr.mxu0 0.0
    %932 = vmatpush1.msra.mxu0 0.0
    %933 = vmatprep.subr.mxu0 0.0
    %934 = vmatpush1.msra.mxu0 0.0
    %935 = vmatprep.subr.mxu0 0.0
    %936 = vmatpush1.msra.mxu0 0.0
    %937 = vmatprep.subr.mxu0 0.0
    %938 = vmatpush1.msra.mxu0 0.0
    %939 = vmatprep.subr.mxu0 0.0
    %940 = vmatpush1.msra.mxu0 0.0
    %941 = vmatprep.subr.mxu0 0.0
    %942 = vmatpush1.msra.mxu0 0.0
    %943 = vmatprep.subr.mxu0 0.0
    %944 = vmatpush1.msra.mxu0 0.0
    %945 = vmatprep.mubr.f32.mxu0 0.0
    %946 = vmatmul.mubr.f32.gmra.mrb[0].mxu0 %v876
    %v947 = vpop.f32.mrb[0].mxu0
    %v948 = vadd.f32 %v867, %v947
    %v949 = vpop.f32.mrb[0].mxu0
    %950 = vmatprep.mubr.f32.mxu0 0.0
    %951 = vmatmul.mubr.f32.gmra.mrb[0].mxu0 %v879
    %v952 = vpop.f32.mrb[0].mxu0
    %v953 = vadd.f32 %v872, %v952
    %v954 = vpop.f32.mrb[0].mxu0
    %955 = vdwg.mxu0
    %956 = vrot.lane.b32.xlu0 %v379, 112
    %v957 = vpop.permute.xlu0 %956
    %958 = vrot.lane.b32.xlu0 %v384, 112
    %v959 = vpop.permute.xlu0 %958
    %960 = vrot.lane.b32.xlu0 %v379, 80
    %v961 = vpop.permute.xlu0 %960
    %962 = vrot.lane.b32.xlu0 %v384, 80
    %v963 = vpop.permute.xlu0 %962
    %v964 = vsel %vm71, %v957, 0
    %v966 = vsel %vm71, %v959, 0
    %v968 = vsel %vm71, %v961, 0
    %v970 = vsel %vm71, %v963, 0
    %972 = vmatprep.subr.mxu0 0.0
    %973 = vmatpush1.xpose.msra.mxu0 %v968
    %974 = vmatprep.subr.mxu0 0.0
    %975 = vmatpush1.xpose.msra.mxu0 %v970
    %976 = vmatprep.subr.mxu0 0.0
    %977 = vmatpush1.xpose.msra.mxu0 0.0
    %978 = vmatprep.subr.mxu0 0.0
    %979 = vmatpush1.xpose.msra.mxu0 0.0
    %980 = vmatprep.subr.mxu0 0.0
    %981 = vmatpush1.xpose.msra.mxu0 0.0
    %982 = vmatprep.subr.mxu0 0.0
    %983 = vmatpush1.xpose.msra.mxu0 0.0
    %984 = vmatprep.subr.mxu0 0.0
    %985 = vmatpush1.xpose.msra.mxu0 0.0
    %986 = vmatprep.subr.mxu0 0.0
    %987 = vmatpush1.xpose.msra.mxu0 0.0
    %988 = vmatprep.subr.mxu0 0.0
    %989 = vmatpush1.xpose.msra.mxu0 0.0
    %990 = vmatprep.subr.mxu0 0.0
    %991 = vmatpush1.xpose.msra.mxu0 0.0
    %992 = vmatprep.subr.mxu0 0.0
    %993 = vmatpush1.xpose.msra.mxu0 0.0
    %994 = vmatprep.subr.mxu0 0.0
    %995 = vmatpush1.xpose.msra.mxu0 0.0
    %996 = vmatprep.subr.mxu0 0.0
    %997 = vmatpush1.xpose.msra.mxu0 0.0
    %998 = vmatprep.subr.mxu0 0.0
    %999 = vmatpush1.xpose.msra.mxu0 0.0
    %1000 = vmatprep.subr.mxu0 0.0
    %1001 = vmatpush1.xpose.msra.mxu0 0.0
    %1002 = vmatprep.subr.mxu0 0.0
    %1003 = vmatpush1.xpose.msra.mxu0 0.0
    %1004 = vmatprep.subr.mxu0 0.0
    %1005 = vmatpush1.xpose.msra.mxu0 0.0
    %1006 = vmatprep.subr.mxu0 0.0
    %1007 = vmatpush1.xpose.msra.mxu0 0.0
    %1008 = vmatprep.subr.mxu0 0.0
    %1009 = vmatpush1.xpose.msra.mxu0 0.0
    %1010 = vmatprep.subr.mxu0 0.0
    %1011 = vmatpush1.xpose.msra.mxu0 0.0
    %1012 = vmatprep.subr.mxu0 0.0
    %1013 = vmatpush1.xpose.msra.mxu0 0.0
    %1014 = vmatprep.subr.mxu0 0.0
    %1015 = vmatpush1.xpose.msra.mxu0 0.0
    %1016 = vmatprep.subr.mxu0 0.0
    %1017 = vmatpush1.xpose.msra.mxu0 0.0
    %1018 = vmatprep.subr.mxu0 0.0
    %1019 = vmatpush1.xpose.msra.mxu0 0.0
    %1020 = vmatprep.subr.mxu0 0.0
    %1021 = vmatpush1.xpose.msra.mxu0 0.0
    %1022 = vmatprep.subr.mxu0 0.0
    %1023 = vmatpush1.xpose.msra.mxu0 0.0
    %1024 = vmatprep.subr.mxu0 0.0
    %1025 = vmatpush1.xpose.msra.mxu0 0.0
    %1026 = vmatprep.subr.mxu0 0.0
    %1027 = vmatpush1.xpose.msra.mxu0 0.0
    %1028 = vmatprep.subr.mxu0 0.0
    %1029 = vmatpush1.xpose.msra.mxu0 0.0
    %1030 = vmatprep.subr.mxu0 0.0
    %1031 = vmatpush1.xpose.msra.mxu0 0.0
    %1032 = vmatprep.subr.mxu0 0.0
    %1033 = vmatpush1.xpose.msra.mxu0 0.0
    %1034 = vmatprep.subr.mxu0 0.0
    %1035 = vmatpush1.xpose.msra.mxu0 0.0
    %1036 = vmatprep.mubr.f32.mxu0 0.0
    %1037 = vmatmul.mubr.f32.gmra.mrb[0].mxu0 %v964
    %v1038 = vpop.f32.mrb[0].mxu0
    %v1039 = vadd.f32 0.0, %v1038
    %v1040 = vpop.f32.mrb[0].mxu0
    %1041 = vmatprep.mubr.f32.mxu0 0.0
    %1042 = vmatmul.mubr.f32.gmra.mrb[0].mxu0 %v966
    %v1043 = vpop.f32.mrb[0].mxu0
    %v1044 = vadd.f32 0.0, %v1043
    %v1045 = vpop.f32.mrb[0].mxu0
    %1046 = vdwg.mxu0
    %v1047 = vmul.f32 %v1039, 0.35355338
    %v1048 = vmul.f32 %v1044, 0.35355338
    %v1049 = vadd.f32 %v1047, %v290
    %v1050 = vadd.f32 %v1048, %v291
    %v1051 = vsel %vm480, %v1049, -inf
    %1052 = vmax.xlane.f32.xlu0 %v1051
    %v1053 = vpop.xlane.xlu0 %1052
    %v1054 = vsel %vm480, %v1050, -inf
    %1055 = vmax.xlane.f32.xlu0 %v1054
    %v1056 = vpop.xlane.xlu0 %1055
    %v1057 = vsub.f32 %v1049, %v1053
    %v1058 = vsub.f32 %v1050, %v1056
    %v1059 = vmul.f32 %v1057, 1.442695
    %v1060 = vpow.pop %v1059
    %v1061 = vmul.f32 %v1058, 1.442695
    %v1062 = vpow.pop %v1061
    %v1063 = vsel %vm480, %v1060, 0.0
    %1064 = vadd.xlane.f32.xlu0 %v1063
    %v1065 = vpop.xlane.xlu0 %1064
    %v1066 = vsel %vm480, %v1062, 0.0
    %1067 = vadd.xlane.f32.xlu0 %v1066
    %v1068 = vpop.xlane.xlu0 %1067
    %v1069 = vrcp.pop %v1065
    %v1070 = vrcp.pop %v1068
    %v1071 = vmul.f32 %v1060, %v1069
    %v1072 = vmul.f32 %v1062, %v1070
    %1073 = vrot.lane.b32.xlu0 %v379, 48
    %v1074 = vpop.permute.xlu0 %1073
    %1075 = vrot.lane.b32.xlu0 %v384, 48
    %v1076 = vpop.permute.xlu0 %1075
    %v1080 = vsel %vm480, %v1071, 0
    %v1083 = vsel %vm480, %v1072, 0
    %1085 = vmatprep.subr.mxu0 0.0
    %1086 = vmatpush1.msra.mxu0 %v1074
    %1087 = vmatprep.subr.mxu0 0.0
    %1088 = vmatpush1.msra.mxu0 %v1076
    %1089 = vmatprep.subr.mxu0 0.0
    %1090 = vmatpush1.msra.mxu0 0.0
    %1091 = vmatprep.subr.mxu0 0.0
    %1092 = vmatpush1.msra.mxu0 0.0
    %1093 = vmatprep.subr.mxu0 0.0
    %1094 = vmatpush1.msra.mxu0 0.0
    %1095 = vmatprep.subr.mxu0 0.0
    %1096 = vmatpush1.msra.mxu0 0.0
    %1097 = vmatprep.subr.mxu0 0.0
    %1098 = vmatpush1.msra.mxu0 0.0
    %1099 = vmatprep.subr.mxu0 0.0
    %1100 = vmatpush1.msra.mxu0 0.0
    %1101 = vmatprep.subr.mxu0 0.0
    %1102 = vmatpush1.msra.mxu0 0.0
    %1103 = vmatprep.subr.mxu0 0.0
    %1104 = vmatpush1.msra.mxu0 0.0
    %1105 = vmatprep.subr.mxu0 0.0
    %1106 = vmatpush1.msra.mxu0 0.0
    %1107 = vmatprep.subr.mxu0 0.0
    %1108 = vmatpush1.msra.mxu0 0.0
    %1109 = vmatprep.subr.mxu0 0.0
    %1110 = vmatpush1.msra.mxu0 0.0
    %1111 = vmatprep.subr.mxu0 0.0
    %1112 = vmatpush1.msra.mxu0 0.0
    %1113 = vmatprep.subr.mxu0 0.0
    %1114 = vmatpush1.msra.mxu0 0.0
    %1115 = vmatprep.subr.mxu0 0.0
    %1116 = vmatpush1.msra.mxu0 0.0
    %1117 = vmatprep.subr.mxu0 0.0
    %1118 = vmatpush1.msra.mxu0 0.0
    %1119 = vmatprep.subr.mxu0 0.0
    %1120 = vmatpush1.msra.mxu0 0.0
    %1121 = vmatprep.subr.mxu0 0.0
    %1122 = vmatpush1.msra.mxu0 0.0
    %1123 = vmatprep.subr.mxu0 0.0
    %1124 = vmatpush1.msra.mxu0 0.0
    %1125 = vmatprep.subr.mxu0 0.0
    %1126 = vmatpush1.msra.mxu0 0.0
    %1127 = vmatprep.subr.mxu0 0.0
    %1128 = vmatpush1.msra.mxu0 0.0
    %1129 = vmatprep.subr.mxu0 0.0
    %1130 = vmatpush1.msra.mxu0 0.0
    %1131 = vmatprep.subr.mxu0 0.0
    %1132 = vmatpush1.msra.mxu0 0.0
    %1133 = vmatprep.subr.mxu0 0.0
    %1134 = vmatpush1.msra.mxu0 0.0
    %1135 = vmatprep.subr.mxu0 0.0
    %1136 = vmatpush1.msra.mxu0 0.0
    %1137 = vmatprep.subr.mxu0 0.0
    %1138 = vmatpush1.msra.mxu0 0.0
    %1139 = vmatprep.subr.mxu0 0.0
    %1140 = vmatpush1.msra.mxu0 0.0
    %1141 = vmatprep.subr.mxu0 0.0
    %1142 = vmatpush1.msra.mxu0 0.0
    %1143 = vmatprep.subr.mxu0 0.0
    %1144 = vmatpush1.msra.mxu0 0.0
    %1145 = vmatprep.subr.mxu0 0.0
    %1146 = vmatpush1.msra.mxu0 0.0
    %1147 = vmatprep.subr.mxu0 0.0
    %1148 = vmatpush1.msra.mxu0 0.0
    %1149 = vmatprep.mubr.f32.mxu0 0.0
    %1150 = vmatmul.mubr.f32.gmra.mrb[0].mxu0 %v1080
    %v1151 = vpop.f32.mrb[0].mxu0
    %v1152 = vadd.f32 0.0, %v1151
    %v1153 = vpop.f32.mrb[0].mxu0
    %1154 = vmatprep.mubr.f32.mxu0 0.0
    %1155 = vmatmul.mubr.f32.gmra.mrb[0].mxu0 %v1083
    %v1156 = vpop.f32.mrb[0].mxu0
    %v1157 = vadd.f32 0.0, %v1156
    %v1158 = vpop.f32.mrb[0].mxu0
    %1159 = vdwg.mxu0
    %v1161 = vsel %vm71, %v1152, 0
    %v1164 = vsel %vm71, %v1157, 0
    %1166 = vmatprep.subr.mxu0 0.0
    %1167 = vmatpush1.msra.mxu0 %v295
    %1168 = vmatprep.subr.mxu0 0.0
    %1169 = vmatpush1.msra.mxu0 0.0
    %1170 = vmatprep.subr.mxu0 0.0
    %1171 = vmatpush1.msra.mxu0 0.0
    %1172 = vmatprep.subr.mxu0 0.0
    %1173 = vmatpush1.msra.mxu0 0.0
    %1174 = vmatprep.subr.mxu0 0.0
    %1175 = vmatpush1.msra.mxu0 0.0
    %1176 = vmatprep.subr.mxu0 0.0
    %1177 = vmatpush1.msra.mxu0 0.0
    %1178 = vmatprep.subr.mxu0 0.0
    %1179 = vmatpush1.msra.mxu0 0.0
    %1180 = vmatprep.subr.mxu0 0.0
    %1181 = vmatpush1.msra.mxu0 0.0
    %1182 = vmatprep.subr.mxu0 0.0
    %1183 = vmatpush1.msra.mxu0 0.0
    %1184 = vmatprep.subr.mxu0 0.0
    %1185 = vmatpush1.msra.mxu0 0.0
    %1186 = vmatprep.subr.mxu0 0.0
    %1187 = vmatpush1.msra.mxu0 0.0
    %1188 = vmatprep.subr.mxu0 0.0
    %1189 = vmatpush1.msra.mxu0 0.0
    %1190 = vmatprep.subr.mxu0 0.0
    %1191 = vmatpush1.msra.mxu0 0.0
    %1192 = vmatprep.subr.mxu0 0.0
    %1193 = vmatpush1.msra.mxu0 0.0
    %1194 = vmatprep.subr.mxu0 0.0
    %1195 = vmatpush1.msra.mxu0 0.0
    %1196 = vmatprep.subr.mxu0 0.0
    %1197 = vmatpush1.msra.mxu0 0.0
    %1198 = vmatprep.subr.mxu0 0.0
    %1199 = vmatpush1.msra.mxu0 0.0
    %1200 = vmatprep.subr.mxu0 0.0
    %1201 = vmatpush1.msra.mxu0 0.0
    %1202 = vmatprep.subr.mxu0 0.0
    %1203 = vmatpush1.msra.mxu0 0.0
    %1204 = vmatprep.subr.mxu0 0.0
    %1205 = vmatpush1.msra.mxu0 0.0
    %1206 = vmatprep.subr.mxu0 0.0
    %1207 = vmatpush1.msra.mxu0 0.0
    %1208 = vmatprep.subr.mxu0 0.0
    %1209 = vmatpush1.msra.mxu0 0.0
    %1210 = vmatprep.subr.mxu0 0.0
    %1211 = vmatpush1.msra.mxu0 0.0
    %1212 = vmatprep.subr.mxu0 0.0
    %1213 = vmatpush1.msra.mxu0 0.0
    %1214 = vmatprep.subr.mxu0 0.0
    %1215 = vmatpush1.msra.mxu0 0.0
    %1216 = vmatprep.subr.mxu0 0.0
    %1217 = vmatpush1.msra.mxu0 0.0
    %1218 = vmatprep.subr.mxu0 0.0
    %1219 = vmatpush1.msra.mxu0 0.0
    %1220 = vmatprep.subr.mxu0 0.0
    %1221 = vmatpush1.msra.mxu0 0.0
    %1222 = vmatprep.subr.mxu0 0.0
    %1223 = vmatpush1.msra.mxu0 0.0
    %1224 = vmatprep.subr.mxu0 0.0
    %1225 = vmatpush1.msra.mxu0 0.0
    %1226 = vmatprep.subr.mxu0 0.0
    %1227 = vmatpush1.msra.mxu0 0.0
    %1228 = vmatprep.subr.mxu0 0.0
    %1229 = vmatpush1.msra.mxu0 0.0
    %1230 = vmatprep.mubr.f32.mxu0 0.0
    %1231 = vmatmul.mubr.f32.gmra.mrb[0].mxu0 %v1161
    %v1232 = vpop.f32.mrb[0].mxu0
    %v1233 = vadd.f32 0.0, %v1232
    %v1234 = vpop.f32.mrb[0].mxu0
    %1235 = vmatprep.mubr.f32.mxu0 0.0
    %1236 = vmatmul.mubr.f32.gmra.mrb[0].mxu0 %v1164
    %v1237 = vpop.f32.mrb[0].mxu0
    %v1238 = vadd.f32 0.0, %v1237
    %v1239 = vpop.f32.mrb[0].mxu0
    %1240 = vdwg.mxu0
    %v1241 = vadd.f32 %v948, %v1233
    %v1242 = vadd.f32 %v953, %v1238
    %1243 = vrot.lane.b32.xlu0 %v379, 104
    %v1244 = vpop.permute.xlu0 %1243
    %1245 = vrot.lane.b32.xlu0 %v384, 104
    %v1246 = vpop.permute.xlu0 %1245
    %1247 = vrot.lane.b32.xlu0 %v379, 72
    %v1248 = vpop.permute.xlu0 %1247
    %1249 = vrot.lane.b32.xlu0 %v384, 72
    %v1250 = vpop.permute.xlu0 %1249
    %v1251 = vsel %vm71, %v1244, 0
    %v1253 = vsel %vm71, %v1246, 0
    %v1255 = vsel %vm71, %v1248, 0
    %v1257 = vsel %vm71, %v1250, 0
    %1259 = vmatprep.subr.mxu0 0.0
    %1260 = vmatpush1.xpose.msra.mxu0 %v1255
    %1261 = vmatprep.subr.mxu0 0.0
    %1262 = vmatpush1.xpose.msra.mxu0 %v1257
    %1263 = vmatprep.subr.mxu0 0.0
    %1264 = vmatpush1.xpose.msra.mxu0 0.0
    %1265 = vmatprep.subr.mxu0 0.0
    %1266 = vmatpush1.xpose.msra.mxu0 0.0
    %1267 = vmatprep.subr.mxu0 0.0
    %1268 = vmatpush1.xpose.msra.mxu0 0.0
    %1269 = vmatprep.subr.mxu0 0.0
    %1270 = vmatpush1.xpose.msra.mxu0 0.0
    %1271 = vmatprep.subr.mxu0 0.0
    %1272 = vmatpush1.xpose.msra.mxu0 0.0
    %1273 = vmatprep.subr.mxu0 0.0
    %1274 = vmatpush1.xpose.msra.mxu0 0.0
    %1275 = vmatprep.subr.mxu0 0.0
    %1276 = vmatpush1.xpose.msra.mxu0 0.0
    %1277 = vmatprep.subr.mxu0 0.0
    %1278 = vmatpush1.xpose.msra.mxu0 0.0
    %1279 = vmatprep.subr.mxu0 0.0
    %1280 = vmatpush1.xpose.msra.mxu0 0.0
    %1281 = vmatprep.subr.mxu0 0.0
    %1282 = vmatpush1.xpose.msra.mxu0 0.0
    %1283 = vmatprep.subr.mxu0 0.0
    %1284 = vmatpush1.xpose.msra.mxu0 0.0
    %1285 = vmatprep.subr.mxu0 0.0
    %1286 = vmatpush1.xpose.msra.mxu0 0.0
    %1287 = vmatprep.subr.mxu0 0.0
    %1288 = vmatpush1.xpose.msra.mxu0 0.0
    %1289 = vmatprep.subr.mxu0 0.0
    %1290 = vmatpush1.xpose.msra.mxu0 0.0
    %1291 = vmatprep.subr.mxu0 0.0
    %1292 = vmatpush1.xpose.msra.mxu0 0.0
    %1293 = vmatprep.subr.mxu0 0.0
    %1294 = vmatpush1.xpose.msra.mxu0 0.0
    %1295 = vmatprep.subr.mxu0 0.0
    %1296 = vmatpush1.xpose.msra.mxu0 0.0
    %1297 = vmatprep.subr.mxu0 0.0
    %1298 = vmatpush1.xpose.msra.mxu0 0.0
    %1299 = vmatprep.subr.mxu0 0.0
    %1300 = vmatpush1.xpose.msra.mxu0 0.0
    %1301 = vmatprep.subr.mxu0 0.0
    %1302 = vmatpush1.xpose.msra.mxu0 0.0
    %1303 = vmatprep.subr.mxu0 0.0
    %1304 = vmatpush1.xpose.msra.mxu0 0.0
    %1305 = vmatprep.subr.mxu0 0.0
    %1306 = vmatpush1.xpose.msra.mxu0 0.0
    %1307 = vmatprep.subr.mxu0 0.0
    %1308 = vmatpush1.xpose.msra.mxu0 0.0
    %1309 = vmatprep.subr.mxu0 0.0
    %1310 = vmatpush1.xpose.msra.mxu0 0.0
    %1311 = vmatprep.subr.mxu0 0.0
    %1312 = vmatpush1.xpose.msra.mxu0 0.0
    %1313 = vmatprep.subr.mxu0 0.0
    %1314 = vmatpush1.xpose.msra.mxu0 0.0
    %1315 = vmatprep.subr.mxu0 0.0
    %1316 = vmatpush1.xpose.msra.mxu0 0.0
    %1317 = vmatprep.subr.mxu0 0.0
    %1318 = vmatpush1.xpose.msra.mxu0 0.0
    %1319 = vmatprep.subr.mxu0 0.0
    %1320 = vmatpush1.xpose.msra.mxu0 0.0
    %1321 = vmatprep.subr.mxu0 0.0
    %1322 = vmatpush1.xpose.msra.mxu0 0.0
    %1323 = vmatprep.mubr.f32.mxu0 0.0
    %1324 = vmatmul.mubr.f32.gmra.mrb[0].mxu0 %v1251
    %v1325 = vpop.f32.mrb[0].mxu0
    %v1326 = vadd.f32 0.0, %v1325
    %v1327 = vpop.f32.mrb[0].mxu0
    %1328 = vmatprep.mubr.f32.mxu0 0.0
    %1329 = vmatmul.mubr.f32.gmra.mrb[0].mxu0 %v1253
    %v1330 = vpop.f32.mrb[0].mxu0
    %v1331 = vadd.f32 0.0, %v1330
    %v1332 = vpop.f32.mrb[0].mxu0
    %1333 = vdwg.mxu0
    %v1334 = vmul.f32 %v1326, 0.35355338
    %v1335 = vmul.f32 %v1331, 0.35355338
    %v1336 = vadd.f32 %v1334, %v290
    %v1337 = vadd.f32 %v1335, %v291
    %v1338 = vsel %vm480, %v1336, -inf
    %1339 = vmax.xlane.f32.xlu0 %v1338
    %v1340 = vpop.xlane.xlu0 %1339
    %v1341 = vsel %vm480, %v1337, -inf
    %1342 = vmax.xlane.f32.xlu0 %v1341
    %v1343 = vpop.xlane.xlu0 %1342
    %v1344 = vsub.f32 %v1336, %v1340
    %v1345 = vsub.f32 %v1337, %v1343
    %v1346 = vmul.f32 %v1344, 1.442695
    %v1347 = vpow.pop %v1346
    %v1348 = vmul.f32 %v1345, 1.442695
    %v1349 = vpow.pop %v1348
    %v1350 = vsel %vm480, %v1347, 0.0
    %1351 = vadd.xlane.f32.xlu0 %v1350
    %v1352 = vpop.xlane.xlu0 %1351
    %v1353 = vsel %vm480, %v1349, 0.0
    %1354 = vadd.xlane.f32.xlu0 %v1353
    %v1355 = vpop.xlane.xlu0 %1354
    %v1356 = vrcp.pop %v1352
    %v1357 = vrcp.pop %v1355
    %v1358 = vmul.f32 %v1347, %v1356
    %v1359 = vmul.f32 %v1349, %v1357
    %1360 = vrot.lane.b32.xlu0 %v379, 40
    %v1361 = vpop.permute.xlu0 %1360
    %1362 = vrot.lane.b32.xlu0 %v384, 40
    %v1363 = vpop.permute.xlu0 %1362
    %v1367 = vsel %vm480, %v1358, 0
    %v1370 = vsel %vm480, %v1359, 0
    %1372 = vmatprep.subr.mxu0 0.0
    %1373 = vmatpush1.msra.mxu0 %v1361
    %1374 = vmatprep.subr.mxu0 0.0
    %1375 = vmatpush1.msra.mxu0 %v1363
    %1376 = vmatprep.subr.mxu0 0.0
    %1377 = vmatpush1.msra.mxu0 0.0
    %1378 = vmatprep.subr.mxu0 0.0
    %1379 = vmatpush1.msra.mxu0 0.0
    %1380 = vmatprep.subr.mxu0 0.0
    %1381 = vmatpush1.msra.mxu0 0.0
    %1382 = vmatprep.subr.mxu0 0.0
    %1383 = vmatpush1.msra.mxu0 0.0
    %1384 = vmatprep.subr.mxu0 0.0
    %1385 = vmatpush1.msra.mxu0 0.0
    %1386 = vmatprep.subr.mxu0 0.0
    %1387 = vmatpush1.msra.mxu0 0.0
    %1388 = vmatprep.subr.mxu0 0.0
    %1389 = vmatpush1.msra.mxu0 0.0
    %1390 = vmatprep.subr.mxu0 0.0
    %1391 = vmatpush1.msra.mxu0 0.0
    %1392 = vmatprep.subr.mxu0 0.0
    %1393 = vmatpush1.msra.mxu0 0.0
    %1394 = vmatprep.subr.mxu0 0.0
    %1395 = vmatpush1.msra.mxu0 0.0
    %1396 = vmatprep.subr.mxu0 0.0
    %1397 = vmatpush1.msra.mxu0 0.0
    %1398 = vmatprep.subr.mxu0 0.0
    %1399 = vmatpush1.msra.mxu0 0.0
    %1400 = vmatprep.subr.mxu0 0.0
    %1401 = vmatpush1.msra.mxu0 0.0
    %1402 = vmatprep.subr.mxu0 0.0
    %1403 = vmatpush1.msra.mxu0 0.0
    %1404 = vmatprep.subr.mxu0 0.0
    %1405 = vmatpush1.msra.mxu0 0.0
    %1406 = vmatprep.subr.mxu0 0.0
    %1407 = vmatpush1.msra.mxu0 0.0
    %1408 = vmatprep.subr.mxu0 0.0
    %1409 = vmatpush1.msra.mxu0 0.0
    %1410 = vmatprep.subr.mxu0 0.0
    %1411 = vmatpush1.msra.mxu0 0.0
    %1412 = vmatprep.subr.mxu0 0.0
    %1413 = vmatpush1.msra.mxu0 0.0
    %1414 = vmatprep.subr.mxu0 0.0
    %1415 = vmatpush1.msra.mxu0 0.0
    %1416 = vmatprep.subr.mxu0 0.0
    %1417 = vmatpush1.msra.mxu0 0.0
    %1418 = vmatprep.subr.mxu0 0.0
    %1419 = vmatpush1.msra.mxu0 0.0
    %1420 = vmatprep.subr.mxu0 0.0
    %1421 = vmatpush1.msra.mxu0 0.0
    %1422 = vmatprep.subr.mxu0 0.0
    %1423 = vmatpush1.msra.mxu0 0.0
    %1424 = vmatprep.subr.mxu0 0.0
    %1425 = vmatpush1.msra.mxu0 0.0
    %1426 = vmatprep.subr.mxu0 0.0
    %1427 = vmatpush1.msra.mxu0 0.0
    %1428 = vmatprep.subr.mxu0 0.0
    %1429 = vmatpush1.msra.mxu0 0.0
    %1430 = vmatprep.subr.mxu0 0.0
    %1431 = vmatpush1.msra.mxu0 0.0
    %1432 = vmatprep.subr.mxu0 0.0
    %1433 = vmatpush1.msra.mxu0 0.0
    %1434 = vmatprep.subr.mxu0 0.0
    %1435 = vmatpush1.msra.mxu0 0.0
    %1436 = vmatprep.mubr.f32.mxu0 0.0
    %1437 = vmatmul.mubr.f32.gmra.mrb[0].mxu0 %v1367
    %v1438 = vpop.f32.mrb[0].mxu0
    %v1439 = vadd.f32 0.0, %v1438
    %v1440 = vpop.f32.mrb[0].mxu0
    %1441 = vmatprep.mubr.f32.mxu0 0.0
    %1442 = vmatmul.mubr.f32.gmra.mrb[0].mxu0 %v1370
    %v1443 = vpop.f32.mrb[0].mxu0
    %v1444 = vadd.f32 0.0, %v1443
    %v1445 = vpop.f32.mrb[0].mxu0
    %1446 = vdwg.mxu0
    %v1448 = vsel %vm71, %v1439, 0
    %v1451 = vsel %vm71, %v1444, 0
    %1453 = vmatprep.subr.mxu0 0.0
    %1454 = vmatpush1.msra.mxu0 %v296
    %1455 = vmatprep.subr.mxu0 0.0
    %1456 = vmatpush1.msra.mxu0 0.0
    %1457 = vmatprep.subr.mxu0 0.0
    %1458 = vmatpush1.msra.mxu0 0.0
    %1459 = vmatprep.subr.mxu0 0.0
    %1460 = vmatpush1.msra.mxu0 0.0
    %1461 = vmatprep.subr.mxu0 0.0
    %1462 = vmatpush1.msra.mxu0 0.0
    %1463 = vmatprep.subr.mxu0 0.0
    %1464 = vmatpush1.msra.mxu0 0.0
    %1465 = vmatprep.subr.mxu0 0.0
    %1466 = vmatpush1.msra.mxu0 0.0
    %1467 = vmatprep.subr.mxu0 0.0
    %1468 = vmatpush1.msra.mxu0 0.0
    %1469 = vmatprep.subr.mxu0 0.0
    %1470 = vmatpush1.msra.mxu0 0.0
    %1471 = vmatprep.subr.mxu0 0.0
    %1472 = vmatpush1.msra.mxu0 0.0
    %1473 = vmatprep.subr.mxu0 0.0
    %1474 = vmatpush1.msra.mxu0 0.0
    %1475 = vmatprep.subr.mxu0 0.0
    %1476 = vmatpush1.msra.mxu0 0.0
    %1477 = vmatprep.subr.mxu0 0.0
    %1478 = vmatpush1.msra.mxu0 0.0
    %1479 = vmatprep.subr.mxu0 0.0
    %1480 = vmatpush1.msra.mxu0 0.0
    %1481 = vmatprep.subr.mxu0 0.0
    %1482 = vmatpush1.msra.mxu0 0.0
    %1483 = vmatprep.subr.mxu0 0.0
    %1484 = vmatpush1.msra.mxu0 0.0
    %1485 = vmatprep.subr.mxu0 0.0
    %1486 = vmatpush1.msra.mxu0 0.0
    %1487 = vmatprep.subr.mxu0 0.0
    %1488 = vmatpush1.msra.mxu0 0.0
    %1489 = vmatprep.subr.mxu0 0.0
    %1490 = vmatpush1.msra.mxu0 0.0
    %1491 = vmatprep.subr.mxu0 0.0
    %1492 = vmatpush1.msra.mxu0 0.0
    %1493 = vmatprep.subr.mxu0 0.0
    %1494 = vmatpush1.msra.mxu0 0.0
    %1495 = vmatprep.subr.mxu0 0.0
    %1496 = vmatpush1.msra.mxu0 0.0
    %1497 = vmatprep.subr.mxu0 0.0
    %1498 = vmatpush1.msra.mxu0 0.0
    %1499 = vmatprep.subr.mxu0 0.0
    %1500 = vmatpush1.msra.mxu0 0.0
    %1501 = vmatprep.subr.mxu0 0.0
    %1502 = vmatpush1.msra.mxu0 0.0
    %1503 = vmatprep.subr.mxu0 0.0
    %1504 = vmatpush1.msra.mxu0 0.0
    %1505 = vmatprep.subr.mxu0 0.0
    %1506 = vmatpush1.msra.mxu0 0.0
    %1507 = vmatprep.subr.mxu0 0.0
    %1508 = vmatpush1.msra.mxu0 0.0
    %1509 = vmatprep.subr.mxu0 0.0
    %1510 = vmatpush1.msra.mxu0 0.0
    %1511 = vmatprep.subr.mxu0 0.0
    %1512 = vmatpush1.msra.mxu0 0.0
    %1513 = vmatprep.subr.mxu0 0.0
    %1514 = vmatpush1.msra.mxu0 0.0
    %1515 = vmatprep.subr.mxu0 0.0
    %1516 = vmatpush1.msra.mxu0 0.0
    %1517 = vmatprep.mubr.f32.mxu0 0.0
    %1518 = vmatmul.mubr.f32.gmra.mrb[0].mxu0 %v1448
    %v1519 = vpop.f32.mrb[0].mxu0
    %v1520 = vadd.f32 0.0, %v1519
    %v1521 = vpop.f32.mrb[0].mxu0
    %1522 = vmatprep.mubr.f32.mxu0 0.0
    %1523 = vmatmul.mubr.f32.gmra.mrb[0].mxu0 %v1451
    %v1524 = vpop.f32.mrb[0].mxu0
    %v1525 = vadd.f32 0.0, %v1524
    %v1526 = vpop.f32.mrb[0].mxu0
    %1527 = vdwg.mxu0
    %v1528 = vadd.f32 %v1241, %v1520
    %v1529 = vadd.f32 %v1242, %v1525
    %v1530 = vlaneseq
    %v1531 = vshrl.u32 %v1530, 7
    %v1532 = vsub.s32 1, %v1531
    %v1533 = vrot.slane %v292, %v1532
    %v1534 = vadd.f32 %v1528, %v1533
    %v1535 = vadd.f32 %v1529, %v1533
    %v1536 = vadd.f32 %v145, %v1534
    %v1537 = vadd.f32 %v150, %v1535
    %v1538 = vsel %vm305, %v1536, 0.0
    %1539 = vadd.xlane.f32.xlu0 %v1538
    %v1540 = vpop.xlane.xlu0 %1539
    %v1541 = vsel %vm305, %v1537, 0.0
    %1542 = vadd.xlane.f32.xlu0 %v1541
    %v1543 = vpop.xlane.xlu0 %1542
    %v1544 = vrcp.pop 32.0
    %v1545 = vmul.f32 %v1540, %v1544
    %v1546 = vmul.f32 %v1543, %v1544
    %v1547 = vsub.f32 %v1536, %v1545
    %v1548 = vsub.f32 %v1537, %v1546
    %v1549 = vmul.f32 %v1547, %v1547
    %v1550 = vmul.f32 %v1548, %v1548
    %v1551 = vsel %vm305, %v1549, 0.0
    %1552 = vadd.xlane.f32.xlu0 %v1551
    %v1553 = vpop.xlane.xlu0 %1552
    %v1554 = vsel %vm305, %v1550, 0.0
    %1555 = vadd.xlane.f32.xlu0 %v1554
    %v1556 = vpop.xlane.xlu0 %1555
    %v1557 = vmul.f32 %v1553, %v1544
    %v1558 = vmul.f32 %v1556, %v1544
    %v1559 = vadd.f32 %v1557, 1e-05
    %v1560 = vadd.f32 %v1558, 1e-05
    %v1561 = vrsqrt.pop %v1559
    %v1562 = vrsqrt.pop %v1560
    %v1563 = vmul.f32 %v1547, %v1561
    %v1564 = vmul.f32 %v1548, %v1562
    %v1565 = vlaneseq
    %v1566 = vshrl.u32 %v1565, 7
    %v1567 = vsub.s32 2, %v1566
    %v1568 = vrot.slane %v292, %v1567
    %v1569 = vmul.f32 %v1563, %v1568
    %v1570 = vmul.f32 %v1564, %v1568
    %v1571 = vlaneseq
    %v1572 = vshrl.u32 %v1571, 7
    %v1573 = vsub.s32 3, %v1572
    %v1574 = vrot.slane %v292, %v1573
    %v1575 = vadd.f32 %v1569, %v1574
    %v1576 = vadd.f32 %v1570, %v1574
    %v1577 = vld [vmem:[%s5] sm:$0xff]
    %v1578 = vld [vmem:[%s5 + $0x8] sm:$0xff]
    %v1579 = vld [vmem:[%s5 + $0x10] sm:$0xff]
    %v1580 = vld [vmem:[%s5 + $0x18] sm:$0xff]
    %v1581 = vlaneseq
    %v1582 = vshrl.u32 %v1581, 7
    %v1583 = vsub.s32 4, %v1582
    %v1584 = vrot.slane %v292, %v1583
    %v1586 = vsel %vm305, %v1575, 0
    %v1589 = vsel %vm305, %v1576, 0
    %1591 = vmatprep.subr.mxu0 0.0
    %1592 = vmatpush1.msra.mxu0 %v1577
    %1593 = vmatprep.subr.mxu0 0.0
    %1594 = vmatpush1.msra.mxu0 %v1578
    %1595 = vmatprep.subr.mxu0 0.0
    %1596 = vmatpush1.msra.mxu0 %v1579
    %1597 = vmatprep.subr.mxu0 0.0
    %1598 = vmatpush1.msra.mxu0 %v1580
    %1599 = vmatprep.subr.mxu0 0.0
    %1600 = vmatpush1.msra.mxu0 0.0
    %1601 = vmatprep.subr.mxu0 0.0
    %1602 = vmatpush1.msra.mxu0 0.0
    %1603 = vmatprep.subr.mxu0 0.0
    %1604 = vmatpush1.msra.mxu0 0.0
    %1605 = vmatprep.subr.mxu0 0.0
    %1606 = vmatpush1.msra.mxu0 0.0
    %1607 = vmatprep.subr.mxu0 0.0
    %1608 = vmatpush1.msra.mxu0 0.0
    %1609 = vmatprep.subr.mxu0 0.0
    %1610 = vmatpush1.msra.mxu0 0.0
    %1611 = vmatprep.subr.mxu0 0.0
    %1612 = vmatpush1.msra.mxu0 0.0
    %1613 = vmatprep.subr.mxu0 0.0
    %1614 = vmatpush1.msra.mxu0 0.0
    %1615 = vmatprep.subr.mxu0 0.0
    %1616 = vmatpush1.msra.mxu0 0.0
    %1617 = vmatprep.subr.mxu0 0.0
    %1618 = vmatpush1.msra.mxu0 0.0
    %1619 = vmatprep.subr.mxu0 0.0
    %1620 = vmatpush1.msra.mxu0 0.0
    %1621 = vmatprep.subr.mxu0 0.0
    %1622 = vmatpush1.msra.mxu0 0.0
    %1623 = vmatprep.subr.mxu0 0.0
    %1624 = vmatpush1.msra.mxu0 0.0
    %1625 = vmatprep.subr.mxu0 0.0
    %1626 = vmatpush1.msra.mxu0 0.0
    %1627 = vmatprep.subr.mxu0 0.0
    %1628 = vmatpush1.msra.mxu0 0.0
    %1629 = vmatprep.subr.mxu0 0.0
    %1630 = vmatpush1.msra.mxu0 0.0
    %1631 = vmatprep.subr.mxu0 0.0
    %1632 = vmatpush1.msra.mxu0 0.0
    %1633 = vmatprep.subr.mxu0 0.0
    %1634 = vmatpush1.msra.mxu0 0.0
    %1635 = vmatprep.subr.mxu0 0.0
    %1636 = vmatpush1.msra.mxu0 0.0
    %1637 = vmatprep.subr.mxu0 0.0
    %1638 = vmatpush1.msra.mxu0 0.0
    %1639 = vmatprep.subr.mxu0 0.0
    %1640 = vmatpush1.msra.mxu0 0.0
    %1641 = vmatprep.subr.mxu0 0.0
    %1642 = vmatpush1.msra.mxu0 0.0
    %1643 = vmatprep.subr.mxu0 0.0
    %1644 = vmatpush1.msra.mxu0 0.0
    %1645 = vmatprep.subr.mxu0 0.0
    %1646 = vmatpush1.msra.mxu0 0.0
    %1647 = vmatprep.subr.mxu0 0.0
    %1648 = vmatpush1.msra.mxu0 0.0
    %1649 = vmatprep.subr.mxu0 0.0
    %1650 = vmatpush1.msra.mxu0 0.0
    %1651 = vmatprep.subr.mxu0 0.0
    %1652 = vmatpush1.msra.mxu0 0.0
    %1653 = vmatprep.subr.mxu0 0.0
    %1654 = vmatpush1.msra.mxu0 0.0
    %1655 = vmatprep.mubr.f32.mxu0 0.0
    %1656 = vmatmul.mubr.f32.gmra.mrb[0].mxu0 %v1586
    %v1657 = vpop.f32.mrb[0].mxu0
    %v1658 = vadd.f32 %v1584, %v1657
    %v1659 = vpop.f32.mrb[0].mxu0
    %1660 = vmatprep.mubr.f32.mxu0 0.0
    %1661 = vmatmul.mubr.f32.gmra.mrb[0].mxu0 %v1589
    %v1662 = vpop.f32.mrb[0].mxu0
    %v1663 = vadd.f32 %v1584, %v1662
    %v1664 = vpop.f32.mrb[0].mxu0
    %1665 = vdwg.mxu0
    %v1666 = vmax.f32 %v1658, 0.0
    %v1667 = vmax.f32 %v1663, 0.0
    %v1668 = vld [vmem:[%s6] sm:$0xff]
    %v1669 = vld [vmem:[%s6 + $0x8] sm:$0xff]
    %v1670 = vld [vmem:[%s6 + $0x10] sm:$0xff]
    %v1671 = vld [vmem:[%s6 + $0x18] sm:$0xff]
    %v1672 = vld [vmem:[%s6 + $0x20] sm:$0xff]
    %v1673 = vld [vmem:[%s6 + $0x28] sm:$0xff]
    %v1674 = vld [vmem:[%s6 + $0x30] sm:$0xff]
    %v1675 = vld [vmem:[%s6 + $0x38] sm:$0xff]
    %v1676 = vlaneseq
    %v1677 = vshrl.u32 %v1676, 7
    %v1678 = vsub.s32 5, %v1677
    %v1679 = vrot.slane %v292, %v1678
    %vm1680 = vcmask 523264
    %v1682 = vsel %vm1680, %v1666, 0
    %v1685 = vsel %vm1680, %v1667, 0
    %1687 = vmatprep.subr.mxu0 0.0
    %1688 = vmatpush1.msra.mxu0 %v1668
    %1689 = vmatprep.subr.mxu0 0.0
    %1690 = vmatpush1.msra.mxu0 %v1669
    %1691 = vmatprep.subr.mxu0 0.0
    %1692 = vmatpush1.msra.mxu0 %v1670
    %1693 = vmatprep.subr.mxu0 0.0
    %1694 = vmatpush1.msra.mxu0 %v1671
    %1695 = vmatprep.subr.mxu0 0.0
    %1696 = vmatpush1.msra.mxu0 %v1672
    %1697 = vmatprep.subr.mxu0 0.0
    %1698 = vmatpush1.msra.mxu0 %v1673
    %1699 = vmatprep.subr.mxu0 0.0
    %1700 = vmatpush1.msra.mxu0 %v1674
    %1701 = vmatprep.subr.mxu0 0.0
    %1702 = vmatpush1.msra.mxu0 %v1675
    %1703 = vmatprep.subr.mxu0 0.0
    %1704 = vmatpush1.msra.mxu0 0.0
    %1705 = vmatprep.subr.mxu0 0.0
    %1706 = vmatpush1.msra.mxu0 0.0
    %1707 = vmatprep.subr.mxu0 0.0
    %1708 = vmatpush1.msra.mxu0 0.0
    %1709 = vmatprep.subr.mxu0 0.0
    %1710 = vmatpush1.msra.mxu0 0.0
    %1711 = vmatprep.subr.mxu0 0.0
    %1712 = vmatpush1.msra.mxu0 0.0
    %1713 = vmatprep.subr.mxu0 0.0
    %1714 = vmatpush1.msra.mxu0 0.0
    %1715 = vmatprep.subr.mxu0 0.0
    %1716 = vmatpush1.msra.mxu0 0.0
    %1717 = vmatprep.subr.mxu0 0.0
    %1718 = vmatpush1.msra.mxu0 0.0
    %1719 = vmatprep.subr.mxu0 0.0
    %1720 = vmatpush1.msra.mxu0 0.0
    %1721 = vmatprep.subr.mxu0 0.0
    %1722 = vmatpush1.msra.mxu0 0.0
    %1723 = vmatprep.subr.mxu0 0.0
    %1724 = vmatpush1.msra.mxu0 0.0
    %1725 = vmatprep.subr.mxu0 0.0
    %1726 = vmatpush1.msra.mxu0 0.0
    %1727 = vmatprep.subr.mxu0 0.0
    %1728 = vmatpush1.msra.mxu0 0.0
    %1729 = vmatprep.subr.mxu0 0.0
    %1730 = vmatpush1.msra.mxu0 0.0
    %1731 = vmatprep.subr.mxu0 0.0
    %1732 = vmatpush1.msra.mxu0 0.0
    %1733 = vmatprep.subr.mxu0 0.0
    %1734 = vmatpush1.msra.mxu0 0.0
    %1735 = vmatprep.subr.mxu0 0.0
    %1736 = vmatpush1.msra.mxu0 0.0
    %1737 = vmatprep.subr.mxu0 0.0
    %1738 = vmatpush1.msra.mxu0 0.0
    %1739 = vmatprep.subr.mxu0 0.0
    %1740 = vmatpush1.msra.mxu0 0.0
    %1741 = vmatprep.subr.mxu0 0.0
    %1742 = vmatpush1.msra.mxu0 0.0
    %1743 = vmatprep.subr.mxu0 0.0
    %1744 = vmatpush1.msra.mxu0 0.0
    %1745 = vmatprep.subr.mxu0 0.0
    %1746 = vmatpush1.msra.mxu0 0.0
    %1747 = vmatprep.subr.mxu0 0.0
    %1748 = vmatpush1.msra.mxu0 0.0
    %1749 = vmatprep.subr.mxu0 0.0
    %1750 = vmatpush1.msra.mxu0 0.0
    %1751 = vmatprep.mubr.f32.mxu0 0.0
    %1752 = vmatmul.mubr.f32.gmra.mrb[0].mxu0 %v1682
    %v1753 = vpop.f32.mrb[0].mxu0
    %v1754 = vadd.f32 %v1679, %v1753
    %v1755 = vpop.f32.mrb[0].mxu0
    %1756 = vmatprep.mubr.f32.mxu0 0.0
    %1757 = vmatmul.mubr.f32.gmra.mrb[0].mxu0 %v1685
    %v1758 = vpop.f32.mrb[0].mxu0
    %v1759 = vadd.f32 %v1679, %v1758
    %v1760 = vpop.f32.mrb[0].mxu0
    %1761 = vdwg.mxu0
    %v1762 = vadd.f32 %v1575, %v1754
    %v1763 = vadd.f32 %v1576, %v1759
    %v1764 = vsel %vm305, %v1762, 0.0
    %1765 = vadd.xlane.f32.xlu0 %v1764
    %v1766 = vpop.xlane.xlu0 %1765
    %v1767 = vsel %vm305, %v1763, 0.0
    %1768 = vadd.xlane.f32.xlu0 %v1767
    %v1769 = vpop.xlane.xlu0 %1768
    %v1770 = vmul.f32 %v1766, %v1544
    %v1771 = vmul.f32 %v1769, %v1544
    %v1772 = vsub.f32 %v1762, %v1770
    %v1773 = vsub.f32 %v1763, %v1771
    %v1774 = vmul.f32 %v1772, %v1772
    %v1775 = vmul.f32 %v1773, %v1773
    %v1776 = vsel %vm305, %v1774, 0.0
    %1777 = vadd.xlane.f32.xlu0 %v1776
    %v1778 = vpop.xlane.xlu0 %1777
    %v1779 = vsel %vm305, %v1775, 0.0
    %1780 = vadd.xlane.f32.xlu0 %v1779
    %v1781 = vpop.xlane.xlu0 %1780
    %v1782 = vmul.f32 %v1778, %v1544
    %v1783 = vmul.f32 %v1781, %v1544
    %v1784 = vadd.f32 %v1782, 1e-05
    %v1785 = vadd.f32 %v1783, 1e-05
    %v1786 = vrsqrt.pop %v1784
    %v1787 = vrsqrt.pop %v1785
    %v1788 = vmul.f32 %v1772, %v1786
    %v1789 = vmul.f32 %v1773, %v1787
    %v1790 = vlaneseq
    %v1791 = vshrl.u32 %v1790, 7
    %v1792 = vsub.s32 6, %v1791
    %v1793 = vrot.slane %v292, %v1792
    %v1794 = vmul.f32 %v1788, %v1793
    %v1795 = vmul.f32 %v1789, %v1793
    %v1796 = vlaneseq
    %v1797 = vshrl.u32 %v1796, 7
    %v1798 = vsub.s32 7, %v1797
    %v1799 = vrot.slane %v292, %v1798
    %v1800 = vadd.f32 %v1794, %v1799
    %v1801 = vadd.f32 %v1795, %v1799
    %s1802 = scalar_lea.vmem %s7, 8
    %v1803 = vld [vmem:[%s1802] sm:$0xff]
    %s1804 = scalar_lea.vmem %s4, 32
    %v1805 = vld [vmem:[%s1804] sm:$0xff]
    %v1806 = vld [vmem:[%s1804 + $0x8] sm:$0xff]
    %v1807 = vld [vmem:[%s1804 + $0x10] sm:$0xff]
    %v1808 = vld [vmem:[%s1804 + $0x18] sm:$0xff]
    %s1809 = scalar_lea.vmem %s3, 32
    %v1810 = vld [vmem:[%s1809] sm:$0xff]
    %v1811 = vld [vmem:[%s1809 + $0x8] sm:$0xff]
    %v1812 = vld [vmem:[%s1809 + $0x10] sm:$0xff]
    %v1813 = vld [vmem:[%s1809 + $0x18] sm:$0xff]
    %v1814 = vlaneseq
    %v1815 = vshrl.u32 %v1814, 7
    %v1816 = vsub.s32 0, %v1815
    %v1817 = vrot.slane %v1803, %v1816
    %v1819 = vsel %vm305, %v1800, 0
    %v1822 = vsel %vm305, %v1801, 0
    %1824 = vmatprep.subr.mxu0 0.0
    %1825 = vmatpush1.msra.mxu0 %v1810
    %1826 = vmatprep.subr.mxu0 0.0
    %1827 = vmatpush1.msra.mxu0 %v1811
    %1828 = vmatprep.subr.mxu0 0.0
    %1829 = vmatpush1.msra.mxu0 %v1812
    %1830 = vmatprep.subr.mxu0 0.0
    %1831 = vmatpush1.msra.mxu0 %v1813
    %1832 = vmatprep.subr.mxu0 0.0
    %1833 = vmatpush1.msra.mxu0 0.0
    %1834 = vmatprep.subr.mxu0 0.0
    %1835 = vmatpush1.msra.mxu0 0.0
    %1836 = vmatprep.subr.mxu0 0.0
    %1837 = vmatpush1.msra.mxu0 0.0
    %1838 = vmatprep.subr.mxu0 0.0
    %1839 = vmatpush1.msra.mxu0 0.0
    %1840 = vmatprep.subr.mxu0 0.0
    %1841 = vmatpush1.msra.mxu0 0.0
    %1842 = vmatprep.subr.mxu0 0.0
    %1843 = vmatpush1.msra.mxu0 0.0
    %1844 = vmatprep.subr.mxu0 0.0
    %1845 = vmatpush1.msra.mxu0 0.0
    %1846 = vmatprep.subr.mxu0 0.0
    %1847 = vmatpush1.msra.mxu0 0.0
    %1848 = vmatprep.subr.mxu0 0.0
    %1849 = vmatpush1.msra.mxu0 0.0
    %1850 = vmatprep.subr.mxu0 0.0
    %1851 = vmatpush1.msra.mxu0 0.0
    %1852 = vmatprep.subr.mxu0 0.0
    %1853 = vmatpush1.msra.mxu0 0.0
    %1854 = vmatprep.subr.mxu0 0.0
    %1855 = vmatpush1.msra.mxu0 0.0
    %1856 = vmatprep.subr.mxu0 0.0
    %1857 = vmatpush1.msra.mxu0 0.0
    %1858 = vmatprep.subr.mxu0 0.0
    %1859 = vmatpush1.msra.mxu0 0.0
    %1860 = vmatprep.subr.mxu0 0.0
    %1861 = vmatpush1.msra.mxu0 0.0
    %1862 = vmatprep.subr.mxu0 0.0
    %1863 = vmatpush1.msra.mxu0 0.0
    %1864 = vmatprep.subr.mxu0 0.0
    %1865 = vmatpush1.msra.mxu0 0.0
    %1866 = vmatprep.subr.mxu0 0.0
    %1867 = vmatpush1.msra.mxu0 0.0
    %1868 = vmatprep.subr.mxu0 0.0
    %1869 = vmatpush1.msra.mxu0 0.0
    %1870 = vmatprep.subr.mxu0 0.0
    %1871 = vmatpush1.msra.mxu0 0.0
    %1872 = vmatprep.subr.mxu0 0.0
    %1873 = vmatpush1.msra.mxu0 0.0
    %1874 = vmatprep.subr.mxu0 0.0
    %1875 = vmatpush1.msra.mxu0 0.0
    %1876 = vmatprep.subr.mxu0 0.0
    %1877 = vmatpush1.msra.mxu0 0.0
    %1878 = vmatprep.subr.mxu0 0.0
    %1879 = vmatpush1.msra.mxu0 0.0
    %1880 = vmatprep.subr.mxu0 0.0
    %1881 = vmatpush1.msra.mxu0 0.0
    %1882 = vmatprep.subr.mxu0 0.0
    %1883 = vmatpush1.msra.mxu0 0.0
    %1884 = vmatprep.subr.mxu0 0.0
    %1885 = vmatpush1.msra.mxu0 0.0
    %1886 = vmatprep.subr.mxu0 0.0
    %1887 = vmatpush1.msra.mxu0 0.0
    %1888 = vmatprep.mubr.f32.mxu0 0.0
    %1889 = vmatmul.mubr.f32.gmra.mrb[0].mxu0 %v1819
    %v1890 = vpop.f32.mrb[0].mxu0
    %v1891 = vadd.f32 %v1817, %v1890
    %v1892 = vpop.f32.mrb[0].mxu0
    %1893 = vmatprep.mubr.f32.mxu0 0.0
    %1894 = vmatmul.mubr.f32.gmra.mrb[0].mxu0 %v1822
    %v1895 = vpop.f32.mrb[0].mxu0
    %v1896 = vadd.f32 %v1817, %v1895
    %v1897 = vpop.f32.mrb[0].mxu0
    %1898 = vdwg.mxu0
    %1901 = vrot.lane.b32.xlu0 %v1891, 96
    %v1902 = vpop.permute.xlu0 %1901
    %1903 = vrot.lane.b32.xlu0 %v1896, 96
    %v1904 = vpop.permute.xlu0 %1903
    %v1905 = vsel %vm71, %v1891, 0
    %v1907 = vsel %vm71, %v1896, 0
    %v1909 = vsel %vm71, %v1902, 0
    %v1911 = vsel %vm71, %v1904, 0
    %1913 = vmatprep.subr.mxu0 0.0
    %1914 = vmatpush1.xpose.msra.mxu0 %v1909
    %1915 = vmatprep.subr.mxu0 0.0
    %1916 = vmatpush1.xpose.msra.mxu0 %v1911
    %1917 = vmatprep.subr.mxu0 0.0
    %1918 = vmatpush1.xpose.msra.mxu0 0.0
    %1919 = vmatprep.subr.mxu0 0.0
    %1920 = vmatpush1.xpose.msra.mxu0 0.0
    %1921 = vmatprep.subr.mxu0 0.0
    %1922 = vmatpush1.xpose.msra.mxu0 0.0
    %1923 = vmatprep.subr.mxu0 0.0
    %1924 = vmatpush1.xpose.msra.mxu0 0.0
    %1925 = vmatprep.subr.mxu0 0.0
    %1926 = vmatpush1.xpose.msra.mxu0 0.0
    %1927 = vmatprep.subr.mxu0 0.0
    %1928 = vmatpush1.xpose.msra.mxu0 0.0
    %1929 = vmatprep.subr.mxu0 0.0
    %1930 = vmatpush1.xpose.msra.mxu0 0.0
    %1931 = vmatprep.subr.mxu0 0.0
    %1932 = vmatpush1.xpose.msra.mxu0 0.0
    %1933 = vmatprep.subr.mxu0 0.0
    %1934 = vmatpush1.xpose.msra.mxu0 0.0
    %1935 = vmatprep.subr.mxu0 0.0
    %1936 = vmatpush1.xpose.msra.mxu0 0.0
    %1937 = vmatprep.subr.mxu0 0.0
    %1938 = vmatpush1.xpose.msra.mxu0 0.0
    %1939 = vmatprep.subr.mxu0 0.0
    %1940 = vmatpush1.xpose.msra.mxu0 0.0
    %1941 = vmatprep.subr.mxu0 0.0
    %1942 = vmatpush1.xpose.msra.mxu0 0.0
    %1943 = vmatprep.subr.mxu0 0.0
    %1944 = vmatpush1.xpose.msra.mxu0 0.0
    %1945 = vmatprep.subr.mxu0 0.0
    %1946 = vmatpush1.xpose.msra.mxu0 0.0
    %1947 = vmatprep.subr.mxu0 0.0
    %1948 = vmatpush1.xpose.msra.mxu0 0.0
    %1949 = vmatprep.subr.mxu0 0.0
    %1950 = vmatpush1.xpose.msra.mxu0 0.0
    %1951 = vmatprep.subr.mxu0 0.0
    %1952 = vmatpush1.xpose.msra.mxu0 0.0
    %1953 = vmatprep.subr.mxu0 0.0
    %1954 = vmatpush1.xpose.msra.mxu0 0.0
    %1955 = vmatprep.subr.mxu0 0.0
    %1956 = vmatpush1.xpose.msra.mxu0 0.0
    %1957 = vmatprep.subr.mxu0 0.0
    %1958 = vmatpush1.xpose.msra.mxu0 0.0
    %1959 = vmatprep.subr.mxu0 0.0
    %1960 = vmatpush1.xpose.msra.mxu0 0.0
    %1961 = vmatprep.subr.mxu0 0.0
    %1962 = vmatpush1.xpose.msra.mxu0 0.0
    %1963 = vmatprep.subr.mxu0 0.0
    %1964 = vmatpush1.xpose.msra.mxu0 0.0
    %1965 = vmatprep.subr.mxu0 0.0
    %1966 = vmatpush1.xpose.msra.mxu0 0.0
    %1967 = vmatprep.subr.mxu0 0.0
    %1968 = vmatpush1.xpose.msra.mxu0 0.0
    %1969 = vmatprep.subr.mxu0 0.0
    %1970 = vmatpush1.xpose.msra.mxu0 0.0
    %1971 = vmatprep.subr.mxu0 0.0
    %1972 = vmatpush1.xpose.msra.mxu0 0.0
    %1973 = vmatprep.subr.mxu0 0.0
    %1974 = vmatpush1.xpose.msra.mxu0 0.0
    %1975 = vmatprep.subr.mxu0 0.0
    %1976 = vmatpush1.xpose.msra.mxu0 0.0
    %1977 = vmatprep.mubr.f32.mxu0 0.0
    %1978 = vmatmul.mubr.f32.gmra.mrb[0].mxu0 %v1905
    %v1979 = vpop.f32.mrb[0].mxu0
    %v1980 = vadd.f32 0.0, %v1979
    %v1981 = vpop.f32.mrb[0].mxu0
    %1982 = vmatprep.mubr.f32.mxu0 0.0
    %1983 = vmatmul.mubr.f32.gmra.mrb[0].mxu0 %v1907
    %v1984 = vpop.f32.mrb[0].mxu0
    %v1985 = vadd.f32 0.0, %v1984
    %v1986 = vpop.f32.mrb[0].mxu0
    %1987 = vdwg.mxu0
    %v1988 = vmul.f32 %v1980, 0.35355338
    %v1989 = vmul.f32 %v1985, 0.35355338
    %v1990 = vadd.f32 %v1988, %v290
    %v1991 = vadd.f32 %v1989, %v291
    %v1992 = vsel %vm480, %v1990, -inf
    %1993 = vmax.xlane.f32.xlu0 %v1992
    %v1994 = vpop.xlane.xlu0 %1993
    %v1995 = vsel %vm480, %v1991, -inf
    %1996 = vmax.xlane.f32.xlu0 %v1995
    %v1997 = vpop.xlane.xlu0 %1996
    %v1998 = vsub.f32 %v1990, %v1994
    %v1999 = vsub.f32 %v1991, %v1997
    %v2000 = vmul.f32 %v1998, 1.442695
    %v2001 = vpow.pop %v2000
    %v2002 = vmul.f32 %v1999, 1.442695
    %v2003 = vpow.pop %v2002
    %v2004 = vsel %vm480, %v2001, 0.0
    %2005 = vadd.xlane.f32.xlu0 %v2004
    %v2006 = vpop.xlane.xlu0 %2005
    %v2007 = vsel %vm480, %v2003, 0.0
    %2008 = vadd.xlane.f32.xlu0 %v2007
    %v2009 = vpop.xlane.xlu0 %2008
    %v2010 = vrcp.pop %v2006
    %v2011 = vrcp.pop %v2009
    %v2012 = vmul.f32 %v2001, %v2010
    %v2013 = vmul.f32 %v2003, %v2011
    %2014 = vrot.lane.b32.xlu0 %v1891, 64
    %v2015 = vpop.permute.xlu0 %2014
    %2016 = vrot.lane.b32.xlu0 %v1896, 64
    %v2017 = vpop.permute.xlu0 %2016
    %v2021 = vsel %vm480, %v2012, 0
    %v2024 = vsel %vm480, %v2013, 0
    %2026 = vmatprep.subr.mxu0 0.0
    %2027 = vmatpush1.msra.mxu0 %v2015
    %2028 = vmatprep.subr.mxu0 0.0
    %2029 = vmatpush1.msra.mxu0 %v2017
    %2030 = vmatprep.subr.mxu0 0.0
    %2031 = vmatpush1.msra.mxu0 0.0
    %2032 = vmatprep.subr.mxu0 0.0
    %2033 = vmatpush1.msra.mxu0 0.0
    %2034 = vmatprep.subr.mxu0 0.0
    %2035 = vmatpush1.msra.mxu0 0.0
    %2036 = vmatprep.subr.mxu0 0.0
    %2037 = vmatpush1.msra.mxu0 0.0
    %2038 = vmatprep.subr.mxu0 0.0
    %2039 = vmatpush1.msra.mxu0 0.0
    %2040 = vmatprep.subr.mxu0 0.0
    %2041 = vmatpush1.msra.mxu0 0.0
    %2042 = vmatprep.subr.mxu0 0.0
    %2043 = vmatpush1.msra.mxu0 0.0
    %2044 = vmatprep.subr.mxu0 0.0
    %2045 = vmatpush1.msra.mxu0 0.0
    %2046 = vmatprep.subr.mxu0 0.0
    %2047 = vmatpush1.msra.mxu0 0.0
    %2048 = vmatprep.subr.mxu0 0.0
    %2049 = vmatpush1.msra.mxu0 0.0
    %2050 = vmatprep.subr.mxu0 0.0
    %2051 = vmatpush1.msra.mxu0 0.0
    %2052 = vmatprep.subr.mxu0 0.0
    %2053 = vmatpush1.msra.mxu0 0.0
    %2054 = vmatprep.subr.mxu0 0.0
    %2055 = vmatpush1.msra.mxu0 0.0
    %2056 = vmatprep.subr.mxu0 0.0
    %2057 = vmatpush1.msra.mxu0 0.0
    %2058 = vmatprep.subr.mxu0 0.0
    %2059 = vmatpush1.msra.mxu0 0.0
    %2060 = vmatprep.subr.mxu0 0.0
    %2061 = vmatpush1.msra.mxu0 0.0
    %2062 = vmatprep.subr.mxu0 0.0
    %2063 = vmatpush1.msra.mxu0 0.0
    %2064 = vmatprep.subr.mxu0 0.0
    %2065 = vmatpush1.msra.mxu0 0.0
    %2066 = vmatprep.subr.mxu0 0.0
    %2067 = vmatpush1.msra.mxu0 0.0
    %2068 = vmatprep.subr.mxu0 0.0
    %2069 = vmatpush1.msra.mxu0 0.0
    %2070 = vmatprep.subr.mxu0 0.0
    %2071 = vmatpush1.msra.mxu0 0.0
    %2072 = vmatprep.subr.mxu0 0.0
    %2073 = vmatpush1.msra.mxu0 0.0
    %2074 = vmatprep.subr.mxu0 0.0
    %2075 = vmatpush1.msra.mxu0 0.0
    %2076 = vmatprep.subr.mxu0 0.0
    %2077 = vmatpush1.msra.mxu0 0.0
    %2078 = vmatprep.subr.mxu0 0.0
    %2079 = vmatpush1.msra.mxu0 0.0
    %2080 = vmatprep.subr.mxu0 0.0
    %2081 = vmatpush1.msra.mxu0 0.0
    %2082 = vmatprep.subr.mxu0 0.0
    %2083 = vmatpush1.msra.mxu0 0.0
    %2084 = vmatprep.subr.mxu0 0.0
    %2085 = vmatpush1.msra.mxu0 0.0
    %2086 = vmatprep.subr.mxu0 0.0
    %2087 = vmatpush1.msra.mxu0 0.0
    %2088 = vmatprep.subr.mxu0 0.0
    %2089 = vmatpush1.msra.mxu0 0.0
    %2090 = vmatprep.mubr.f32.mxu0 0.0
    %2091 = vmatmul.mubr.f32.gmra.mrb[0].mxu0 %v2021
    %v2092 = vpop.f32.mrb[0].mxu0
    %v2093 = vadd.f32 0.0, %v2092
    %v2094 = vpop.f32.mrb[0].mxu0
    %2095 = vmatprep.mubr.f32.mxu0 0.0
    %2096 = vmatmul.mubr.f32.gmra.mrb[0].mxu0 %v2024
    %v2097 = vpop.f32.mrb[0].mxu0
    %v2098 = vadd.f32 0.0, %v2097
    %v2099 = vpop.f32.mrb[0].mxu0
    %2100 = vdwg.mxu0
    %2101 = vrot.lane.b32.xlu0 %v1891, 120
    %v2102 = vpop.permute.xlu0 %2101
    %2103 = vrot.lane.b32.xlu0 %v1896, 120
    %v2104 = vpop.permute.xlu0 %2103
    %2105 = vrot.lane.b32.xlu0 %v1891, 88
    %v2106 = vpop.permute.xlu0 %2105
    %2107 = vrot.lane.b32.xlu0 %v1896, 88
    %v2108 = vpop.permute.xlu0 %2107
    %v2109 = vsel %vm71, %v2102, 0
    %v2111 = vsel %vm71, %v2104, 0
    %v2113 = vsel %vm71, %v2106, 0
    %v2115 = vsel %vm71, %v2108, 0
    %2117 = vmatprep.subr.mxu0 0.0
    %2118 = vmatpush1.xpose.msra.mxu0 %v2113
    %2119 = vmatprep.subr.mxu0 0.0
    %2120 = vmatpush1.xpose.msra.mxu0 %v2115
    %2121 = vmatprep.subr.mxu0 0.0
    %2122 = vmatpush1.xpose.msra.mxu0 0.0
    %2123 = vmatprep.subr.mxu0 0.0
    %2124 = vmatpush1.xpose.msra.mxu0 0.0
    %2125 = vmatprep.subr.mxu0 0.0
    %2126 = vmatpush1.xpose.msra.mxu0 0.0
    %2127 = vmatprep.subr.mxu0 0.0
    %2128 = vmatpush1.xpose.msra.mxu0 0.0
    %2129 = vmatprep.subr.mxu0 0.0
    %2130 = vmatpush1.xpose.msra.mxu0 0.0
    %2131 = vmatprep.subr.mxu0 0.0
    %2132 = vmatpush1.xpose.msra.mxu0 0.0
    %2133 = vmatprep.subr.mxu0 0.0
    %2134 = vmatpush1.xpose.msra.mxu0 0.0
    %2135 = vmatprep.subr.mxu0 0.0
    %2136 = vmatpush1.xpose.msra.mxu0 0.0
    %2137 = vmatprep.subr.mxu0 0.0
    %2138 = vmatpush1.xpose.msra.mxu0 0.0
    %2139 = vmatprep.subr.mxu0 0.0
    %2140 = vmatpush1.xpose.msra.mxu0 0.0
    %2141 = vmatprep.subr.mxu0 0.0
    %2142 = vmatpush1.xpose.msra.mxu0 0.0
    %2143 = vmatprep.subr.mxu0 0.0
    %2144 = vmatpush1.xpose.msra.mxu0 0.0
    %2145 = vmatprep.subr.mxu0 0.0
    %2146 = vmatpush1.xpose.msra.mxu0 0.0
    %2147 = vmatprep.subr.mxu0 0.0
    %2148 = vmatpush1.xpose.msra.mxu0 0.0
    %2149 = vmatprep.subr.mxu0 0.0
    %2150 = vmatpush1.xpose.msra.mxu0 0.0
    %2151 = vmatprep.subr.mxu0 0.0
    %2152 = vmatpush1.xpose.msra.mxu0 0.0
    %2153 = vmatprep.subr.mxu0 0.0
    %2154 = vmatpush1.xpose.msra.mxu0 0.0
    %2155 = vmatprep.subr.mxu0 0.0
    %2156 = vmatpush1.xpose.msra.mxu0 0.0
    %2157 = vmatprep.subr.mxu0 0.0
    %2158 = vmatpush1.xpose.msra.mxu0 0.0
    %2159 = vmatprep.subr.mxu0 0.0
    %2160 = vmatpush1.xpose.msra.mxu0 0.0
    %2161 = vmatprep.subr.mxu0 0.0
    %2162 = vmatpush1.xpose.msra.mxu0 0.0
    %2163 = vmatprep.subr.mxu0 0.0
    %2164 = vmatpush1.xpose.msra.mxu0 0.0
    %2165 = vmatprep.subr.mxu0 0.0
    %2166 = vmatpush1.xpose.msra.mxu0 0.0
    %2167 = vmatprep.subr.mxu0 0.0
    %2168 = vmatpush1.xpose.msra.mxu0 0.0
    %2169 = vmatprep.subr.mxu0 0.0
    %2170 = vmatpush1.xpose.msra.mxu0 0.0
    %2171 = vmatprep.subr.mxu0 0.0
    %2172 = vmatpush1.xpose.msra.mxu0 0.0
    %2173 = vmatprep.subr.mxu0 0.0
    %2174 = vmatpush1.xpose.msra.mxu0 0.0
    %2175 = vmatprep.subr.mxu0 0.0
    %2176 = vmatpush1.xpose.msra.mxu0 0.0
    %2177 = vmatprep.subr.mxu0 0.0
    %2178 = vmatpush1.xpose.msra.mxu0 0.0
    %2179 = vmatprep.subr.mxu0 0.0
    %2180 = vmatpush1.xpose.msra.mxu0 0.0
    %2181 = vmatprep.mubr.f32.mxu0 0.0
    %2182 = vmatmul.mubr.f32.gmra.mrb[0].mxu0 %v2109
    %v2183 = vpop.f32.mrb[0].mxu0
    %v2184 = vadd.f32 0.0, %v2183
    %v2185 = vpop.f32.mrb[0].mxu0
    %2186 = vmatprep.mubr.f32.mxu0 0.0
    %2187 = vmatmul.mubr.f32.gmra.mrb[0].mxu0 %v2111
    %v2188 = vpop.f32.mrb[0].mxu0
    %v2189 = vadd.f32 0.0, %v2188
    %v2190 = vpop.f32.mrb[0].mxu0
    %2191 = vdwg.mxu0
    %v2192 = vmul.f32 %v2184, 0.35355338
    %v2193 = vmul.f32 %v2189, 0.35355338
    %v2194 = vadd.f32 %v2192, %v290
    %v2195 = vadd.f32 %v2193, %v291
    %v2196 = vsel %vm480, %v2194, -inf
    %2197 = vmax.xlane.f32.xlu0 %v2196
    %v2198 = vpop.xlane.xlu0 %2197
    %v2199 = vsel %vm480, %v2195, -inf
    %2200 = vmax.xlane.f32.xlu0 %v2199
    %v2201 = vpop.xlane.xlu0 %2200
    %v2202 = vsub.f32 %v2194, %v2198
    %v2203 = vsub.f32 %v2195, %v2201
    %v2204 = vmul.f32 %v2202, 1.442695
    %v2205 = vpow.pop %v2204
    %v2206 = vmul.f32 %v2203, 1.442695
    %v2207 = vpow.pop %v2206
    %v2208 = vsel %vm480, %v2205, 0.0
    %2209 = vadd.xlane.f32.xlu0 %v2208
    %v2210 = vpop.xlane.xlu0 %2209
    %v2211 = vsel %vm480, %v2207, 0.0
    %2212 = vadd.xlane.f32.xlu0 %v2211
    %v2213 = vpop.xlane.xlu0 %2212
    %v2214 = vrcp.pop %v2210
    %v2215 = vrcp.pop %v2213
    %v2216 = vmul.f32 %v2205, %v2214
    %v2217 = vmul.f32 %v2207, %v2215
    %2218 = vrot.lane.b32.xlu0 %v1891, 56
    %v2219 = vpop.permute.xlu0 %2218
    %2220 = vrot.lane.b32.xlu0 %v1896, 56
    %v2221 = vpop.permute.xlu0 %2220
    %v2225 = vsel %vm480, %v2216, 0
    %v2228 = vsel %vm480, %v2217, 0
    %2230 = vmatprep.subr.mxu0 0.0
    %2231 = vmatpush1.msra.mxu0 %v2219
    %2232 = vmatprep.subr.mxu0 0.0
    %2233 = vmatpush1.msra.mxu0 %v2221
    %2234 = vmatprep.subr.mxu0 0.0
    %2235 = vmatpush1.msra.mxu0 0.0
    %2236 = vmatprep.subr.mxu0 0.0
    %2237 = vmatpush1.msra.mxu0 0.0
    %2238 = vmatprep.subr.mxu0 0.0
    %2239 = vmatpush1.msra.mxu0 0.0
    %2240 = vmatprep.subr.mxu0 0.0
    %2241 = vmatpush1.msra.mxu0 0.0
    %2242 = vmatprep.subr.mxu0 0.0
    %2243 = vmatpush1.msra.mxu0 0.0
    %2244 = vmatprep.subr.mxu0 0.0
    %2245 = vmatpush1.msra.mxu0 0.0
    %2246 = vmatprep.subr.mxu0 0.0
    %2247 = vmatpush1.msra.mxu0 0.0
    %2248 = vmatprep.subr.mxu0 0.0
    %2249 = vmatpush1.msra.mxu0 0.0
    %2250 = vmatprep.subr.mxu0 0.0
    %2251 = vmatpush1.msra.mxu0 0.0
    %2252 = vmatprep.subr.mxu0 0.0
    %2253 = vmatpush1.msra.mxu0 0.0
    %2254 = vmatprep.subr.mxu0 0.0
    %2255 = vmatpush1.msra.mxu0 0.0
    %2256 = vmatprep.subr.mxu0 0.0
    %2257 = vmatpush1.msra.mxu0 0.0
    %2258 = vmatprep.subr.mxu0 0.0
    %2259 = vmatpush1.msra.mxu0 0.0
    %2260 = vmatprep.subr.mxu0 0.0
    %2261 = vmatpush1.msra.mxu0 0.0
    %2262 = vmatprep.subr.mxu0 0.0
    %2263 = vmatpush1.msra.mxu0 0.0
    %2264 = vmatprep.subr.mxu0 0.0
    %2265 = vmatpush1.msra.mxu0 0.0
    %2266 = vmatprep.subr.mxu0 0.0
    %2267 = vmatpush1.msra.mxu0 0.0
    %2268 = vmatprep.subr.mxu0 0.0
    %2269 = vmatpush1.msra.mxu0 0.0
    %2270 = vmatprep.subr.mxu0 0.0
    %2271 = vmatpush1.msra.mxu0 0.0
    %2272 = vmatprep.subr.mxu0 0.0
    %2273 = vmatpush1.msra.mxu0 0.0
    %2274 = vmatprep.subr.mxu0 0.0
    %2275 = vmatpush1.msra.mxu0 0.0
    %2276 = vmatprep.subr.mxu0 0.0
    %2277 = vmatpush1.msra.mxu0 0.0
    %2278 = vmatprep.subr.mxu0 0.0
    %2279 = vmatpush1.msra.mxu0 0.0
    %2280 = vmatprep.subr.mxu0 0.0
    %2281 = vmatpush1.msra.mxu0 0.0
    %2282 = vmatprep.subr.mxu0 0.0
    %2283 = vmatpush1.msra.mxu0 0.0
    %2284 = vmatprep.subr.mxu0 0.0
    %2285 = vmatpush1.msra.mxu0 0.0
    %2286 = vmatprep.subr.mxu0 0.0
    %2287 = vmatpush1.msra.mxu0 0.0
    %2288 = vmatprep.subr.mxu0 0.0
    %2289 = vmatpush1.msra.mxu0 0.0
    %2290 = vmatprep.subr.mxu0 0.0
    %2291 = vmatpush1.msra.mxu0 0.0
    %2292 = vmatprep.subr.mxu0 0.0
    %2293 = vmatpush1.msra.mxu0 0.0
    %2294 = vmatprep.mubr.f32.mxu0 0.0
    %2295 = vmatmul.mubr.f32.gmra.mrb[0].mxu0 %v2225
    %v2296 = vpop.f32.mrb[0].mxu0
    %v2297 = vadd.f32 0.0, %v2296
    %v2298 = vpop.f32.mrb[0].mxu0
    %2299 = vmatprep.mubr.f32.mxu0 0.0
    %2300 = vmatmul.mubr.f32.gmra.mrb[0].mxu0 %v2228
    %v2301 = vpop.f32.mrb[0].mxu0
    %v2302 = vadd.f32 0.0, %v2301
    %v2303 = vpop.f32.mrb[0].mxu0
    %2304 = vdwg.mxu0
    %v2306 = vsel %vm71, %v2297, 0
    %v2309 = vsel %vm71, %v2302, 0
    %2311 = vmatprep.subr.mxu0 0.0
    %2312 = vmatpush1.msra.mxu0 %v1806
    %2313 = vmatprep.subr.mxu0 0.0
    %2314 = vmatpush1.msra.mxu0 0.0
    %2315 = vmatprep.subr.mxu0 0.0
    %2316 = vmatpush1.msra.mxu0 0.0
    %2317 = vmatprep.subr.mxu0 0.0
    %2318 = vmatpush1.msra.mxu0 0.0
    %2319 = vmatprep.subr.mxu0 0.0
    %2320 = vmatpush1.msra.mxu0 0.0
    %2321 = vmatprep.subr.mxu0 0.0
    %2322 = vmatpush1.msra.mxu0 0.0
    %2323 = vmatprep.subr.mxu0 0.0
    %2324 = vmatpush1.msra.mxu0 0.0
    %2325 = vmatprep.subr.mxu0 0.0
    %2326 = vmatpush1.msra.mxu0 0.0
    %2327 = vmatprep.subr.mxu0 0.0
    %2328 = vmatpush1.msra.mxu0 0.0
    %2329 = vmatprep.subr.mxu0 0.0
    %2330 = vmatpush1.msra.mxu0 0.0
    %2331 = vmatprep.subr.mxu0 0.0
    %2332 = vmatpush1.msra.mxu0 0.0
    %2333 = vmatprep.subr.mxu0 0.0
    %2334 = vmatpush1.msra.mxu0 0.0
    %2335 = vmatprep.subr.mxu0 0.0
    %2336 = vmatpush1.msra.mxu0 0.0
    %2337 = vmatprep.subr.mxu0 0.0
    %2338 = vmatpush1.msra.mxu0 0.0
    %2339 = vmatprep.subr.mxu0 0.0
    %2340 = vmatpush1.msra.mxu0 0.0
    %2341 = vmatprep.subr.mxu0 0.0
    %2342 = vmatpush1.msra.mxu0 0.0
    %2343 = vmatprep.subr.mxu0 0.0
    %2344 = vmatpush1.msra.mxu0 0.0
    %2345 = vmatprep.subr.mxu0 0.0
    %2346 = vmatpush1.msra.mxu0 0.0
    %2347 = vmatprep.subr.mxu0 0.0
    %2348 = vmatpush1.msra.mxu0 0.0
    %2349 = vmatprep.subr.mxu0 0.0
    %2350 = vmatpush1.msra.mxu0 0.0
    %2351 = vmatprep.subr.mxu0 0.0
    %2352 = vmatpush1.msra.mxu0 0.0
    %2353 = vmatprep.subr.mxu0 0.0
    %2354 = vmatpush1.msra.mxu0 0.0
    %2355 = vmatprep.subr.mxu0 0.0
    %2356 = vmatpush1.msra.mxu0 0.0
    %2357 = vmatprep.subr.mxu0 0.0
    %2358 = vmatpush1.msra.mxu0 0.0
    %2359 = vmatprep.subr.mxu0 0.0
    %2360 = vmatpush1.msra.mxu0 0.0
    %2361 = vmatprep.subr.mxu0 0.0
    %2362 = vmatpush1.msra.mxu0 0.0
    %2363 = vmatprep.subr.mxu0 0.0
    %2364 = vmatpush1.msra.mxu0 0.0
    %2365 = vmatprep.subr.mxu0 0.0
    %2366 = vmatpush1.msra.mxu0 0.0
    %2367 = vmatprep.subr.mxu0 0.0
    %2368 = vmatpush1.msra.mxu0 0.0
    %2369 = vmatprep.subr.mxu0 0.0
    %2370 = vmatpush1.msra.mxu0 0.0
    %2371 = vmatprep.subr.mxu0 0.0
    %2372 = vmatpush1.msra.mxu0 0.0
    %2373 = vmatprep.subr.mxu0 0.0
    %2374 = vmatpush1.msra.mxu0 0.0
    %2375 = vmatprep.mubr.f32.mxu0 0.0
    %2376 = vmatmul.mubr.f32.gmra.mrb[0].mxu0 %v2306
    %v2377 = vpop.f32.mrb[0].mxu0
    %v2378 = vadd.f32 0.0, %v2377
    %v2379 = vpop.f32.mrb[0].mxu0
    %2380 = vmatprep.mubr.f32.mxu0 0.0
    %2381 = vmatmul.mubr.f32.gmra.mrb[0].mxu0 %v2309
    %v2382 = vpop.f32.mrb[0].mxu0
    %v2383 = vadd.f32 0.0, %v2382
    %v2384 = vpop.f32.mrb[0].mxu0
    %2385 = vdwg.mxu0
    %v2387 = vsel %vm71, %v2093, 0
    %v2390 = vsel %vm71, %v2098, 0
    %2392 = vmatprep.subr.mxu0 0.0
    %2393 = vmatpush1.msra.mxu0 %v1805
    %2394 = vmatprep.subr.mxu0 0.0
    %2395 = vmatpush1.msra.mxu0 0.0
    %2396 = vmatprep.subr.mxu0 0.0
    %2397 = vmatpush1.msra.mxu0 0.0
    %2398 = vmatprep.subr.mxu0 0.0
    %2399 = vmatpush1.msra.mxu0 0.0
    %2400 = vmatprep.subr.mxu0 0.0
    %2401 = vmatpush1.msra.mxu0 0.0
    %2402 = vmatprep.subr.mxu0 0.0
    %2403 = vmatpush1.msra.mxu0 0.0
    %2404 = vmatprep.subr.mxu0 0.0
    %2405 = vmatpush1.msra.mxu0 0.0
    %2406 = vmatprep.subr.mxu0 0.0
    %2407 = vmatpush1.msra.mxu0 0.0
    %2408 = vmatprep.subr.mxu0 0.0
    %2409 = vmatpush1.msra.mxu0 0.0
    %2410 = vmatprep.subr.mxu0 0.0
    %2411 = vmatpush1.msra.mxu0 0.0
    %2412 = vmatprep.subr.mxu0 0.0
    %2413 = vmatpush1.msra.mxu0 0.0
    %2414 = vmatprep.subr.mxu0 0.0
    %2415 = vmatpush1.msra.mxu0 0.0
    %2416 = vmatprep.subr.mxu0 0.0
    %2417 = vmatpush1.msra.mxu0 0.0
    %2418 = vmatprep.subr.mxu0 0.0
    %2419 = vmatpush1.msra.mxu0 0.0
    %2420 = vmatprep.subr.mxu0 0.0
    %2421 = vmatpush1.msra.mxu0 0.0
    %2422 = vmatprep.subr.mxu0 0.0
    %2423 = vmatpush1.msra.mxu0 0.0
    %2424 = vmatprep.subr.mxu0 0.0
    %2425 = vmatpush1.msra.mxu0 0.0
    %2426 = vmatprep.subr.mxu0 0.0
    %2427 = vmatpush1.msra.mxu0 0.0
    %2428 = vmatprep.subr.mxu0 0.0
    %2429 = vmatpush1.msra.mxu0 0.0
    %2430 = vmatprep.subr.mxu0 0.0
    %2431 = vmatpush1.msra.mxu0 0.0
    %2432 = vmatprep.subr.mxu0 0.0
    %2433 = vmatpush1.msra.mxu0 0.0
    %2434 = vmatprep.subr.mxu0 0.0
    %2435 = vmatpush1.msra.mxu0 0.0
    %2436 = vmatprep.subr.mxu0 0.0
    %2437 = vmatpush1.msra.mxu0 0.0
    %2438 = vmatprep.subr.mxu0 0.0
    %2439 = vmatpush1.msra.mxu0 0.0
    %2440 = vmatprep.subr.mxu0 0.0
    %2441 = vmatpush1.msra.mxu0 0.0
    %2442 = vmatprep.subr.mxu0 0.0
    %2443 = vmatpush1.msra.mxu0 0.0
    %2444 = vmatprep.subr.mxu0 0.0
    %2445 = vmatpush1.msra.mxu0 0.0
    %2446 = vmatprep.subr.mxu0 0.0
    %2447 = vmatpush1.msra.mxu0 0.0
    %2448 = vmatprep.subr.mxu0 0.0
    %2449 = vmatpush1.msra.mxu0 0.0
    %2450 = vmatprep.subr.mxu0 0.0
    %2451 = vmatpush1.msra.mxu0 0.0
    %2452 = vmatprep.subr.mxu0 0.0
    %2453 = vmatpush1.msra.mxu0 0.0
    %2454 = vmatprep.subr.mxu0 0.0
    %2455 = vmatpush1.msra.mxu0 0.0
    %2456 = vmatprep.mubr.f32.mxu0 0.0
    %2457 = vmatmul.mubr.f32.gmra.mrb[0].mxu0 %v2387
    %v2458 = vpop.f32.mrb[0].mxu0
    %v2459 = vadd.f32 %v2378, %v2458
    %v2460 = vpop.f32.mrb[0].mxu0
    %2461 = vmatprep.mubr.f32.mxu0 0.0
    %2462 = vmatmul.mubr.f32.gmra.mrb[0].mxu0 %v2390
    %v2463 = vpop.f32.mrb[0].mxu0
    %v2464 = vadd.f32 %v2383, %v2463
    %v2465 = vpop.f32.mrb[0].mxu0
    %2466 = vdwg.mxu0
    %2467 = vrot.lane.b32.xlu0 %v1891, 112
    %v2468 = vpop.permute.xlu0 %2467
    %2469 = vrot.lane.b32.xlu0 %v1896, 112
    %v2470 = vpop.permute.xlu0 %2469
    %2471 = vrot.lane.b32.xlu0 %v1891, 80
    %v2472 = vpop.permute.xlu0 %2471
    %2473 = vrot.lane.b32.xlu0 %v1896, 80
    %v2474 = vpop.permute.xlu0 %2473
    %v2475 = vsel %vm71, %v2468, 0
    %v2477 = vsel %vm71, %v2470, 0
    %v2479 = vsel %vm71, %v2472, 0
    %v2481 = vsel %vm71, %v2474, 0
    %2483 = vmatprep.subr.mxu0 0.0
    %2484 = vmatpush1.xpose.msra.mxu0 %v2479
    %2485 = vmatprep.subr.mxu0 0.0
    %2486 = vmatpush1.xpose.msra.mxu0 %v2481
    %2487 = vmatprep.subr.mxu0 0.0
    %2488 = vmatpush1.xpose.msra.mxu0 0.0
    %2489 = vmatprep.subr.mxu0 0.0
    %2490 = vmatpush1.xpose.msra.mxu0 0.0
    %2491 = vmatprep.subr.mxu0 0.0
    %2492 = vmatpush1.xpose.msra.mxu0 0.0
    %2493 = vmatprep.subr.mxu0 0.0
    %2494 = vmatpush1.xpose.msra.mxu0 0.0
    %2495 = vmatprep.subr.mxu0 0.0
    %2496 = vmatpush1.xpose.msra.mxu0 0.0
    %2497 = vmatprep.subr.mxu0 0.0
    %2498 = vmatpush1.xpose.msra.mxu0 0.0
    %2499 = vmatprep.subr.mxu0 0.0
    %2500 = vmatpush1.xpose.msra.mxu0 0.0
    %2501 = vmatprep.subr.mxu0 0.0
    %2502 = vmatpush1.xpose.msra.mxu0 0.0
    %2503 = vmatprep.subr.mxu0 0.0
    %2504 = vmatpush1.xpose.msra.mxu0 0.0
    %2505 = vmatprep.subr.mxu0 0.0
    %2506 = vmatpush1.xpose.msra.mxu0 0.0
    %2507 = vmatprep.subr.mxu0 0.0
    %2508 = vmatpush1.xpose.msra.mxu0 0.0
    %2509 = vmatprep.subr.mxu0 0.0
    %2510 = vmatpush1.xpose.msra.mxu0 0.0
    %2511 = vmatprep.subr.mxu0 0.0
    %2512 = vmatpush1.xpose.msra.mxu0 0.0
    %2513 = vmatprep.subr.mxu0 0.0
    %2514 = vmatpush1.xpose.msra.mxu0 0.0
    %2515 = vmatprep.subr.mxu0 0.0
    %2516 = vmatpush1.xpose.msra.mxu0 0.0
    %2517 = vmatprep.subr.mxu0 0.0
    %2518 = vmatpush1.xpose.msra.mxu0 0.0
    %2519 = vmatprep.subr.mxu0 0.0
    %2520 = vmatpush1.xpose.msra.mxu0 0.0
    %2521 = vmatprep.subr.mxu0 0.0
    %2522 = vmatpush1.xpose.msra.mxu0 0.0
    %2523 = vmatprep.subr.mxu0 0.0
    %2524 = vmatpush1.xpose.msra.mxu0 0.0
    %2525 = vmatprep.subr.mxu0 0.0
    %2526 = vmatpush1.xpose.msra.mxu0 0.0
    %2527 = vmatprep.subr.mxu0 0.0
    %2528 = vmatpush1.xpose.msra.mxu0 0.0
    %2529 = vmatprep.subr.mxu0 0.0
    %2530 = vmatpush1.xpose.msra.mxu0 0.0
    %2531 = vmatprep.subr.mxu0 0.0
    %2532 = vmatpush1.xpose.msra.mxu0 0.0
    %2533 = vmatprep.subr.mxu0 0.0
    %2534 = vmatpush1.xpose.msra.mxu0 0.0
    %2535 = vmatprep.subr.mxu0 0.0
    %2536 = vmatpush1.xpose.msra.mxu0 0.0
    %2537 = vmatprep.subr.mxu0 0.0
    %2538 = vmatpush1.xpose.msra.mxu0 0.0
    %2539 = vmatprep.subr.mxu0 0.0
    %2540 = vmatpush1.xpose.msra.mxu0 0.0
    %2541 = vmatprep.subr.mxu0 0.0
    %2542 = vmatpush1.xpose.msra.mxu0 0.0
    %2543 = vmatprep.subr.mxu0 0.0
    %2544 = vmatpush1.xpose.msra.mxu0 0.0
    %2545 = vmatprep.subr.mxu0 0.0
    %2546 = vmatpush1.xpose.msra.mxu0 0.0
    %2547 = vmatprep.mubr.f32.mxu0 0.0
    %2548 = vmatmul.mubr.f32.gmra.mrb[0].mxu0 %v2475
    %v2549 = vpop.f32.mrb[0].mxu0
    %v2550 = vadd.f32 0.0, %v2549
    %v2551 = vpop.f32.mrb[0].mxu0
    %2552 = vmatprep.mubr.f32.mxu0 0.0
    %2553 = vmatmul.mubr.f32.gmra.mrb[0].mxu0 %v2477
    %v2554 = vpop.f32.mrb[0].mxu0
    %v2555 = vadd.f32 0.0, %v2554
    %v2556 = vpop.f32.mrb[0].mxu0
    %2557 = vdwg.mxu0
    %v2558 = vmul.f32 %v2550, 0.35355338
    %v2559 = vmul.f32 %v2555, 0.35355338
    %v2560 = vadd.f32 %v2558, %v290
    %v2561 = vadd.f32 %v2559, %v291
    %v2562 = vsel %vm480, %v2560, -inf
    %2563 = vmax.xlane.f32.xlu0 %v2562
    %v2564 = vpop.xlane.xlu0 %2563
    %v2565 = vsel %vm480, %v2561, -inf
    %2566 = vmax.xlane.f32.xlu0 %v2565
    %v2567 = vpop.xlane.xlu0 %2566
    %v2568 = vsub.f32 %v2560, %v2564
    %v2569 = vsub.f32 %v2561, %v2567
    %v2570 = vmul.f32 %v2568, 1.442695
    %v2571 = vpow.pop %v2570
    %v2572 = vmul.f32 %v2569, 1.442695
    %v2573 = vpow.pop %v2572
    %v2574 = vsel %vm480, %v2571, 0.0
    %2575 = vadd.xlane.f32.xlu0 %v2574
    %v2576 = vpop.xlane.xlu0 %2575
    %v2577 = vsel %vm480, %v2573, 0.0
    %2578 = vadd.xlane.f32.xlu0 %v2577
    %v2579 = vpop.xlane.xlu0 %2578
    %v2580 = vrcp.pop %v2576
    %v2581 = vrcp.pop %v2579
    %v2582 = vmul.f32 %v2571, %v2580
    %v2583 = vmul.f32 %v2573, %v2581
    %2584 = vrot.lane.b32.xlu0 %v1891, 48
    %v2585 = vpop.permute.xlu0 %2584
    %2586 = vrot.lane.b32.xlu0 %v1896, 48
    %v2587 = vpop.permute.xlu0 %2586
    %v2591 = vsel %vm480, %v2582, 0
    %v2594 = vsel %vm480, %v2583, 0
    %2596 = vmatprep.subr.mxu0 0.0
    %2597 = vmatpush1.msra.mxu0 %v2585
    %2598 = vmatprep.subr.mxu0 0.0
    %2599 = vmatpush1.msra.mxu0 %v2587
    %2600 = vmatprep.subr.mxu0 0.0
    %2601 = vmatpush1.msra.mxu0 0.0
    %2602 = vmatprep.subr.mxu0 0.0
    %2603 = vmatpush1.msra.mxu0 0.0
    %2604 = vmatprep.subr.mxu0 0.0
    %2605 = vmatpush1.msra.mxu0 0.0
    %2606 = vmatprep.subr.mxu0 0.0
    %2607 = vmatpush1.msra.mxu0 0.0
    %2608 = vmatprep.subr.mxu0 0.0
    %2609 = vmatpush1.msra.mxu0 0.0
    %2610 = vmatprep.subr.mxu0 0.0
    %2611 = vmatpush1.msra.mxu0 0.0
    %2612 = vmatprep.subr.mxu0 0.0
    %2613 = vmatpush1.msra.mxu0 0.0
    %2614 = vmatprep.subr.mxu0 0.0
    %2615 = vmatpush1.msra.mxu0 0.0
    %2616 = vmatprep.subr.mxu0 0.0
    %2617 = vmatpush1.msra.mxu0 0.0
    %2618 = vmatprep.subr.mxu0 0.0
    %2619 = vmatpush1.msra.mxu0 0.0
    %2620 = vmatprep.subr.mxu0 0.0
    %2621 = vmatpush1.msra.mxu0 0.0
    %2622 = vmatprep.subr.mxu0 0.0
    %2623 = vmatpush1.msra.mxu0 0.0
    %2624 = vmatprep.subr.mxu0 0.0
    %2625 = vmatpush1.msra.mxu0 0.0
    %2626 = vmatprep.subr.mxu0 0.0
    %2627 = vmatpush1.msra.mxu0 0.0
    %2628 = vmatprep.subr.mxu0 0.0
    %2629 = vmatpush1.msra.mxu0 0.0
    %2630 = vmatprep.subr.mxu0 0.0
    %2631 = vmatpush1.msra.mxu0 0.0
    %2632 = vmatprep.subr.mxu0 0.0
    %2633 = vmatpush1.msra.mxu0 0.0
    %2634 = vmatprep.subr.mxu0 0.0
    %2635 = vmatpush1.msra.mxu0 0.0
    %2636 = vmatprep.subr.mxu0 0.0
    %2637 = vmatpush1.msra.mxu0 0.0
    %2638 = vmatprep.subr.mxu0 0.0
    %2639 = vmatpush1.msra.mxu0 0.0
    %2640 = vmatprep.subr.mxu0 0.0
    %2641 = vmatpush1.msra.mxu0 0.0
    %2642 = vmatprep.subr.mxu0 0.0
    %2643 = vmatpush1.msra.mxu0 0.0
    %2644 = vmatprep.subr.mxu0 0.0
    %2645 = vmatpush1.msra.mxu0 0.0
    %2646 = vmatprep.subr.mxu0 0.0
    %2647 = vmatpush1.msra.mxu0 0.0
    %2648 = vmatprep.subr.mxu0 0.0
    %2649 = vmatpush1.msra.mxu0 0.0
    %2650 = vmatprep.subr.mxu0 0.0
    %2651 = vmatpush1.msra.mxu0 0.0
    %2652 = vmatprep.subr.mxu0 0.0
    %2653 = vmatpush1.msra.mxu0 0.0
    %2654 = vmatprep.subr.mxu0 0.0
    %2655 = vmatpush1.msra.mxu0 0.0
    %2656 = vmatprep.subr.mxu0 0.0
    %2657 = vmatpush1.msra.mxu0 0.0
    %2658 = vmatprep.subr.mxu0 0.0
    %2659 = vmatpush1.msra.mxu0 0.0
    %2660 = vmatprep.mubr.f32.mxu0 0.0
    %2661 = vmatmul.mubr.f32.gmra.mrb[0].mxu0 %v2591
    %v2662 = vpop.f32.mrb[0].mxu0
    %v2663 = vadd.f32 0.0, %v2662
    %v2664 = vpop.f32.mrb[0].mxu0
    %2665 = vmatprep.mubr.f32.mxu0 0.0
    %2666 = vmatmul.mubr.f32.gmra.mrb[0].mxu0 %v2594
    %v2667 = vpop.f32.mrb[0].mxu0
    %v2668 = vadd.f32 0.0, %v2667
    %v2669 = vpop.f32.mrb[0].mxu0
    %2670 = vdwg.mxu0
    %v2672 = vsel %vm71, %v2663, 0
    %v2675 = vsel %vm71, %v2668, 0
    %2677 = vmatprep.subr.mxu0 0.0
    %2678 = vmatpush1.msra.mxu0 %v1807
    %2679 = vmatprep.subr.mxu0 0.0
    %2680 = vmatpush1.msra.mxu0 0.0
    %2681 = vmatprep.subr.mxu0 0.0
    %2682 = vmatpush1.msra.mxu0 0.0
    %2683 = vmatprep.subr.mxu0 0.0
    %2684 = vmatpush1.msra.mxu0 0.0
    %2685 = vmatprep.subr.mxu0 0.0
    %2686 = vmatpush1.msra.mxu0 0.0
    %2687 = vmatprep.subr.mxu0 0.0
    %2688 = vmatpush1.msra.mxu0 0.0
    %2689 = vmatprep.subr.mxu0 0.0
    %2690 = vmatpush1.msra.mxu0 0.0
    %2691 = vmatprep.subr.mxu0 0.0
    %2692 = vmatpush1.msra.mxu0 0.0
    %2693 = vmatprep.subr.mxu0 0.0
    %2694 = vmatpush1.msra.mxu0 0.0
    %2695 = vmatprep.subr.mxu0 0.0
    %2696 = vmatpush1.msra.mxu0 0.0
    %2697 = vmatprep.subr.mxu0 0.0
    %2698 = vmatpush1.msra.mxu0 0.0
    %2699 = vmatprep.subr.mxu0 0.0
    %2700 = vmatpush1.msra.mxu0 0.0
    %2701 = vmatprep.subr.mxu0 0.0
    %2702 = vmatpush1.msra.mxu0 0.0
    %2703 = vmatprep.subr.mxu0 0.0
    %2704 = vmatpush1.msra.mxu0 0.0
    %2705 = vmatprep.subr.mxu0 0.0
    %2706 = vmatpush1.msra.mxu0 0.0
    %2707 = vmatprep.subr.mxu0 0.0
    %2708 = vmatpush1.msra.mxu0 0.0
    %2709 = vmatprep.subr.mxu0 0.0
    %2710 = vmatpush1.msra.mxu0 0.0
    %2711 = vmatprep.subr.mxu0 0.0
    %2712 = vmatpush1.msra.mxu0 0.0
    %2713 = vmatprep.subr.mxu0 0.0
    %2714 = vmatpush1.msra.mxu0 0.0
    %2715 = vmatprep.subr.mxu0 0.0
    %2716 = vmatpush1.msra.mxu0 0.0
    %2717 = vmatprep.subr.mxu0 0.0
    %2718 = vmatpush1.msra.mxu0 0.0
    %2719 = vmatprep.subr.mxu0 0.0
    %2720 = vmatpush1.msra.mxu0 0.0
    %2721 = vmatprep.subr.mxu0 0.0
    %2722 = vmatpush1.msra.mxu0 0.0
    %2723 = vmatprep.subr.mxu0 0.0
    %2724 = vmatpush1.msra.mxu0 0.0
    %2725 = vmatprep.subr.mxu0 0.0
    %2726 = vmatpush1.msra.mxu0 0.0
    %2727 = vmatprep.subr.mxu0 0.0
    %2728 = vmatpush1.msra.mxu0 0.0
    %2729 = vmatprep.subr.mxu0 0.0
    %2730 = vmatpush1.msra.mxu0 0.0
    %2731 = vmatprep.subr.mxu0 0.0
    %2732 = vmatpush1.msra.mxu0 0.0
    %2733 = vmatprep.subr.mxu0 0.0
    %2734 = vmatpush1.msra.mxu0 0.0
    %2735 = vmatprep.subr.mxu0 0.0
    %2736 = vmatpush1.msra.mxu0 0.0
    %2737 = vmatprep.subr.mxu0 0.0
    %2738 = vmatpush1.msra.mxu0 0.0
    %2739 = vmatprep.subr.mxu0 0.0
    %2740 = vmatpush1.msra.mxu0 0.0
    %2741 = vmatprep.mubr.f32.mxu0 0.0
    %2742 = vmatmul.mubr.f32.gmra.mrb[0].mxu0 %v2672
    %v2743 = vpop.f32.mrb[0].mxu0
    %v2744 = vadd.f32 0.0, %v2743
    %v2745 = vpop.f32.mrb[0].mxu0
    %2746 = vmatprep.mubr.f32.mxu0 0.0
    %2747 = vmatmul.mubr.f32.gmra.mrb[0].mxu0 %v2675
    %v2748 = vpop.f32.mrb[0].mxu0
    %v2749 = vadd.f32 0.0, %v2748
    %v2750 = vpop.f32.mrb[0].mxu0
    %2751 = vdwg.mxu0
    %v2752 = vadd.f32 %v2459, %v2744
    %v2753 = vadd.f32 %v2464, %v2749
    %2754 = vrot.lane.b32.xlu0 %v1891, 104
    %v2755 = vpop.permute.xlu0 %2754
    %2756 = vrot.lane.b32.xlu0 %v1896, 104
    %v2757 = vpop.permute.xlu0 %2756
    %2758 = vrot.lane.b32.xlu0 %v1891, 72
    %v2759 = vpop.permute.xlu0 %2758
    %2760 = vrot.lane.b32.xlu0 %v1896, 72
    %v2761 = vpop.permute.xlu0 %2760
    %v2762 = vsel %vm71, %v2755, 0
    %v2764 = vsel %vm71, %v2757, 0
    %v2766 = vsel %vm71, %v2759, 0
    %v2768 = vsel %vm71, %v2761, 0
    %2770 = vmatprep.subr.mxu0 0.0
    %2771 = vmatpush1.xpose.msra.mxu0 %v2766
    %2772 = vmatprep.subr.mxu0 0.0
    %2773 = vmatpush1.xpose.msra.mxu0 %v2768
    %2774 = vmatprep.subr.mxu0 0.0
    %2775 = vmatpush1.xpose.msra.mxu0 0.0
    %2776 = vmatprep.subr.mxu0 0.0
    %2777 = vmatpush1.xpose.msra.mxu0 0.0
    %2778 = vmatprep.subr.mxu0 0.0
    %2779 = vmatpush1.xpose.msra.mxu0 0.0
    %2780 = vmatprep.subr.mxu0 0.0
    %2781 = vmatpush1.xpose.msra.mxu0 0.0
    %2782 = vmatprep.subr.mxu0 0.0
    %2783 = vmatpush1.xpose.msra.mxu0 0.0
    %2784 = vmatprep.subr.mxu0 0.0
    %2785 = vmatpush1.xpose.msra.mxu0 0.0
    %2786 = vmatprep.subr.mxu0 0.0
    %2787 = vmatpush1.xpose.msra.mxu0 0.0
    %2788 = vmatprep.subr.mxu0 0.0
    %2789 = vmatpush1.xpose.msra.mxu0 0.0
    %2790 = vmatprep.subr.mxu0 0.0
    %2791 = vmatpush1.xpose.msra.mxu0 0.0
    %2792 = vmatprep.subr.mxu0 0.0
    %2793 = vmatpush1.xpose.msra.mxu0 0.0
    %2794 = vmatprep.subr.mxu0 0.0
    %2795 = vmatpush1.xpose.msra.mxu0 0.0
    %2796 = vmatprep.subr.mxu0 0.0
    %2797 = vmatpush1.xpose.msra.mxu0 0.0
    %2798 = vmatprep.subr.mxu0 0.0
    %2799 = vmatpush1.xpose.msra.mxu0 0.0
    %2800 = vmatprep.subr.mxu0 0.0
    %2801 = vmatpush1.xpose.msra.mxu0 0.0
    %2802 = vmatprep.subr.mxu0 0.0
    %2803 = vmatpush1.xpose.msra.mxu0 0.0
    %2804 = vmatprep.subr.mxu0 0.0
    %2805 = vmatpush1.xpose.msra.mxu0 0.0
    %2806 = vmatprep.subr.mxu0 0.0
    %2807 = vmatpush1.xpose.msra.mxu0 0.0
    %2808 = vmatprep.subr.mxu0 0.0
    %2809 = vmatpush1.xpose.msra.mxu0 0.0
    %2810 = vmatprep.subr.mxu0 0.0
    %2811 = vmatpush1.xpose.msra.mxu0 0.0
    %2812 = vmatprep.subr.mxu0 0.0
    %2813 = vmatpush1.xpose.msra.mxu0 0.0
    %2814 = vmatprep.subr.mxu0 0.0
    %2815 = vmatpush1.xpose.msra.mxu0 0.0
    %2816 = vmatprep.subr.mxu0 0.0
    %2817 = vmatpush1.xpose.msra.mxu0 0.0
    %2818 = vmatprep.subr.mxu0 0.0
    %2819 = vmatpush1.xpose.msra.mxu0 0.0
    %2820 = vmatprep.subr.mxu0 0.0
    %2821 = vmatpush1.xpose.msra.mxu0 0.0
    %2822 = vmatprep.subr.mxu0 0.0
    %2823 = vmatpush1.xpose.msra.mxu0 0.0
    %2824 = vmatprep.subr.mxu0 0.0
    %2825 = vmatpush1.xpose.msra.mxu0 0.0
    %2826 = vmatprep.subr.mxu0 0.0
    %2827 = vmatpush1.xpose.msra.mxu0 0.0
    %2828 = vmatprep.subr.mxu0 0.0
    %2829 = vmatpush1.xpose.msra.mxu0 0.0
    %2830 = vmatprep.subr.mxu0 0.0
    %2831 = vmatpush1.xpose.msra.mxu0 0.0
    %2832 = vmatprep.subr.mxu0 0.0
    %2833 = vmatpush1.xpose.msra.mxu0 0.0
    %2834 = vmatprep.mubr.f32.mxu0 0.0
    %2835 = vmatmul.mubr.f32.gmra.mrb[0].mxu0 %v2762
    %v2836 = vpop.f32.mrb[0].mxu0
    %v2837 = vadd.f32 0.0, %v2836
    %v2838 = vpop.f32.mrb[0].mxu0
    %2839 = vmatprep.mubr.f32.mxu0 0.0
    %2840 = vmatmul.mubr.f32.gmra.mrb[0].mxu0 %v2764
    %v2841 = vpop.f32.mrb[0].mxu0
    %v2842 = vadd.f32 0.0, %v2841
    %v2843 = vpop.f32.mrb[0].mxu0
    %2844 = vdwg.mxu0
    %v2845 = vmul.f32 %v2837, 0.35355338
    %v2846 = vmul.f32 %v2842, 0.35355338
    %v2847 = vadd.f32 %v2845, %v290
    %v2848 = vadd.f32 %v2846, %v291
    %v2849 = vsel %vm480, %v2847, -inf
    %2850 = vmax.xlane.f32.xlu0 %v2849
    %v2851 = vpop.xlane.xlu0 %2850
    %v2852 = vsel %vm480, %v2848, -inf
    %2853 = vmax.xlane.f32.xlu0 %v2852
    %v2854 = vpop.xlane.xlu0 %2853
    %v2855 = vsub.f32 %v2847, %v2851
    %v2856 = vsub.f32 %v2848, %v2854
    %v2857 = vmul.f32 %v2855, 1.442695
    %v2858 = vpow.pop %v2857
    %v2859 = vmul.f32 %v2856, 1.442695
    %v2860 = vpow.pop %v2859
    %v2861 = vsel %vm480, %v2858, 0.0
    %2862 = vadd.xlane.f32.xlu0 %v2861
    %v2863 = vpop.xlane.xlu0 %2862
    %v2864 = vsel %vm480, %v2860, 0.0
    %2865 = vadd.xlane.f32.xlu0 %v2864
    %v2866 = vpop.xlane.xlu0 %2865
    %v2867 = vrcp.pop %v2863
    %v2868 = vrcp.pop %v2866
    %v2869 = vmul.f32 %v2858, %v2867
    %v2870 = vmul.f32 %v2860, %v2868
    %2871 = vrot.lane.b32.xlu0 %v1891, 40
    %v2872 = vpop.permute.xlu0 %2871
    %2873 = vrot.lane.b32.xlu0 %v1896, 40
    %v2874 = vpop.permute.xlu0 %2873
    %v2878 = vsel %vm480, %v2869, 0
    %v2881 = vsel %vm480, %v2870, 0
    %2883 = vmatprep.subr.mxu0 0.0
    %2884 = vmatpush1.msra.mxu0 %v2872
    %2885 = vmatprep.subr.mxu0 0.0
    %2886 = vmatpush1.msra.mxu0 %v2874
    %2887 = vmatprep.subr.mxu0 0.0
    %2888 = vmatpush1.msra.mxu0 0.0
    %2889 = vmatprep.subr.mxu0 0.0
    %2890 = vmatpush1.msra.mxu0 0.0
    %2891 = vmatprep.subr.mxu0 0.0
    %2892 = vmatpush1.msra.mxu0 0.0
    %2893 = vmatprep.subr.mxu0 0.0
    %2894 = vmatpush1.msra.mxu0 0.0
    %2895 = vmatprep.subr.mxu0 0.0
    %2896 = vmatpush1.msra.mxu0 0.0
    %2897 = vmatprep.subr.mxu0 0.0
    %2898 = vmatpush1.msra.mxu0 0.0
    %2899 = vmatprep.subr.mxu0 0.0
    %2900 = vmatpush1.msra.mxu0 0.0
    %2901 = vmatprep.subr.mxu0 0.0
    %2902 = vmatpush1.msra.mxu0 0.0
    %2903 = vmatprep.subr.mxu0 0.0
    %2904 = vmatpush1.msra.mxu0 0.0
    %2905 = vmatprep.subr.mxu0 0.0
    %2906 = vmatpush1.msra.mxu0 0.0
    %2907 = vmatprep.subr.mxu0 0.0
    %2908 = vmatpush1.msra.mxu0 0.0
    %2909 = vmatprep.subr.mxu0 0.0
    %2910 = vmatpush1.msra.mxu0 0.0
    %2911 = vmatprep.subr.mxu0 0.0
    %2912 = vmatpush1.msra.mxu0 0.0
    %2913 = vmatprep.subr.mxu0 0.0
    %2914 = vmatpush1.msra.mxu0 0.0
    %2915 = vmatprep.subr.mxu0 0.0
    %2916 = vmatpush1.msra.mxu0 0.0
    %2917 = vmatprep.subr.mxu0 0.0
    %2918 = vmatpush1.msra.mxu0 0.0
    %2919 = vmatprep.subr.mxu0 0.0
    %2920 = vmatpush1.msra.mxu0 0.0
    %2921 = vmatprep.subr.mxu0 0.0
    %2922 = vmatpush1.msra.mxu0 0.0
    %2923 = vmatprep.subr.mxu0 0.0
    %2924 = vmatpush1.msra.mxu0 0.0
    %2925 = vmatprep.subr.mxu0 0.0
    %2926 = vmatpush1.msra.mxu0 0.0
    %2927 = vmatprep.subr.mxu0 0.0
    %2928 = vmatpush1.msra.mxu0 0.0
    %2929 = vmatprep.subr.mxu0 0.0
    %2930 = vmatpush1.msra.mxu0 0.0
    %2931 = vmatprep.subr.mxu0 0.0
    %2932 = vmatpush1.msra.mxu0 0.0
    %2933 = vmatprep.subr.mxu0 0.0
    %2934 = vmatpush1.msra.mxu0 0.0
    %2935 = vmatprep.subr.mxu0 0.0
    %2936 = vmatpush1.msra.mxu0 0.0
    %2937 = vmatprep.subr.mxu0 0.0
    %2938 = vmatpush1.msra.mxu0 0.0
    %2939 = vmatprep.subr.mxu0 0.0
    %2940 = vmatpush1.msra.mxu0 0.0
    %2941 = vmatprep.subr.mxu0 0.0
    %2942 = vmatpush1.msra.mxu0 0.0
    %2943 = vmatprep.subr.mxu0 0.0
    %2944 = vmatpush1.msra.mxu0 0.0
    %2945 = vmatprep.subr.mxu0 0.0
    %2946 = vmatpush1.msra.mxu0 0.0
    %2947 = vmatprep.mubr.f32.mxu0 0.0
    %2948 = vmatmul.mubr.f32.gmra.mrb[0].mxu0 %v2878
    %v2949 = vpop.f32.mrb[0].mxu0
    %v2950 = vadd.f32 0.0, %v2949
    %v2951 = vpop.f32.mrb[0].mxu0
    %2952 = vmatprep.mubr.f32.mxu0 0.0
    %2953 = vmatmul.mubr.f32.gmra.mrb[0].mxu0 %v2881
    %v2954 = vpop.f32.mrb[0].mxu0
    %v2955 = vadd.f32 0.0, %v2954
    %v2956 = vpop.f32.mrb[0].mxu0
    %2957 = vdwg.mxu0
    %v2959 = vsel %vm71, %v2950, 0
    %v2962 = vsel %vm71, %v2955, 0
    %2964 = vmatprep.subr.mxu0 0.0
    %2965 = vmatpush1.msra.mxu0 %v1808
    %2966 = vmatprep.subr.mxu0 0.0
    %2967 = vmatpush1.msra.mxu0 0.0
    %2968 = vmatprep.subr.mxu0 0.0
    %2969 = vmatpush1.msra.mxu0 0.0
    %2970 = vmatprep.subr.mxu0 0.0
    %2971 = vmatpush1.msra.mxu0 0.0
    %2972 = vmatprep.subr.mxu0 0.0
    %2973 = vmatpush1.msra.mxu0 0.0
    %2974 = vmatprep.subr.mxu0 0.0
    %2975 = vmatpush1.msra.mxu0 0.0
    %2976 = vmatprep.subr.mxu0 0.0
    %2977 = vmatpush1.msra.mxu0 0.0
    %2978 = vmatprep.subr.mxu0 0.0
    %2979 = vmatpush1.msra.mxu0 0.0
    %2980 = vmatprep.subr.mxu0 0.0
    %2981 = vmatpush1.msra.mxu0 0.0
    %2982 = vmatprep.subr.mxu0 0.0
    %2983 = vmatpush1.msra.mxu0 0.0
    %2984 = vmatprep.subr.mxu0 0.0
    %2985 = vmatpush1.msra.mxu0 0.0
    %2986 = vmatprep.subr.mxu0 0.0
    %2987 = vmatpush1.msra.mxu0 0.0
    %2988 = vmatprep.subr.mxu0 0.0
    %2989 = vmatpush1.msra.mxu0 0.0
    %2990 = vmatprep.subr.mxu0 0.0
    %2991 = vmatpush1.msra.mxu0 0.0
    %2992 = vmatprep.subr.mxu0 0.0
    %2993 = vmatpush1.msra.mxu0 0.0
    %2994 = vmatprep.subr.mxu0 0.0
    %2995 = vmatpush1.msra.mxu0 0.0
    %2996 = vmatprep.subr.mxu0 0.0
    %2997 = vmatpush1.msra.mxu0 0.0
    %2998 = vmatprep.subr.mxu0 0.0
    %2999 = vmatpush1.msra.mxu0 0.0
    %3000 = vmatprep.subr.mxu0 0.0
    %3001 = vmatpush1.msra.mxu0 0.0
    %3002 = vmatprep.subr.mxu0 0.0
    %3003 = vmatpush1.msra.mxu0 0.0
    %3004 = vmatprep.subr.mxu0 0.0
    %3005 = vmatpush1.msra.mxu0 0.0
    %3006 = vmatprep.subr.mxu0 0.0
    %3007 = vmatpush1.msra.mxu0 0.0
    %3008 = vmatprep.subr.mxu0 0.0
    %3009 = vmatpush1.msra.mxu0 0.0
    %3010 = vmatprep.subr.mxu0 0.0
    %3011 = vmatpush1.msra.mxu0 0.0
    %3012 = vmatprep.subr.mxu0 0.0
    %3013 = vmatpush1.msra.mxu0 0.0
    %3014 = vmatprep.subr.mxu0 0.0
    %3015 = vmatpush1.msra.mxu0 0.0
    %3016 = vmatprep.subr.mxu0 0.0
    %3017 = vmatpush1.msra.mxu0 0.0
    %3018 = vmatprep.subr.mxu0 0.0
    %3019 = vmatpush1.msra.mxu0 0.0
    %3020 = vmatprep.subr.mxu0 0.0
    %3021 = vmatpush1.msra.mxu0 0.0
    %3022 = vmatprep.subr.mxu0 0.0
    %3023 = vmatpush1.msra.mxu0 0.0
    %3024 = vmatprep.subr.mxu0 0.0
    %3025 = vmatpush1.msra.mxu0 0.0
    %3026 = vmatprep.subr.mxu0 0.0
    %3027 = vmatpush1.msra.mxu0 0.0
    %3028 = vmatprep.mubr.f32.mxu0 0.0
    %3029 = vmatmul.mubr.f32.gmra.mrb[0].mxu0 %v2959
    %v3030 = vpop.f32.mrb[0].mxu0
    %v3031 = vadd.f32 0.0, %v3030
    %v3032 = vpop.f32.mrb[0].mxu0
    %3033 = vmatprep.mubr.f32.mxu0 0.0
    %3034 = vmatmul.mubr.f32.gmra.mrb[0].mxu0 %v2962
    %v3035 = vpop.f32.mrb[0].mxu0
    %v3036 = vadd.f32 0.0, %v3035
    %v3037 = vpop.f32.mrb[0].mxu0
    %3038 = vdwg.mxu0
    %v3039 = vadd.f32 %v2752, %v3031
    %v3040 = vadd.f32 %v2753, %v3036
    %v3041 = vlaneseq
    %v3042 = vshrl.u32 %v3041, 7
    %v3043 = vsub.s32 1, %v3042
    %v3044 = vrot.slane %v1803, %v3043
    %v3045 = vadd.f32 %v3039, %v3044
    %v3046 = vadd.f32 %v3040, %v3044
    %v3047 = vadd.f32 %v1800, %v3045
    %v3048 = vadd.f32 %v1801, %v3046
    %v3049 = vsel %vm305, %v3047, 0.0
    %3050 = vadd.xlane.f32.xlu0 %v3049
    %v3051 = vpop.xlane.xlu0 %3050
    %v3052 = vsel %vm305, %v3048, 0.0
    %3053 = vadd.xlane.f32.xlu0 %v3052
    %v3054 = vpop.xlane.xlu0 %3053
    %v3055 = vmul.f32 %v3051, %v1544
    %v3056 = vmul.f32 %v3054, %v1544
    %v3057 = vsub.f32 %v3047, %v3055
    %v3058 = vsub.f32 %v3048, %v3056
    %v3059 = vmul.f32 %v3057, %v3057
    %v3060 = vmul.f32 %v3058, %v3058
    %v3061 = vsel %vm305, %v3059, 0.0
    %3062 = vadd.xlane.f32.xlu0 %v3061
    %v3063 = vpop.xlane.xlu0 %3062
    %v3064 = vsel %vm305, %v3060, 0.0
    %3065 = vadd.xlane.f32.xlu0 %v3064
    %v3066 = vpop.xlane.xlu0 %3065
    %v3067 = vmul.f32 %v3063, %v1544
    %v3068 = vmul.f32 %v3066, %v1544
    %v3069 = vadd.f32 %v3067, 1e-05
    %v3070 = vadd.f32 %v3068, 1e-05
    %v3071 = vrsqrt.pop %v3069
    %v3072 = vrsqrt.pop %v3070
    %v3073 = vmul.f32 %v3057, %v3071
    %v3074 = vmul.f32 %v3058, %v3072
    %v3075 = vlaneseq
    %v3076 = vshrl.u32 %v3075, 7
    %v3077 = vsub.s32 2, %v3076
    %v3078 = vrot.slane %v1803, %v3077
    %v3079 = vmul.f32 %v3073, %v3078
    %v3080 = vmul.f32 %v3074, %v3078
    %v3081 = vlaneseq
    %v3082 = vshrl.u32 %v3081, 7
    %v3083 = vsub.s32 3, %v3082
    %v3084 = vrot.slane %v1803, %v3083
    %v3085 = vadd.f32 %v3079, %v3084
    %v3086 = vadd.f32 %v3080, %v3084
    %s3087 = scalar_lea.vmem %s5, 32
    %v3088 = vld [vmem:[%s3087] sm:$0xff]
    %v3089 = vld [vmem:[%s3087 + $0x8] sm:$0xff]
    %v3090 = vld [vmem:[%s3087 + $0x10] sm:$0xff]
    %v3091 = vld [vmem:[%s3087 + $0x18] sm:$0xff]
    %v3092 = vlaneseq
    %v3093 = vshrl.u32 %v3092, 7
    %v3094 = vsub.s32 4, %v3093
    %v3095 = vrot.slane %v1803, %v3094
    %v3097 = vsel %vm305, %v3085, 0
    %v3100 = vsel %vm305, %v3086, 0
    %3102 = vmatprep.subr.mxu0 0.0
    %3103 = vmatpush1.msra.mxu0 %v3088
    %3104 = vmatprep.subr.mxu0 0.0
    %3105 = vmatpush1.msra.mxu0 %v3089
    %3106 = vmatprep.subr.mxu0 0.0
    %3107 = vmatpush1.msra.mxu0 %v3090
    %3108 = vmatprep.subr.mxu0 0.0
    %3109 = vmatpush1.msra.mxu0 %v3091
    %3110 = vmatprep.subr.mxu0 0.0
    %3111 = vmatpush1.msra.mxu0 0.0
    %3112 = vmatprep.subr.mxu0 0.0
    %3113 = vmatpush1.msra.mxu0 0.0
    %3114 = vmatprep.subr.mxu0 0.0
    %3115 = vmatpush1.msra.mxu0 0.0
    %3116 = vmatprep.subr.mxu0 0.0
    %3117 = vmatpush1.msra.mxu0 0.0
    %3118 = vmatprep.subr.mxu0 0.0
    %3119 = vmatpush1.msra.mxu0 0.0
    %3120 = vmatprep.subr.mxu0 0.0
    %3121 = vmatpush1.msra.mxu0 0.0
    %3122 = vmatprep.subr.mxu0 0.0
    %3123 = vmatpush1.msra.mxu0 0.0
    %3124 = vmatprep.subr.mxu0 0.0
    %3125 = vmatpush1.msra.mxu0 0.0
    %3126 = vmatprep.subr.mxu0 0.0
    %3127 = vmatpush1.msra.mxu0 0.0
    %3128 = vmatprep.subr.mxu0 0.0
    %3129 = vmatpush1.msra.mxu0 0.0
    %3130 = vmatprep.subr.mxu0 0.0
    %3131 = vmatpush1.msra.mxu0 0.0
    %3132 = vmatprep.subr.mxu0 0.0
    %3133 = vmatpush1.msra.mxu0 0.0
    %3134 = vmatprep.subr.mxu0 0.0
    %3135 = vmatpush1.msra.mxu0 0.0
    %3136 = vmatprep.subr.mxu0 0.0
    %3137 = vmatpush1.msra.mxu0 0.0
    %3138 = vmatprep.subr.mxu0 0.0
    %3139 = vmatpush1.msra.mxu0 0.0
    %3140 = vmatprep.subr.mxu0 0.0
    %3141 = vmatpush1.msra.mxu0 0.0
    %3142 = vmatprep.subr.mxu0 0.0
    %3143 = vmatpush1.msra.mxu0 0.0
    %3144 = vmatprep.subr.mxu0 0.0
    %3145 = vmatpush1.msra.mxu0 0.0
    %3146 = vmatprep.subr.mxu0 0.0
    %3147 = vmatpush1.msra.mxu0 0.0
    %3148 = vmatprep.subr.mxu0 0.0
    %3149 = vmatpush1.msra.mxu0 0.0
    %3150 = vmatprep.subr.mxu0 0.0
    %3151 = vmatpush1.msra.mxu0 0.0
    %3152 = vmatprep.subr.mxu0 0.0
    %3153 = vmatpush1.msra.mxu0 0.0
    %3154 = vmatprep.subr.mxu0 0.0
    %3155 = vmatpush1.msra.mxu0 0.0
    %3156 = vmatprep.subr.mxu0 0.0
    %3157 = vmatpush1.msra.mxu0 0.0
    %3158 = vmatprep.subr.mxu0 0.0
    %3159 = vmatpush1.msra.mxu0 0.0
    %3160 = vmatprep.subr.mxu0 0.0
    %3161 = vmatpush1.msra.mxu0 0.0
    %3162 = vmatprep.subr.mxu0 0.0
    %3163 = vmatpush1.msra.mxu0 0.0
    %3164 = vmatprep.subr.mxu0 0.0
    %3165 = vmatpush1.msra.mxu0 0.0
    %3166 = vmatprep.mubr.f32.mxu0 0.0
    %3167 = vmatmul.mubr.f32.gmra.mrb[0].mxu0 %v3097
    %v3168 = vpop.f32.mrb[0].mxu0
    %v3169 = vadd.f32 %v3095, %v3168
    %v3170 = vpop.f32.mrb[0].mxu0
    %3171 = vmatprep.mubr.f32.mxu0 0.0
    %3172 = vmatmul.mubr.f32.gmra.mrb[0].mxu0 %v3100
    %v3173 = vpop.f32.mrb[0].mxu0
    %v3174 = vadd.f32 %v3095, %v3173
    %v3175 = vpop.f32.mrb[0].mxu0
    %3176 = vdwg.mxu0
    %v3177 = vmax.f32 %v3169, 0.0
    %v3178 = vmax.f32 %v3174, 0.0
    %s3179 = scalar_lea.vmem %s6, 64
    %v3180 = vld [vmem:[%s3179] sm:$0xff]
    %v3181 = vld [vmem:[%s3179 + $0x8] sm:$0xff]
    %v3182 = vld [vmem:[%s3179 + $0x10] sm:$0xff]
    %v3183 = vld [vmem:[%s3179 + $0x18] sm:$0xff]
    %v3184 = vld [vmem:[%s3179 + $0x20] sm:$0xff]
    %v3185 = vld [vmem:[%s3179 + $0x28] sm:$0xff]
    %v3186 = vld [vmem:[%s3179 + $0x30] sm:$0xff]
    %v3187 = vld [vmem:[%s3179 + $0x38] sm:$0xff]
    %v3188 = vlaneseq
    %v3189 = vshrl.u32 %v3188, 7
    %v3190 = vsub.s32 5, %v3189
    %v3191 = vrot.slane %v1803, %v3190
    %v3193 = vsel %vm1680, %v3177, 0
    %v3196 = vsel %vm1680, %v3178, 0
    %3198 = vmatprep.subr.mxu0 0.0
    %3199 = vmatpush1.msra.mxu0 %v3180
    %3200 = vmatprep.subr.mxu0 0.0
    %3201 = vmatpush1.msra.mxu0 %v3181
    %3202 = vmatprep.subr.mxu0 0.0
    %3203 = vmatpush1.msra.mxu0 %v3182
    %3204 = vmatprep.subr.mxu0 0.0
    %3205 = vmatpush1.msra.mxu0 %v3183
    %3206 = vmatprep.subr.mxu0 0.0
    %3207 = vmatpush1.msra.mxu0 %v3184
    %3208 = vmatprep.subr.mxu0 0.0
    %3209 = vmatpush1.msra.mxu0 %v3185
    %3210 = vmatprep.subr.mxu0 0.0
    %3211 = vmatpush1.msra.mxu0 %v3186
    %3212 = vmatprep.subr.mxu0 0.0
    %3213 = vmatpush1.msra.mxu0 %v3187
    %3214 = vmatprep.subr.mxu0 0.0
    %3215 = vmatpush1.msra.mxu0 0.0
    %3216 = vmatprep.subr.mxu0 0.0
    %3217 = vmatpush1.msra.mxu0 0.0
    %3218 = vmatprep.subr.mxu0 0.0
    %3219 = vmatpush1.msra.mxu0 0.0
    %3220 = vmatprep.subr.mxu0 0.0
    %3221 = vmatpush1.msra.mxu0 0.0
    %3222 = vmatprep.subr.mxu0 0.0
    %3223 = vmatpush1.msra.mxu0 0.0
    %3224 = vmatprep.subr.mxu0 0.0
    %3225 = vmatpush1.msra.mxu0 0.0
    %3226 = vmatprep.subr.mxu0 0.0
    %3227 = vmatpush1.msra.mxu0 0.0
    %3228 = vmatprep.subr.mxu0 0.0
    %3229 = vmatpush1.msra.mxu0 0.0
    %3230 = vmatprep.subr.mxu0 0.0
    %3231 = vmatpush1.msra.mxu0 0.0
    %3232 = vmatprep.subr.mxu0 0.0
    %3233 = vmatpush1.msra.mxu0 0.0
    %3234 = vmatprep.subr.mxu0 0.0
    %3235 = vmatpush1.msra.mxu0 0.0
    %3236 = vmatprep.subr.mxu0 0.0
    %3237 = vmatpush1.msra.mxu0 0.0
    %3238 = vmatprep.subr.mxu0 0.0
    %3239 = vmatpush1.msra.mxu0 0.0
    %3240 = vmatprep.subr.mxu0 0.0
    %3241 = vmatpush1.msra.mxu0 0.0
    %3242 = vmatprep.subr.mxu0 0.0
    %3243 = vmatpush1.msra.mxu0 0.0
    %3244 = vmatprep.subr.mxu0 0.0
    %3245 = vmatpush1.msra.mxu0 0.0
    %3246 = vmatprep.subr.mxu0 0.0
    %3247 = vmatpush1.msra.mxu0 0.0
    %3248 = vmatprep.subr.mxu0 0.0
    %3249 = vmatpush1.msra.mxu0 0.0
    %3250 = vmatprep.subr.mxu0 0.0
    %3251 = vmatpush1.msra.mxu0 0.0
    %3252 = vmatprep.subr.mxu0 0.0
    %3253 = vmatpush1.msra.mxu0 0.0
    %3254 = vmatprep.subr.mxu0 0.0
    %3255 = vmatpush1.msra.mxu0 0.0
    %3256 = vmatprep.subr.mxu0 0.0
    %3257 = vmatpush1.msra.mxu0 0.0
    %3258 = vmatprep.subr.mxu0 0.0
    %3259 = vmatpush1.msra.mxu0 0.0
    %3260 = vmatprep.subr.mxu0 0.0
    %3261 = vmatpush1.msra.mxu0 0.0
    %3262 = vmatprep.mubr.f32.mxu0 0.0
    %3263 = vmatmul.mubr.f32.gmra.mrb[0].mxu0 %v3193
    %v3264 = vpop.f32.mrb[0].mxu0
    %v3265 = vadd.f32 %v3191, %v3264
    %v3266 = vpop.f32.mrb[0].mxu0
    %3267 = vmatprep.mubr.f32.mxu0 0.0
    %3268 = vmatmul.mubr.f32.gmra.mrb[0].mxu0 %v3196
    %v3269 = vpop.f32.mrb[0].mxu0
    %v3270 = vadd.f32 %v3191, %v3269
    %v3271 = vpop.f32.mrb[0].mxu0
    %3272 = vdwg.mxu0
    %v3273 = vadd.f32 %v3085, %v3265
    %v3274 = vadd.f32 %v3086, %v3270
    %v3275 = vsel %vm305, %v3273, 0.0
    %3276 = vadd.xlane.f32.xlu0 %v3275
    %v3277 = vpop.xlane.xlu0 %3276
    %v3278 = vsel %vm305, %v3274, 0.0
    %3279 = vadd.xlane.f32.xlu0 %v3278
    %v3280 = vpop.xlane.xlu0 %3279
    %v3281 = vmul.f32 %v3277, %v1544
    %v3282 = vmul.f32 %v3280, %v1544
    %v3283 = vsub.f32 %v3273, %v3281
    %v3284 = vsub.f32 %v3274, %v3282
    %v3285 = vmul.f32 %v3283, %v3283
    %v3286 = vmul.f32 %v3284, %v3284
    %v3287 = vsel %vm305, %v3285, 0.0
    %3288 = vadd.xlane.f32.xlu0 %v3287
    %v3289 = vpop.xlane.xlu0 %3288
    %v3290 = vsel %vm305, %v3286, 0.0
    %3291 = vadd.xlane.f32.xlu0 %v3290
    %v3292 = vpop.xlane.xlu0 %3291
    %v3293 = vmul.f32 %v3289, %v1544
    %v3294 = vmul.f32 %v3292, %v1544
    %v3295 = vadd.f32 %v3293, 1e-05
    %v3296 = vadd.f32 %v3294, 1e-05
    %v3297 = vrsqrt.pop %v3295
    %v3298 = vrsqrt.pop %v3296
    %v3299 = vmul.f32 %v3283, %v3297
    %v3300 = vmul.f32 %v3284, %v3298
    %v3301 = vlaneseq
    %v3302 = vshrl.u32 %v3301, 7
    %v3303 = vsub.s32 6, %v3302
    %v3304 = vrot.slane %v1803, %v3303
    %v3305 = vmul.f32 %v3299, %v3304
    %v3306 = vmul.f32 %v3300, %v3304
    %v3307 = vlaneseq
    %v3308 = vshrl.u32 %v3307, 7
    %v3309 = vsub.s32 7, %v3308
    %v3310 = vrot.slane %v1803, %v3309
    %v3311 = vadd.f32 %v3305, %v3310
    %v3312 = vadd.f32 %v3306, %v3310
    %v3313 = vld [vmem:[%s1] sm:$0x3]
    %v3314 = vld [vmem:[%s8] sm:$0xff]
    %v3315 = vld [vmem:[%s8 + $0x8] sm:$0xff]
    %v3316 = vld [vmem:[%s8 + $0x10] sm:$0xff]
    %v3317 = vld [vmem:[%s8 + $0x18] sm:$0xff]
    %v3318 = vlaneseq
    %v3319 = vshrl.u32 %v3318, 7
    %v3320 = vsub.s32 1, %v3319
    %v3321 = vrot.slane %v63, %v3320
    %v3323 = vsel %vm305, %v3311, 0
    %v3326 = vsel %vm305, %v3312, 0
    %3328 = vmatprep.subr.mxu0 0.0
    %3329 = vmatpush1.msra.mxu0 %v3314
    %3330 = vmatprep.subr.mxu0 0.0
    %3331 = vmatpush1.msra.mxu0 %v3315
    %3332 = vmatprep.subr.mxu0 0.0
    %3333 = vmatpush1.msra.mxu0 %v3316
    %3334 = vmatprep.subr.mxu0 0.0
    %3335 = vmatpush1.msra.mxu0 %v3317
    %3336 = vmatprep.subr.mxu0 0.0
    %3337 = vmatpush1.msra.mxu0 0.0
    %3338 = vmatprep.subr.mxu0 0.0
    %3339 = vmatpush1.msra.mxu0 0.0
    %3340 = vmatprep.subr.mxu0 0.0
    %3341 = vmatpush1.msra.mxu0 0.0
    %3342 = vmatprep.subr.mxu0 0.0
    %3343 = vmatpush1.msra.mxu0 0.0
    %3344 = vmatprep.subr.mxu0 0.0
    %3345 = vmatpush1.msra.mxu0 0.0
    %3346 = vmatprep.subr.mxu0 0.0
    %3347 = vmatpush1.msra.mxu0 0.0
    %3348 = vmatprep.subr.mxu0 0.0
    %3349 = vmatpush1.msra.mxu0 0.0
    %3350 = vmatprep.subr.mxu0 0.0
    %3351 = vmatpush1.msra.mxu0 0.0
    %3352 = vmatprep.subr.mxu0 0.0
    %3353 = vmatpush1.msra.mxu0 0.0
    %3354 = vmatprep.subr.mxu0 0.0
    %3355 = vmatpush1.msra.mxu0 0.0
    %3356 = vmatprep.subr.mxu0 0.0
    %3357 = vmatpush1.msra.mxu0 0.0
    %3358 = vmatprep.subr.mxu0 0.0
    %3359 = vmatpush1.msra.mxu0 0.0
    %3360 = vmatprep.subr.mxu0 0.0
    %3361 = vmatpush1.msra.mxu0 0.0
    %3362 = vmatprep.subr.mxu0 0.0
    %3363 = vmatpush1.msra.mxu0 0.0
    %3364 = vmatprep.subr.mxu0 0.0
    %3365 = vmatpush1.msra.mxu0 0.0
    %3366 = vmatprep.subr.mxu0 0.0
    %3367 = vmatpush1.msra.mxu0 0.0
    %3368 = vmatprep.subr.mxu0 0.0
    %3369 = vmatpush1.msra.mxu0 0.0
    %3370 = vmatprep.subr.mxu0 0.0
    %3371 = vmatpush1.msra.mxu0 0.0
    %3372 = vmatprep.subr.mxu0 0.0
    %3373 = vmatpush1.msra.mxu0 0.0
    %3374 = vmatprep.subr.mxu0 0.0
    %3375 = vmatpush1.msra.mxu0 0.0
    %3376 = vmatprep.subr.mxu0 0.0
    %3377 = vmatpush1.msra.mxu0 0.0
    %3378 = vmatprep.subr.mxu0 0.0
    %3379 = vmatpush1.msra.mxu0 0.0
    %3380 = vmatprep.subr.mxu0 0.0
    %3381 = vmatpush1.msra.mxu0 0.0
    %3382 = vmatprep.subr.mxu0 0.0
    %3383 = vmatpush1.msra.mxu0 0.0
    %3384 = vmatprep.subr.mxu0 0.0
    %3385 = vmatpush1.msra.mxu0 0.0
    %3386 = vmatprep.subr.mxu0 0.0
    %3387 = vmatpush1.msra.mxu0 0.0
    %3388 = vmatprep.subr.mxu0 0.0
    %3389 = vmatpush1.msra.mxu0 0.0
    %3390 = vmatprep.subr.mxu0 0.0
    %3391 = vmatpush1.msra.mxu0 0.0
    %3392 = vmatprep.mubr.f32.mxu0 0.0
    %3393 = vmatmul.mubr.f32.gmra.mrb[0].mxu0 %v3323
    %v3394 = vpop.f32.mrb[0].mxu0
    %v3395 = vadd.f32 %v3321, %v3394
    %v3396 = vpop.f32.mrb[0].mxu0
    %3397 = vmatprep.mubr.f32.mxu0 0.0
    %3398 = vmatmul.mubr.f32.gmra.mrb[0].mxu0 %v3326
    %v3399 = vpop.f32.mrb[0].mxu0
    %v3400 = vadd.f32 %v3321, %v3399
    %v3401 = vpop.f32.mrb[0].mxu0
    %3402 = vdwg.mxu0
    %v3403 = vmax.f32 %v3395, 0.0
    %v3404 = vmax.f32 %v3400, 0.0
    %v3406 = vsel %vm305, %v3313, 0
    %3408 = vmatprep.subr.mxu0 0.0
    %3409 = vmatpush1.msra.mxu0 %v3314
    %3410 = vmatprep.subr.mxu0 0.0
    %3411 = vmatpush1.msra.mxu0 %v3315
    %3412 = vmatprep.subr.mxu0 0.0
    %3413 = vmatpush1.msra.mxu0 %v3316
    %3414 = vmatprep.subr.mxu0 0.0
    %3415 = vmatpush1.msra.mxu0 %v3317
    %3416 = vmatprep.subr.mxu0 0.0
    %3417 = vmatpush1.msra.mxu0 0.0
    %3418 = vmatprep.subr.mxu0 0.0
    %3419 = vmatpush1.msra.mxu0 0.0
    %3420 = vmatprep.subr.mxu0 0.0
    %3421 = vmatpush1.msra.mxu0 0.0
    %3422 = vmatprep.subr.mxu0 0.0
    %3423 = vmatpush1.msra.mxu0 0.0
    %3424 = vmatprep.subr.mxu0 0.0
    %3425 = vmatpush1.msra.mxu0 0.0
    %3426 = vmatprep.subr.mxu0 0.0
    %3427 = vmatpush1.msra.mxu0 0.0
    %3428 = vmatprep.subr.mxu0 0.0
    %3429 = vmatpush1.msra.mxu0 0.0
    %3430 = vmatprep.subr.mxu0 0.0
    %3431 = vmatpush1.msra.mxu0 0.0
    %3432 = vmatprep.subr.mxu0 0.0
    %3433 = vmatpush1.msra.mxu0 0.0
    %3434 = vmatprep.subr.mxu0 0.0
    %3435 = vmatpush1.msra.mxu0 0.0
    %3436 = vmatprep.subr.mxu0 0.0
    %3437 = vmatpush1.msra.mxu0 0.0
    %3438 = vmatprep.subr.mxu0 0.0
    %3439 = vmatpush1.msra.mxu0 0.0
    %3440 = vmatprep.subr.mxu0 0.0
    %3441 = vmatpush1.msra.mxu0 0.0
    %3442 = vmatprep.subr.mxu0 0.0
    %3443 = vmatpush1.msra.mxu0 0.0
    %3444 = vmatprep.subr.mxu0 0.0
    %3445 = vmatpush1.msra.mxu0 0.0
    %3446 = vmatprep.subr.mxu0 0.0
    %3447 = vmatpush1.msra.mxu0 0.0
    %3448 = vmatprep.subr.mxu0 0.0
    %3449 = vmatpush1.msra.mxu0 0.0
    %3450 = vmatprep.subr.mxu0 0.0
    %3451 = vmatpush1.msra.mxu0 0.0
    %3452 = vmatprep.subr.mxu0 0.0
    %3453 = vmatpush1.msra.mxu0 0.0
    %3454 = vmatprep.subr.mxu0 0.0
    %3455 = vmatpush1.msra.mxu0 0.0
    %3456 = vmatprep.subr.mxu0 0.0
    %3457 = vmatpush1.msra.mxu0 0.0
    %3458 = vmatprep.subr.mxu0 0.0
    %3459 = vmatpush1.msra.mxu0 0.0
    %3460 = vmatprep.subr.mxu0 0.0
    %3461 = vmatpush1.msra.mxu0 0.0
    %3462 = vmatprep.subr.mxu0 0.0
    %3463 = vmatpush1.msra.mxu0 0.0
    %3464 = vmatprep.subr.mxu0 0.0
    %3465 = vmatpush1.msra.mxu0 0.0
    %3466 = vmatprep.subr.mxu0 0.0
    %3467 = vmatpush1.msra.mxu0 0.0
    %3468 = vmatprep.subr.mxu0 0.0
    %3469 = vmatpush1.msra.mxu0 0.0
    %3470 = vmatprep.subr.mxu0 0.0
    %3471 = vmatpush1.msra.mxu0 0.0
    %3472 = vmatprep.mubr.f32.mxu0 0.0
    %3473 = vmatmul.mubr.f32.gmra.mrb[0].mxu0 %v3406
    %v3474 = vpop.f32.mrb[0].mxu0
    %v3475 = vadd.f32 %v3321, %v3474
    %v3476 = vpop.f32.mrb[0].mxu0
    %3477 = vdwg.mxu0
    %v3478 = vmax.f32 %v3475, 0.0
    %v3480 = vsel %vm202, %v169, 0
    %v3483 = vsel %vm209, %v3478, 0
    %3485 = vmatprep.subr.mxu0 0.0
    %3486 = vmatpush1.msra.mxu0 %v3483
    %3487 = vmatprep.subr.mxu0 0.0
    %3488 = vmatpush1.msra.mxu0 0.0
    %3489 = vmatprep.subr.mxu0 0.0
    %3490 = vmatpush1.msra.mxu0 0.0
    %3491 = vmatprep.subr.mxu0 0.0
    %3492 = vmatpush1.msra.mxu0 0.0
    %3493 = vmatprep.subr.mxu0 0.0
    %3494 = vmatpush1.msra.mxu0 0.0
    %3495 = vmatprep.subr.mxu0 0.0
    %3496 = vmatpush1.msra.mxu0 0.0
    %3497 = vmatprep.subr.mxu0 0.0
    %3498 = vmatpush1.msra.mxu0 0.0
    %3499 = vmatprep.subr.mxu0 0.0
    %3500 = vmatpush1.msra.mxu0 0.0
    %3501 = vmatprep.subr.mxu0 0.0
    %3502 = vmatpush1.msra.mxu0 0.0
    %3503 = vmatprep.subr.mxu0 0.0
    %3504 = vmatpush1.msra.mxu0 0.0
    %3505 = vmatprep.subr.mxu0 0.0
    %3506 = vmatpush1.msra.mxu0 0.0
    %3507 = vmatprep.subr.mxu0 0.0
    %3508 = vmatpush1.msra.mxu0 0.0
    %3509 = vmatprep.subr.mxu0 0.0
    %3510 = vmatpush1.msra.mxu0 0.0
    %3511 = vmatprep.subr.mxu0 0.0
    %3512 = vmatpush1.msra.mxu0 0.0
    %3513 = vmatprep.subr.mxu0 0.0
    %3514 = vmatpush1.msra.mxu0 0.0
    %3515 = vmatprep.subr.mxu0 0.0
    %3516 = vmatpush1.msra.mxu0 0.0
    %3517 = vmatprep.subr.mxu0 0.0
    %3518 = vmatpush1.msra.mxu0 0.0
    %3519 = vmatprep.subr.mxu0 0.0
    %3520 = vmatpush1.msra.mxu0 0.0
    %3521 = vmatprep.subr.mxu0 0.0
    %3522 = vmatpush1.msra.mxu0 0.0
    %3523 = vmatprep.subr.mxu0 0.0
    %3524 = vmatpush1.msra.mxu0 0.0
    %3525 = vmatprep.subr.mxu0 0.0
    %3526 = vmatpush1.msra.mxu0 0.0
    %3527 = vmatprep.subr.mxu0 0.0
    %3528 = vmatpush1.msra.mxu0 0.0
    %3529 = vmatprep.subr.mxu0 0.0
    %3530 = vmatpush1.msra.mxu0 0.0
    %3531 = vmatprep.subr.mxu0 0.0
    %3532 = vmatpush1.msra.mxu0 0.0
    %3533 = vmatprep.subr.mxu0 0.0
    %3534 = vmatpush1.msra.mxu0 0.0
    %3535 = vmatprep.subr.mxu0 0.0
    %3536 = vmatpush1.msra.mxu0 0.0
    %3537 = vmatprep.subr.mxu0 0.0
    %3538 = vmatpush1.msra.mxu0 0.0
    %3539 = vmatprep.subr.mxu0 0.0
    %3540 = vmatpush1.msra.mxu0 0.0
    %3541 = vmatprep.subr.mxu0 0.0
    %3542 = vmatpush1.msra.mxu0 0.0
    %3543 = vmatprep.subr.mxu0 0.0
    %3544 = vmatpush1.msra.mxu0 0.0
    %3545 = vmatprep.subr.mxu0 0.0
    %3546 = vmatpush1.msra.mxu0 0.0
    %3547 = vmatprep.subr.mxu0 0.0
    %3548 = vmatpush1.msra.mxu0 0.0
    %3549 = vmatprep.mubr.f32.mxu0 0.0
    %3550 = vmatmul.mubr.f32.gmra.mrb[0].mxu0 %v3480
    %v3551 = vpop.f32.mrb[0].mxu0
    %v3552 = vadd.f32 0.0, %v3551
    %v3553 = vpop.f32.mrb[0].mxu0
    %3554 = vdwg.mxu0
    %v3555 = vsel %vm480, %v164, 0
    %3557 = vmatprep.subr.mxu0 0.0
    %3558 = vmatpush1.msra.mxu0 %v3403
    %3559 = vmatprep.subr.mxu0 0.0
    %3560 = vmatpush1.msra.mxu0 %v3404
    %3561 = vmatprep.subr.mxu0 0.0
    %3562 = vmatpush1.msra.mxu0 0.0
    %3563 = vmatprep.subr.mxu0 0.0
    %3564 = vmatpush1.msra.mxu0 0.0
    %3565 = vmatprep.subr.mxu0 0.0
    %3566 = vmatpush1.msra.mxu0 0.0
    %3567 = vmatprep.subr.mxu0 0.0
    %3568 = vmatpush1.msra.mxu0 0.0
    %3569 = vmatprep.subr.mxu0 0.0
    %3570 = vmatpush1.msra.mxu0 0.0
    %3571 = vmatprep.subr.mxu0 0.0
    %3572 = vmatpush1.msra.mxu0 0.0
    %3573 = vmatprep.subr.mxu0 0.0
    %3574 = vmatpush1.msra.mxu0 0.0
    %3575 = vmatprep.subr.mxu0 0.0
    %3576 = vmatpush1.msra.mxu0 0.0
    %3577 = vmatprep.subr.mxu0 0.0
    %3578 = vmatpush1.msra.mxu0 0.0
    %3579 = vmatprep.subr.mxu0 0.0
    %3580 = vmatpush1.msra.mxu0 0.0
    %3581 = vmatprep.subr.mxu0 0.0
    %3582 = vmatpush1.msra.mxu0 0.0
    %3583 = vmatprep.subr.mxu0 0.0
    %3584 = vmatpush1.msra.mxu0 0.0
    %3585 = vmatprep.subr.mxu0 0.0
    %3586 = vmatpush1.msra.mxu0 0.0
    %3587 = vmatprep.subr.mxu0 0.0
    %3588 = vmatpush1.msra.mxu0 0.0
    %3589 = vmatprep.subr.mxu0 0.0
    %3590 = vmatpush1.msra.mxu0 0.0
    %3591 = vmatprep.subr.mxu0 0.0
    %3592 = vmatpush1.msra.mxu0 0.0
    %3593 = vmatprep.subr.mxu0 0.0
    %3594 = vmatpush1.msra.mxu0 0.0
    %3595 = vmatprep.subr.mxu0 0.0
    %3596 = vmatpush1.msra.mxu0 0.0
    %3597 = vmatprep.subr.mxu0 0.0
    %3598 = vmatpush1.msra.mxu0 0.0
    %3599 = vmatprep.subr.mxu0 0.0
    %3600 = vmatpush1.msra.mxu0 0.0
    %3601 = vmatprep.subr.mxu0 0.0
    %3602 = vmatpush1.msra.mxu0 0.0
    %3603 = vmatprep.subr.mxu0 0.0
    %3604 = vmatpush1.msra.mxu0 0.0
    %3605 = vmatprep.subr.mxu0 0.0
    %3606 = vmatpush1.msra.mxu0 0.0
    %3607 = vmatprep.subr.mxu0 0.0
    %3608 = vmatpush1.msra.mxu0 0.0
    %3609 = vmatprep.subr.mxu0 0.0
    %3610 = vmatpush1.msra.mxu0 0.0
    %3611 = vmatprep.subr.mxu0 0.0
    %3612 = vmatpush1.msra.mxu0 0.0
    %3613 = vmatprep.subr.mxu0 0.0
    %3614 = vmatpush1.msra.mxu0 0.0
    %3615 = vmatprep.subr.mxu0 0.0
    %3616 = vmatpush1.msra.mxu0 0.0
    %3617 = vmatprep.subr.mxu0 0.0
    %3618 = vmatpush1.msra.mxu0 0.0
    %3619 = vmatprep.subr.mxu0 0.0
    %3620 = vmatpush1.msra.mxu0 0.0
    %3621 = vmatprep.mubr.f32.mxu0 0.0
    %3622 = vmatmul.mubr.f32.gmra.mrb[0].mxu0 %v3555
    %v3623 = vpop.f32.mrb[0].mxu0
    %v3624 = vadd.f32 %v3552, %v3623
    %v3625 = vpop.f32.mrb[0].mxu0
    %3626 = vdwg.mxu0
    %v3627 = vmul.f32 %v3624, 0.11111111
    %vm3628 = vcmask 123904
    %v3629 = vsel %vm3628, %v3627, 0.0
    %3630 = vadd.xlane.f32.xlu0 %v3629
    %v3631 = vpop.xlane.xlu0 %3630
    %v3632 = vrcp.pop 16.0
    %v3633 = vmul.f32 %v3631, %v3632
    %v3634 = vsub.f32 %v3627, %v3633
    %v3635 = vmul.f32 %v3634, %v3634
    %v3636 = vsel %vm3628, %v3635, 0.0
    %3637 = vadd.xlane.f32.xlu0 %v3636
    %v3638 = vpop.xlane.xlu0 %3637
    %v3639 = vmul.f32 %v3638, %v3632
    %v3640 = vadd.f32 %v3639, 1e-05
    %v3641 = vrsqrt.pop %v3640
    %v3642 = vmul.f32 %v3634, %v3641
    %v3643 = vlaneseq
    %v3644 = vshrl.u32 %v3643, 7
    %v3645 = vsub.s32 2, %v3644
    %v3646 = vrot.slane %v63, %v3645
    %v3647 = vmul.f32 %v3642, %v3646
    %v3648 = vlaneseq
    %v3649 = vshrl.u32 %v3648, 7
    %v3650 = vsub.s32 3, %v3649
    %v3651 = vrot.slane %v63, %v3650
    %v3652 = vadd.f32 %v3647, %v3651
    %v3653 = vld [vmem:[%s9] sm:$0xff]
    %v3654 = vld [vmem:[%s9 + $0x8] sm:$0xff]
    %v3655 = vlaneseq
    %v3656 = vshrl.u32 %v3655, 7
    %v3657 = vsub.s32 4, %v3656
    %v3658 = vrot.slane %v63, %v3657
    %v3660 = vsel %vm480, %v3652, 0
    %3662 = vmatprep.subr.mxu0 0.0
    %3663 = vmatpush1.msra.mxu0 %v3653
    %3664 = vmatprep.subr.mxu0 0.0
    %3665 = vmatpush1.msra.mxu0 %v3654
    %3666 = vmatprep.subr.mxu0 0.0
    %3667 = vmatpush1.msra.mxu0 0.0
    %3668 = vmatprep.subr.mxu0 0.0
    %3669 = vmatpush1.msra.mxu0 0.0
    %3670 = vmatprep.subr.mxu0 0.0
    %3671 = vmatpush1.msra.mxu0 0.0
    %3672 = vmatprep.subr.mxu0 0.0
    %3673 = vmatpush1.msra.mxu0 0.0
    %3674 = vmatprep.subr.mxu0 0.0
    %3675 = vmatpush1.msra.mxu0 0.0
    %3676 = vmatprep.subr.mxu0 0.0
    %3677 = vmatpush1.msra.mxu0 0.0
    %3678 = vmatprep.subr.mxu0 0.0
    %3679 = vmatpush1.msra.mxu0 0.0
    %3680 = vmatprep.subr.mxu0 0.0
    %3681 = vmatpush1.msra.mxu0 0.0
    %3682 = vmatprep.subr.mxu0 0.0
    %3683 = vmatpush1.msra.mxu0 0.0
    %3684 = vmatprep.subr.mxu0 0.0
    %3685 = vmatpush1.msra.mxu0 0.0
    %3686 = vmatprep.subr.mxu0 0.0
    %3687 = vmatpush1.msra.mxu0 0.0
    %3688 = vmatprep.subr.mxu0 0.0
    %3689 = vmatpush1.msra.mxu0 0.0
    %3690 = vmatprep.subr.mxu0 0.0
    %3691 = vmatpush1.msra.mxu0 0.0
    %3692 = vmatprep.subr.mxu0 0.0
    %3693 = vmatpush1.msra.mxu0 0.0
    %3694 = vmatprep.subr.mxu0 0.0
    %3695 = vmatpush1.msra.mxu0 0.0
    %3696 = vmatprep.subr.mxu0 0.0
    %3697 = vmatpush1.msra.mxu0 0.0
    %3698 = vmatprep.subr.mxu0 0.0
    %3699 = vmatpush1.msra.mxu0 0.0
    %3700 = vmatprep.subr.mxu0 0.0
    %3701 = vmatpush1.msra.mxu0 0.0
    %3702 = vmatprep.subr.mxu0 0.0
    %3703 = vmatpush1.msra.mxu0 0.0
    %3704 = vmatprep.subr.mxu0 0.0
    %3705 = vmatpush1.msra.mxu0 0.0
    %3706 = vmatprep.subr.mxu0 0.0
    %3707 = vmatpush1.msra.mxu0 0.0
    %3708 = vmatprep.subr.mxu0 0.0
    %3709 = vmatpush1.msra.mxu0 0.0
    %3710 = vmatprep.subr.mxu0 0.0
    %3711 = vmatpush1.msra.mxu0 0.0
    %3712 = vmatprep.subr.mxu0 0.0
    %3713 = vmatpush1.msra.mxu0 0.0
    %3714 = vmatprep.subr.mxu0 0.0
    %3715 = vmatpush1.msra.mxu0 0.0
    %3716 = vmatprep.subr.mxu0 0.0
    %3717 = vmatpush1.msra.mxu0 0.0
    %3718 = vmatprep.subr.mxu0 0.0
    %3719 = vmatpush1.msra.mxu0 0.0
    %3720 = vmatprep.subr.mxu0 0.0
    %3721 = vmatpush1.msra.mxu0 0.0
    %3722 = vmatprep.subr.mxu0 0.0
    %3723 = vmatpush1.msra.mxu0 0.0
    %3724 = vmatprep.subr.mxu0 0.0
    %3725 = vmatpush1.msra.mxu0 0.0
    %3726 = vmatprep.mubr.f32.mxu0 0.0
    %3727 = vmatmul.mubr.f32.gmra.mrb[0].mxu0 %v3660
    %v3728 = vpop.f32.mrb[0].mxu0
    %v3729 = vadd.f32 %v3658, %v3728
    %v3730 = vpop.f32.mrb[0].mxu0
    %3731 = vdwg.mxu0
    %vm3732 = vcmask 25600
    %3733 = vst.msk [vmem:[#allocation7] sm:$0x3] %vm3732, %v3729
    // Predicated region
    $region54: #{special_transformer_forward.1} parent=1 // pred_check
      _
    $region55: #{special_transformer_forward.1} parent=1 // pred_check_branch
      %3735 = sbr.rel (0) target = $region57
    $region56: #{special_transformer_forward.1} parent=1 // pred_region
      %s3737 = ssub.s32 32, 32
      %3738 = vsyncadd [#allocation4], %s3737
      %s3740 = sshll.u32 [#allocation7], 4
      %s3741 = int_to_ptr.vmem [resolvable:$true] %s3740
      %3743 = dma.vmem_to_hbm [thread:$0]  %s3741, 32, %s11, [#allocation4]
    $region57: #{special_transformer_forward.1} parent=1 // pred_fallthru
      _
    // Predicated region
    $region58: #{special_transformer_forward.1} parent=1 // pred_check
      _
    $region59: #{special_transformer_forward.1} parent=1 // pred_check_branch
      %3745 = sbr.rel (0) target = $region61
    $region60: #{special_transformer_forward.1} parent=1 // pred_region
      %3746 = dma.done [#allocation4], 32
    $region61: #{special_transformer_forward.1} parent=1 // pred_fallthru
      _
    %3747 = vsyncpa [#allocation3], 1
    %3748 = vsyncpa [#allocation6], 1
    %3749 = vsyncpa [#allocation4], 1

</llo_original>
